<compile_context>
chip_gen: v7x
topology: tpu7x:2x2x1
jax: 0.10.0
libtpu: 0.0.40
codegen_flags: <defaults>
</compile_context>

<pallas_src>
import functools

import jax
import jax.numpy as jnp
from jax.experimental import pallas as pl
from jax.experimental.pallas import tpu as pltpu


def _round_up(x, m):
    return ((x + m - 1) // m) * m


def _vmem_capacity_bytes():
    try:
        return int(pltpu.get_tpu_info().vmem_capacity_bytes)
    except Exception:
        return 64 * 1024 * 1024  # conservative (v7x per-core VMEM)


# -----------------------------------------------------------------------------
# Pallas kernel: one grid step == one chunk of `tc` LSTM time steps for one
# batch block of `bblk` sequences.
# -----------------------------------------------------------------------------
def _ch_lstm_t_kernel(x_ref, wih_ref, whh_ref, bias_ref, wlin_ref, blin_ref,
                      out_ref, h_ref, c_ref, gx_ref, hs_ref,
                      *, tc, bblk, hp, cc, op, unroll):
    """Refs:
      x_ref   : (tc, bblk, cc)     input chunk (time-major)        [mm dtype]
      wih_ref : (cc, 4*hp)         W_ih^T, per-gate H->Hp padded   [mm dtype]
      whh_ref : (hp, 4*hp)         W_hh^T, per-gate padded         [mm dtype]
      bias_ref: (1, 4*hp)          b_ih + b_hh, per-gate padded    [f32]
      wlin_ref: (hp, op)           W_lin^T, padded                 [mm dtype]
      blin_ref: (1, op)            b_lin, padded                   [f32]
      out_ref : (tc, bblk, op)     chunk output                    [f32]
      h_ref, c_ref : (bblk, hp)    persistent LSTM state (f32 scratch)
      gx_ref  : (tc*bblk, 4*hp)    hoisted input-gate slab (f32 scratch)
      hs_ref  : (tc*bblk, hp)      hidden-state slab (mm dtype scratch)
    """
    mm_dtype = wih_ref.dtype

    # Reset state at the start of each sequence (time-chunk index == 0).
    @pl.when(pl.program_id(1) == 0)
    def _():
        h_ref[...] = jnp.zeros_like(h_ref)
        c_ref[...] = jnp.zeros_like(c_ref)

    # Hoisted input projection: one MXU matmul covering all tc steps, with the
    # combined LSTM bias added exactly once per chunk.
    x2 = x_ref[...].reshape(tc * bblk, cc)
    gx_ref[...] = (
        jnp.dot(x2, wih_ref[...], preferred_element_type=jnp.float32)
        + bias_ref[...])

    def sigmoid(v):
        # 0.5*tanh(0.5*x)+0.5 keeps the transcendental on the EUP slot
        # (avoids exp + VPU divide on the serial path).
        return 0.5 * jnp.tanh(0.5 * v) + 0.5

    def step(s, carry):
        off = pl.multiple_of(s * bblk, bblk)
        # Only the recurrent dot + gate elementwise math stay serial.
        gates = gx_ref[pl.ds(off, bblk), :] + jnp.dot(
            h_ref[...].astype(mm_dtype), whh_ref[...],
            preferred_element_type=jnp.float32)
        # PyTorch gate order [i, f, g, o]; slices are lane-aligned (hp % 128 == 0).
        i_g = sigmoid(gates[:, 0 * hp:1 * hp])
        f_g = sigmoid(gates[:, 1 * hp:2 * hp])
        g_g = jnp.tanh(gates[:, 2 * hp:3 * hp])
        o_g = sigmoid(gates[:, 3 * hp:4 * hp])
        c_new = f_g * c_ref[...] + i_g * g_g
        h_new = o_g * jnp.tanh(c_new)
        c_ref[...] = c_new
        h_ref[...] = h_new
        hs_ref[pl.ds(off, bblk), :] = h_new.astype(hs_ref.dtype)
        return carry

    jax.lax.fori_loop(0, tc, step, 0, unroll=unroll)

    # Deferred Linear projection: one matmul + one lane-dense bulk store.
    y = (jnp.dot(hs_ref[...], wlin_ref[...], preferred_element_type=jnp.float32)
         + blin_ref[...])
    out_ref[...] = y.reshape(tc, bblk, op).astype(out_ref.dtype)


# -----------------------------------------------------------------------------
# Wrapper
# -----------------------------------------------------------------------------
def _pad_gate_rows(w, h, hp):
    """(4H, K) -> (4Hp, K): zero-pad each of the 4 stacked gate blocks H->Hp."""
    k = w.shape[1]
    wg = w.reshape(4, h, k)
    wg = jnp.pad(wg, ((0, 0), (0, hp - h), (0, 0)))
    return wg.reshape(4 * hp, k)


def _pad_gate_vec(v, h, hp):
    vg = v.reshape(4, h)
    vg = jnp.pad(vg, ((0, 0), (0, hp - h)))
    return vg.reshape(4 * hp)


def ch_lstm_t_pallas(x, params, *, matmul_dtype=jnp.bfloat16, chunk=None,
                     batch_blocks=None, vmem_budget_bytes=None):
    """x: (b, c, f, t) float32.  Returns (b, out_ch, f, t) float32.

    matmul_dtype: dtype of MXU operands (weights, x, hs slab).  bfloat16 is the
    default fast path on all generations; gate math and the persistent h/c
    state stay float32.  Note bf16 operands round the recurrent h each step, so
    error grows with sequence length; use matmul_dtype=float32 if that matters.
    """
    b, c, f, t = x.shape
    w_ih, w_hh, b_ih, b_hh, w_lin, b_lin = (
        params["w_ih"], params["w_hh"], params["b_ih"], params["b_hh"],
        params["w_lin"], params["b_lin"])
    H4, C = w_ih.shape
    H = H4 // 4
    out_ch = w_lin.shape[0]
    assert C == c

    mm_bytes = jnp.dtype(matmul_dtype).itemsize
    align = 16 if mm_bytes == 2 else 8          # sublane tile (packed for bf16)
    Hp = _round_up(H, 128)                      # lane-aligned per-gate hidden
    out_pad = _round_up(out_ch, 128)            # lane-dense output store

    B = b * f
    # Batch-parallel axis (v7x megacore): split only when each block still has
    # >= 256 rows so the serial MXU dot stays well filled (v6e advice).
    if batch_blocks is None:
        batch_blocks = 2 if B >= 512 else 1
    n_bblk = max(1, int(batch_blocks))
    B_pad = _round_up(B, align * n_bblk)
    Bblk = B_pad // n_bblk

    # VMEM budget -> chunk length.  (v7x: 64 MiB/core; v5e/v6e: 128 MiB.)
    cap = _vmem_capacity_bytes()
    vmem_limit = max(32 << 20, min((cap * 3) // 4, cap - (8 << 20)))
    if vmem_budget_bytes is None:
        vmem_budget_bytes = vmem_limit - (4 << 20)
    if chunk is None:
        per_step = Bblk * (4 * Hp * 4            # gx slab (f32)
                           + Hp * mm_bytes       # hs slab
                           + 2 * C * mm_bytes    # x block (double-buffered)
                           + 2 * out_pad * 4)    # out block (double-buffered)
        fixed = (2 * Bblk * Hp * 4               # h, c state
                 + 2 * ((C * 4 * Hp + Hp * 4 * Hp + Hp * out_pad) * mm_bytes
                        + (4 * Hp + out_pad) * 4))
        avail = max(vmem_budget_bytes - fixed, per_step * 8)
        chunk = max(8, (avail // per_step) // 8 * 8)
    Tc = max(8, (min(int(chunk), _round_up(t, 8)) // 8) * 8)
    n_chunks = -(-t // Tc)
    T_pad = n_chunks * Tc
    unroll = min(8, Tc)   # Tc is always a multiple of 8

    # Single wrapper transpose: (b, c, f, t) -> (t, b, f, c) -> (T, B, C),
    # then zero-pad T and B.  Padded time steps run after all valid steps of
    # the last chunk; padded batch rows are independent and sliced off.
    x_seq = jnp.transpose(x, (3, 0, 2, 1)).reshape(t, B, c)
    if T_pad != t or B_pad != B:
        x_seq = jnp.pad(x_seq, ((0, T_pad - t), (0, B_pad - B), (0, 0)))
    x_in = x_seq.astype(matmul_dtype)                                 # (T,B,C)

    # Weights, per-gate padded H -> Hp (padded rows/cols are zero so padded h
    # entries stay exactly 0 and never leak into real gates or the output).
    wih_t = jnp.transpose(_pad_gate_rows(w_ih, H, Hp)).astype(matmul_dtype)
    w_hh_p = jnp.pad(_pad_gate_rows(w_hh, H, Hp), ((0, 0), (0, Hp - H)))
    whh_t = jnp.transpose(w_hh_p).astype(matmul_dtype)                # (Hp,4Hp)
    bias = _pad_gate_vec((b_ih + b_hh).astype(jnp.float32), H, Hp
                         ).reshape(1, 4 * Hp)
    w_lin_p = jnp.pad(w_lin, ((0, out_pad - out_ch), (0, Hp - H)))
    wlin_t = jnp.transpose(w_lin_p).astype(matmul_dtype)              # (Hp,op)
    blin = jnp.pad(b_lin, (0, out_pad - out_ch)).astype(jnp.float32
                                                        ).reshape(1, out_pad)

    kernel = functools.partial(_ch_lstm_t_kernel, tc=Tc, bblk=Bblk, hp=Hp,
                               cc=C, op=out_pad, unroll=unroll)

    grid_spec = pltpu.PrefetchScalarGridSpec(
        num_scalar_prefetch=0,
        grid=(n_bblk, n_chunks),
        in_specs=[
            pl.BlockSpec((Tc, Bblk, C), lambda bi, ci: (ci, bi, 0)),   # x chunk
            pl.BlockSpec((C, 4 * Hp), lambda bi, ci: (0, 0)),          # W_ih^T
            pl.BlockSpec((Hp, 4 * Hp), lambda bi, ci: (0, 0)),         # W_hh^T
            pl.BlockSpec((1, 4 * Hp), lambda bi, ci: (0, 0)),          # bias
            pl.BlockSpec((Hp, out_pad), lambda bi, ci: (0, 0)),        # W_lin^T
            pl.BlockSpec((1, out_pad), lambda bi, ci: (0, 0)),         # b_lin
        ],
        out_specs=pl.BlockSpec((Tc, Bblk, out_pad), lambda bi, ci: (ci, bi, 0)),
        scratch_shapes=[
            pltpu.VMEM((Bblk, Hp), jnp.float32),              # h state
            pltpu.VMEM((Bblk, Hp), jnp.float32),              # c state
            pltpu.VMEM((Tc * Bblk, 4 * Hp), jnp.float32),     # gates_x slab
            pltpu.VMEM((Tc * Bblk, Hp), matmul_dtype),        # hidden slab
        ],
    )

    y_full = pl.pallas_call(
        kernel,
        out_shape=jax.ShapeDtypeStruct((T_pad, B_pad, out_pad), jnp.float32),
        grid_spec=grid_spec,
        compiler_params=pltpu.CompilerParams(
            # batch blocks are independent (megacore on v7x); the recurrence
            # runs sequentially over time chunks.
            dimension_semantics=("parallel", "arbitrary"),
            vmem_limit_bytes=int(vmem_limit)),
    )(x_in, wih_t, whh_t, bias, wlin_t, blin)

    # (T_pad, B_pad, out_pad) -> (t, B, out_ch) -> (b, out_ch, f, t)
    y = y_full[:t, :B, :out_ch].reshape(t, b, f, out_ch)
    return jnp.transpose(y, (1, 3, 2, 0))


# -----------------------------------------------------------------------------
# Pure-JAX reference (lax.scan LSTM) for correctness check
# -----------------------------------------------------------------------------
def ch_lstm_t_ref(x, params):
    b, c, f, t = x.shape
    w_ih, w_hh, b_ih, b_hh, w_lin, b_lin = (
        params["w_ih"], params["w_hh"], params["b_ih"], params["b_hh"],
        params["w_lin"], params["b_lin"])
    H = w_hh.shape[1]
    out_ch = w_lin.shape[0]
    B = b * f
    x_seq = jnp.transpose(x, (3, 0, 2, 1)).reshape(t, B, c).astype(jnp.float32)

    def step(carry, x_t):
        h, cc = carry
        gates = x_t @ w_ih.T + h @ w_hh.T + b_ih + b_hh
        i_g = jax.nn.sigmoid(gates[:, 0 * H:1 * H])
        f_g = jax.nn.sigmoid(gates[:, 1 * H:2 * H])
        g_g = jnp.tanh(gates[:, 2 * H:3 * H])
        o_g = jax.nn.sigmoid(gates[:, 3 * H:4 * H])
        c_new = f_g * cc + i_g * g_g
        h_new = o_g * jnp.tanh(c_new)
        y = h_new @ w_lin.T + b_lin
        return (h_new, c_new), y

    init = (jnp.zeros((B, H), jnp.float32), jnp.zeros((B, H), jnp.float32))
    _, y_seq = jax.lax.scan(step, init, x_seq)
    return jnp.transpose(y_seq.reshape(t, b, f, out_ch), (1, 3, 2, 0))


# -----------------------------------------------------------------------------
# Deterministic parameter init (module shapes; synthetic values)
# -----------------------------------------------------------------------------
def init_params(key, in_ch, feat_ch, out_ch):
    ks = jax.random.split(key, 6)
    s = 0.1
    return {
        "w_ih": s * jax.random.normal(ks[0], (4 * feat_ch, in_ch), jnp.float32),
        "w_hh": s * jax.random.normal(ks[1], (4 * feat_ch, feat_ch), jnp.float32),
        "b_ih": s * jax.random.normal(ks[2], (4 * feat_ch,), jnp.float32),
        "b_hh": s * jax.random.normal(ks[3], (4 * feat_ch,), jnp.float32),
        "w_lin": s * jax.random.normal(ks[4], (out_ch, feat_ch), jnp.float32),
        "b_lin": s * jax.random.normal(ks[5], (out_ch,), jnp.float32),
    }


if __name__ == "__main__":
    # Small shapes consistent with the module: x is (b, in_ch, f, t)
    b, in_ch, f, t = 2, 4, 16, 16
    feat_ch, out_ch = 32, 4

    key = jax.random.PRNGKey(0)
    k_x, k_p = jax.random.split(key)
    x = jax.random.normal(k_x, (b, in_ch, f, t), jnp.float32)
    params = init_params(k_p, in_ch, feat_ch, out_ch)

    y_ref = jax.block_until_ready(ch_lstm_t_ref(x, params))

    # 1) f32 MXU path, chunk=8 -> 2 time chunks, exercises the h/c carry.
    y = jax.block_until_ready(
        ch_lstm_t_pallas(x, params, matmul_dtype=jnp.float32, chunk=8))
    assert y.shape == (b, out_ch, f, t)
    assert jnp.allclose(y, y_ref, atol=1e-4, rtol=1e-4), (
        f"f32 max abs err {jnp.max(jnp.abs(y - y_ref))}")

    # 2) f32 path with an explicit batch-parallel split (v7x-style 2 blocks).
    y2 = jax.block_until_ready(
        ch_lstm_t_pallas(x, params, matmul_dtype=jnp.float32, batch_blocks=2))
    assert jnp.allclose(y2, y_ref, atol=1e-4, rtol=1e-4), (
        f"f32/2-block max abs err {jnp.max(jnp.abs(y2 - y_ref))}")

    # 3) Default bf16 MXU operands (fast path); looser tolerance due to
    #    recurrent bf16 rounding of h each step.
    y_bf = jax.block_until_ready(ch_lstm_t_pallas(x, params))
    assert jnp.allclose(y_bf, y_ref, atol=5e-2, rtol=5e-2), (
        f"bf16 max abs err {jnp.max(jnp.abs(y_bf - y_ref))}")

    print("KERNEL_OK")
</pallas_src>

<mosaic_0001>
module attributes {stable_mosaic.version = 11 : i64} {
  func.func @_ch_lstm_t_kernel(%arg0: i32, %arg1: i32, %arg2: memref<8x32x4xf32, #tpu.memory_space<vmem>>, %arg3: memref<4x512xf32, #tpu.memory_space<vmem>>, %arg4: memref<128x512xf32, #tpu.memory_space<vmem>>, %arg5: memref<1x512xf32, #tpu.memory_space<vmem>>, %arg6: memref<128x128xf32, #tpu.memory_space<vmem>>, %arg7: memref<1x128xf32, #tpu.memory_space<vmem>>, %arg8: memref<8x32x128xf32, #tpu.memory_space<vmem>>, %arg9: memref<32x128xf32, #tpu.memory_space<vmem>>, %arg10: memref<32x128xf32, #tpu.memory_space<vmem>>, %arg11: memref<256x512xf32, #tpu.memory_space<vmem>>, %arg12: memref<256x128xf32, #tpu.memory_space<vmem>>) attributes {dimension_semantics = [#tpu.dimension_semantics<parallel>, #tpu.dimension_semantics<arbitrary>], iteration_bounds = array<i64: 1, 2>, scalar_prefetch = 0 : i64, scratch_operands = 4 : i64, tpu.core_type = #tpu.core_type<tc>, window_params = [{transform_indices = @transform_0, window_bounds = array<i64: 8, 32, 4>}, {pipeline_mode = #tpu.pipeline_mode<synchronous>, transform_indices = @transform_1, window_bounds = array<i64: 4, 512>}, {pipeline_mode = #tpu.pipeline_mode<synchronous>, transform_indices = @transform_2, window_bounds = array<i64: 128, 512>}, {pipeline_mode = #tpu.pipeline_mode<synchronous>, transform_indices = @transform_3, window_bounds = array<i64: 1, 512>}, {pipeline_mode = #tpu.pipeline_mode<synchronous>, transform_indices = @transform_4, window_bounds = array<i64: 128, 128>}, {pipeline_mode = #tpu.pipeline_mode<synchronous>, transform_indices = @transform_5, window_bounds = array<i64: 1, 128>}, {transform_indices = @transform_6, window_bounds = array<i64: 8, 32, 128>}]} {
    %c0_i32 = arith.constant 0 : i32
    %0 = arith.cmpi eq, %arg1, %c0_i32 : i32
    %1 = arith.extui %0 : i1 to i32
    %c0_i32_0 = arith.constant 0 : i32
    %2 = arith.cmpi ne, %1, %c0_i32_0 : i32
    scf.if %2 {
      %cst_203 = arith.constant 0.000000e+00 : f32
      %371 = vector.broadcast %cst_203 : f32 to vector<32x128xf32>
      %c0_204 = arith.constant 0 : index
      %c0_205 = arith.constant 0 : index
      %372 = vector.load %arg9[%c0_204, %c0_205] : memref<32x128xf32, #tpu.memory_space<vmem>>, vector<32x128xf32>
      tpu.vector_store %arg9[%c0_204, %c0_205], %371 {strides = array<i32>} : memref<32x128xf32, #tpu.memory_space<vmem>>, vector<32x128xf32>,
      %cst_206 = arith.constant 0.000000e+00 : f32
      %373 = vector.broadcast %cst_206 : f32 to vector<32x128xf32>
      %c0_207 = arith.constant 0 : index
      %c0_208 = arith.constant 0 : index
      %374 = vector.load %arg10[%c0_207, %c0_208] : memref<32x128xf32, #tpu.memory_space<vmem>>, vector<32x128xf32>
      tpu.vector_store %arg10[%c0_207, %c0_208], %373 {strides = array<i32>} : memref<32x128xf32, #tpu.memory_space<vmem>>, vector<32x128xf32>,
    } else {
    }
    %c0 = arith.constant 0 : index
    %c0_1 = arith.constant 0 : index
    %c0_2 = arith.constant 0 : index
    %3 = vector.load %arg2[%c0, %c0_1, %c0_2] : memref<8x32x4xf32, #tpu.memory_space<vmem>>, vector<8x32x4xf32>
    %4 = vector.shape_cast %3 : vector<8x32x4xf32> to vector<256x4xf32>
    %c0_3 = arith.constant 0 : index
    %c0_4 = arith.constant 0 : index
    %5 = vector.load %arg3[%c0_3, %c0_4] : memref<4x512xf32, #tpu.memory_space<vmem>>, vector<4x512xf32>
    %cst = arith.constant dense<0.000000e+00> : vector<256x512xf32>
    %6 = tpu.matmul %4, %5, %cst {dimension_numbers = #tpu.dot_dimension_numbers<[1], [0], [0], [1], [0, 0, 1, 1], [], []>} : vector<256x4xf32>, vector<4x512xf32>, vector<256x512xf32> -> vector<256x512xf32>
    %c0_5 = arith.constant 0 : index
    %c0_6 = arith.constant 0 : index
    %7 = vector.load %arg5[%c0_5, %c0_6] : memref<1x512xf32, #tpu.memory_space<vmem>>, vector<1x512xf32>
    %8 = vector.broadcast %7 : vector<1x512xf32> to vector<256x512xf32>
    %9 = arith.addf %6, %8 : vector<256x512xf32>
    %c0_7 = arith.constant 0 : index
    %c0_8 = arith.constant 0 : index
    %10 = vector.load %arg11[%c0_7, %c0_8] : memref<256x512xf32, #tpu.memory_space<vmem>>, vector<256x512xf32>
    tpu.vector_store %arg11[%c0_7, %c0_8], %9 {strides = array<i32>} : memref<256x512xf32, #tpu.memory_space<vmem>>, vector<256x512xf32>,
    %c0_i32_9 = arith.constant 0 : i32
    %c32_i32 = arith.constant 32 : i32
    %11 = arith.muli %c0_i32_9, %c32_i32 : i32
    %12 = tpu.assume_multiple %11, 32 : i32
    %13 = arith.index_cast %12 : i32 to index
    %c0_10 = arith.constant 0 : index
    %14 = vector.load %arg11[%13, %c0_10] : memref<256x512xf32, #tpu.memory_space<vmem>>, vector<32x512xf32>
    %c0_11 = arith.constant 0 : index
    %c0_12 = arith.constant 0 : index
    %15 = vector.load %arg9[%c0_11, %c0_12] : memref<32x128xf32, #tpu.memory_space<vmem>>, vector<32x128xf32>
    %c0_13 = arith.constant 0 : index
    %c0_14 = arith.constant 0 : index
    %16 = vector.load %arg4[%c0_13, %c0_14] : memref<128x512xf32, #tpu.memory_space<vmem>>, vector<128x512xf32>
    %cst_15 = arith.constant dense<0.000000e+00> : vector<32x512xf32>
    %17 = tpu.matmul %15, %16, %cst_15 {dimension_numbers = #tpu.dot_dimension_numbers<[1], [0], [0], [1], [0, 0, 1, 1], [], []>} : vector<32x128xf32>, vector<128x512xf32>, vector<32x512xf32> -> vector<32x512xf32>
    %18 = arith.addf %14, %17 : vector<32x512xf32>
    %19 = vector.extract_strided_slice %18 {offsets = [0, 0], sizes = [32, 128], strides = [1, 1]} : vector<32x512xf32> to vector<32x128xf32>
    %cst_16 = arith.constant 5.000000e-01 : f32
    %20 = vector.broadcast %cst_16 : f32 to vector<32x128xf32>
    %21 = arith.mulf %20, %19 : vector<32x128xf32>
    %22 = math.tanh %21 : vector<32x128xf32>
    %cst_17 = arith.constant 5.000000e-01 : f32
    %23 = vector.broadcast %cst_17 : f32 to vector<32x128xf32>
    %24 = arith.mulf %23, %22 : vector<32x128xf32>
    %cst_18 = arith.constant 5.000000e-01 : f32
    %25 = vector.broadcast %cst_18 : f32 to vector<32x128xf32>
    %26 = arith.addf %24, %25 : vector<32x128xf32>
    %27 = vector.extract_strided_slice %18 {offsets = [0, 128], sizes = [32, 128], strides = [1, 1]} : vector<32x512xf32> to vector<32x128xf32>
    %cst_19 = arith.constant 5.000000e-01 : f32
    %28 = vector.broadcast %cst_19 : f32 to vector<32x128xf32>
    %29 = arith.mulf %28, %27 : vector<32x128xf32>
    %30 = math.tanh %29 : vector<32x128xf32>
    %cst_20 = arith.constant 5.000000e-01 : f32
    %31 = vector.broadcast %cst_20 : f32 to vector<32x128xf32>
    %32 = arith.mulf %31, %30 : vector<32x128xf32>
    %cst_21 = arith.constant 5.000000e-01 : f32
    %33 = vector.broadcast %cst_21 : f32 to vector<32x128xf32>
    %34 = arith.addf %32, %33 : vector<32x128xf32>
    %35 = vector.extract_strided_slice %18 {offsets = [0, 256], sizes = [32, 128], strides = [1, 1]} : vector<32x512xf32> to vector<32x128xf32>
    %36 = math.tanh %35 : vector<32x128xf32>
    %37 = vector.extract_strided_slice %18 {offsets = [0, 384], sizes = [32, 128], strides = [1, 1]} : vector<32x512xf32> to vector<32x128xf32>
    %cst_22 = arith.constant 5.000000e-01 : f32
    %38 = vector.broadcast %cst_22 : f32 to vector<32x128xf32>
    %39 = arith.mulf %38, %37 : vector<32x128xf32>
    %40 = math.tanh %39 : vector<32x128xf32>
    %cst_23 = arith.constant 5.000000e-01 : f32
    %41 = vector.broadcast %cst_23 : f32 to vector<32x128xf32>
    %42 = arith.mulf %41, %40 : vector<32x128xf32>
    %cst_24 = arith.constant 5.000000e-01 : f32
    %43 = vector.broadcast %cst_24 : f32 to vector<32x128xf32>
    %44 = arith.addf %42, %43 : vector<32x128xf32>
    %c0_25 = arith.constant 0 : index
    %c0_26 = arith.constant 0 : index
    %45 = vector.load %arg10[%c0_25, %c0_26] : memref<32x128xf32, #tpu.memory_space<vmem>>, vector<32x128xf32>
    %46 = arith.mulf %34, %45 : vector<32x128xf32>
    %47 = arith.mulf %26, %36 : vector<32x128xf32>
    %48 = arith.addf %46, %47 : vector<32x128xf32>
    %49 = math.tanh %48 : vector<32x128xf32>
    %50 = arith.mulf %44, %49 : vector<32x128xf32>
    %c0_27 = arith.constant 0 : index
    %c0_28 = arith.constant 0 : index
    %51 = vector.load %arg10[%c0_27, %c0_28] : memref<32x128xf32, #tpu.memory_space<vmem>>, vector<32x128xf32>
    tpu.vector_store %arg10[%c0_27, %c0_28], %48 {strides = array<i32>} : memref<32x128xf32, #tpu.memory_space<vmem>>, vector<32x128xf32>,
    %c0_29 = arith.constant 0 : index
    %c0_30 = arith.constant 0 : index
    %52 = vector.load %arg9[%c0_29, %c0_30] : memref<32x128xf32, #tpu.memory_space<vmem>>, vector<32x128xf32>
    tpu.vector_store %arg9[%c0_29, %c0_30], %50 {strides = array<i32>} : memref<32x128xf32, #tpu.memory_space<vmem>>, vector<32x128xf32>,
    %53 = arith.index_cast %12 : i32 to index
    %c0_31 = arith.constant 0 : index
    %54 = vector.load %arg12[%53, %c0_31] : memref<256x128xf32, #tpu.memory_space<vmem>>, vector<32x128xf32>
    tpu.vector_store %arg12[%53, %c0_31], %50 {strides = array<i32>} : memref<256x128xf32, #tpu.memory_space<vmem>>, vector<32x128xf32>,
    %c1_i32 = arith.constant 1 : i32
    %c32_i32_32 = arith.constant 32 : i32
    %55 = arith.muli %c1_i32, %c32_i32_32 : i32
    %56 = tpu.assume_multiple %55, 32 : i32
    %57 = arith.index_cast %56 : i32 to index
    %c0_33 = arith.constant 0 : index
    %58 = vector.load %arg11[%57, %c0_33] : memref<256x512xf32, #tpu.memory_space<vmem>>, vector<32x512xf32>
    %c0_34 = arith.constant 0 : index
    %c0_35 = arith.constant 0 : index
    %59 = vector.load %arg9[%c0_34, %c0_35] : memref<32x128xf32, #tpu.memory_space<vmem>>, vector<32x128xf32>
    %c0_36 = arith.constant 0 : index
    %c0_37 = arith.constant 0 : index
    %60 = vector.load %arg4[%c0_36, %c0_37] : memref<128x512xf32, #tpu.memory_space<vmem>>, vector<128x512xf32>
    %cst_38 = arith.constant dense<0.000000e+00> : vector<32x512xf32>
    %61 = tpu.matmul %59, %60, %cst_38 {dimension_numbers = #tpu.dot_dimension_numbers<[1], [0], [0], [1], [0, 0, 1, 1], [], []>} : vector<32x128xf32>, vector<128x512xf32>, vector<32x512xf32> -> vector<32x512xf32>
    %62 = arith.addf %58, %61 : vector<32x512xf32>
    %63 = vector.extract_strided_slice %62 {offsets = [0, 0], sizes = [32, 128], strides = [1, 1]} : vector<32x512xf32> to vector<32x128xf32>
    %cst_39 = arith.constant 5.000000e-01 : f32
    %64 = vector.broadcast %cst_39 : f32 to vector<32x128xf32>
    %65 = arith.mulf %64, %63 : vector<32x128xf32>
    %66 = math.tanh %65 : vector<32x128xf32>
    %cst_40 = arith.constant 5.000000e-01 : f32
    %67 = vector.broadcast %cst_40 : f32 to vector<32x128xf32>
    %68 = arith.mulf %67, %66 : vector<32x128xf32>
    %cst_41 = arith.constant 5.000000e-01 : f32
    %69 = vector.broadcast %cst_41 : f32 to vector<32x128xf32>
    %70 = arith.addf %68, %69 : vector<32x128xf32>
    %71 = vector.extract_strided_slice %62 {offsets = [0, 128], sizes = [32, 128], strides = [1, 1]} : vector<32x512xf32> to vector<32x128xf32>
    %cst_42 = arith.constant 5.000000e-01 : f32
    %72 = vector.broadcast %cst_42 : f32 to vector<32x128xf32>
    %73 = arith.mulf %72, %71 : vector<32x128xf32>
    %74 = math.tanh %73 : vector<32x128xf32>
    %cst_43 = arith.constant 5.000000e-01 : f32
    %75 = vector.broadcast %cst_43 : f32 to vector<32x128xf32>
    %76 = arith.mulf %75, %74 : vector<32x128xf32>
    %cst_44 = arith.constant 5.000000e-01 : f32
    %77 = vector.broadcast %cst_44 : f32 to vector<32x128xf32>
    %78 = arith.addf %76, %77 : vector<32x128xf32>
    %79 = vector.extract_strided_slice %62 {offsets = [0, 256], sizes = [32, 128], strides = [1, 1]} : vector<32x512xf32> to vector<32x128xf32>
    %80 = math.tanh %79 : vector<32x128xf32>
    %81 = vector.extract_strided_slice %62 {offsets = [0, 384], sizes = [32, 128], strides = [1, 1]} : vector<32x512xf32> to vector<32x128xf32>
    %cst_45 = arith.constant 5.000000e-01 : f32
    %82 = vector.broadcast %cst_45 : f32 to vector<32x128xf32>
    %83 = arith.mulf %82, %81 : vector<32x128xf32>
    %84 = math.tanh %83 : vector<32x128xf32>
    %cst_46 = arith.constant 5.000000e-01 : f32
    %85 = vector.broadcast %cst_46 : f32 to vector<32x128xf32>
    %86 = arith.mulf %85, %84 : vector<32x128xf32>
    %cst_47 = arith.constant 5.000000e-01 : f32
    %87 = vector.broadcast %cst_47 : f32 to vector<32x128xf32>
    %88 = arith.addf %86, %87 : vector<32x128xf32>
    %c0_48 = arith.constant 0 : index
    %c0_49 = arith.constant 0 : index
    %89 = vector.load %arg10[%c0_48, %c0_49] : memref<32x128xf32, #tpu.memory_space<vmem>>, vector<32x128xf32>
    %90 = arith.mulf %78, %89 : vector<32x128xf32>
    %91 = arith.mulf %70, %80 : vector<32x128xf32>
    %92 = arith.addf %90, %91 : vector<32x128xf32>
    %93 = math.tanh %92 : vector<32x128xf32>
    %94 = arith.mulf %88, %93 : vector<32x128xf32>
    %c0_50 = arith.constant 0 : index
    %c0_51 = arith.constant 0 : index
    %95 = vector.load %arg10[%c0_50, %c0_51] : memref<32x128xf32, #tpu.memory_space<vmem>>, vector<32x128xf32>
    tpu.vector_store %arg10[%c0_50, %c0_51], %92 {strides = array<i32>} : memref<32x128xf32, #tpu.memory_space<vmem>>, vector<32x128xf32>,
    %c0_52 = arith.constant 0 : index
    %c0_53 = arith.constant 0 : index
    %96 = vector.load %arg9[%c0_52, %c0_53] : memref<32x128xf32, #tpu.memory_space<vmem>>, vector<32x128xf32>
    tpu.vector_store %arg9[%c0_52, %c0_53], %94 {strides = array<i32>} : memref<32x128xf32, #tpu.memory_space<vmem>>, vector<32x128xf32>,
    %97 = arith.index_cast %56 : i32 to index
    %c0_54 = arith.constant 0 : index
    %98 = vector.load %arg12[%97, %c0_54] : memref<256x128xf32, #tpu.memory_space<vmem>>, vector<32x128xf32>
    tpu.vector_store %arg12[%97, %c0_54], %94 {strides = array<i32>} : memref<256x128xf32, #tpu.memory_space<vmem>>, vector<32x128xf32>,
    %c2_i32 = arith.constant 2 : i32
    %c32_i32_55 = arith.constant 32 : i32
    %99 = arith.muli %c2_i32, %c32_i32_55 : i32
    %100 = tpu.assume_multiple %99, 32 : i32
    %101 = arith.index_cast %100 : i32 to index
    %c0_56 = arith.constant 0 : index
    %102 = vector.load %arg11[%101, %c0_56] : memref<256x512xf32, #tpu.memory_space<vmem>>, vector<32x512xf32>
    %c0_57 = arith.constant 0 : index
    %c0_58 = arith.constant 0 : index
    %103 = vector.load %arg9[%c0_57, %c0_58] : memref<32x128xf32, #tpu.memory_space<vmem>>, vector<32x128xf32>
    %c0_59 = arith.constant 0 : index
    %c0_60 = arith.constant 0 : index
    %104 = vector.load %arg4[%c0_59, %c0_60] : memref<128x512xf32, #tpu.memory_space<vmem>>, vector<128x512xf32>
    %cst_61 = arith.constant dense<0.000000e+00> : vector<32x512xf32>
    %105 = tpu.matmul %103, %104, %cst_61 {dimension_numbers = #tpu.dot_dimension_numbers<[1], [0], [0], [1], [0, 0, 1, 1], [], []>} : vector<32x128xf32>, vector<128x512xf32>, vector<32x512xf32> -> vector<32x512xf32>
    %106 = arith.addf %102, %105 : vector<32x512xf32>
    %107 = vector.extract_strided_slice %106 {offsets = [0, 0], sizes = [32, 128], strides = [1, 1]} : vector<32x512xf32> to vector<32x128xf32>
    %cst_62 = arith.constant 5.000000e-01 : f32
    %108 = vector.broadcast %cst_62 : f32 to vector<32x128xf32>
    %109 = arith.mulf %108, %107 : vector<32x128xf32>
    %110 = math.tanh %109 : vector<32x128xf32>
    %cst_63 = arith.constant 5.000000e-01 : f32
    %111 = vector.broadcast %cst_63 : f32 to vector<32x128xf32>
    %112 = arith.mulf %111, %110 : vector<32x128xf32>
    %cst_64 = arith.constant 5.000000e-01 : f32
    %113 = vector.broadcast %cst_64 : f32 to vector<32x128xf32>
    %114 = arith.addf %112, %113 : vector<32x128xf32>
    %115 = vector.extract_strided_slice %106 {offsets = [0, 128], sizes = [32, 128], strides = [1, 1]} : vector<32x512xf32> to vector<32x128xf32>
    %cst_65 = arith.constant 5.000000e-01 : f32
    %116 = vector.broadcast %cst_65 : f32 to vector<32x128xf32>
    %117 = arith.mulf %116, %115 : vector<32x128xf32>
    %118 = math.tanh %117 : vector<32x128xf32>
    %cst_66 = arith.constant 5.000000e-01 : f32
    %119 = vector.broadcast %cst_66 : f32 to vector<32x128xf32>
    %120 = arith.mulf %119, %118 : vector<32x128xf32>
    %cst_67 = arith.constant 5.000000e-01 : f32
    %121 = vector.broadcast %cst_67 : f32 to vector<32x128xf32>
    %122 = arith.addf %120, %121 : vector<32x128xf32>
    %123 = vector.extract_strided_slice %106 {offsets = [0, 256], sizes = [32, 128], strides = [1, 1]} : vector<32x512xf32> to vector<32x128xf32>
    %124 = math.tanh %123 : vector<32x128xf32>
    %125 = vector.extract_strided_slice %106 {offsets = [0, 384], sizes = [32, 128], strides = [1, 1]} : vector<32x512xf32> to vector<32x128xf32>
    %cst_68 = arith.constant 5.000000e-01 : f32
    %126 = vector.broadcast %cst_68 : f32 to vector<32x128xf32>
    %127 = arith.mulf %126, %125 : vector<32x128xf32>
    %128 = math.tanh %127 : vector<32x128xf32>
    %cst_69 = arith.constant 5.000000e-01 : f32
    %129 = vector.broadcast %cst_69 : f32 to vector<32x128xf32>
    %130 = arith.mulf %129, %128 : vector<32x128xf32>
    %cst_70 = arith.constant 5.000000e-01 : f32
    %131 = vector.broadcast %cst_70 : f32 to vector<32x128xf32>
    %132 = arith.addf %130, %131 : vector<32x128xf32>
    %c0_71 = arith.constant 0 : index
    %c0_72 = arith.constant 0 : index
    %133 = vector.load %arg10[%c0_71, %c0_72] : memref<32x128xf32, #tpu.memory_space<vmem>>, vector<32x128xf32>
    %134 = arith.mulf %122, %133 : vector<32x128xf32>
    %135 = arith.mulf %114, %124 : vector<32x128xf32>
    %136 = arith.addf %134, %135 : vector<32x128xf32>
    %137 = math.tanh %136 : vector<32x128xf32>
    %138 = arith.mulf %132, %137 : vector<32x128xf32>
    %c0_73 = arith.constant 0 : index
    %c0_74 = arith.constant 0 : index
    %139 = vector.load %arg10[%c0_73, %c0_74] : memref<32x128xf32, #tpu.memory_space<vmem>>, vector<32x128xf32>
    tpu.vector_store %arg10[%c0_73, %c0_74], %136 {strides = array<i32>} : memref<32x128xf32, #tpu.memory_space<vmem>>, vector<32x128xf32>,
    %c0_75 = arith.constant 0 : index
    %c0_76 = arith.constant 0 : index
    %140 = vector.load %arg9[%c0_75, %c0_76] : memref<32x128xf32, #tpu.memory_space<vmem>>, vector<32x128xf32>
    tpu.vector_store %arg9[%c0_75, %c0_76], %138 {strides = array<i32>} : memref<32x128xf32, #tpu.memory_space<vmem>>, vector<32x128xf32>,
    %141 = arith.index_cast %100 : i32 to index
    %c0_77 = arith.constant 0 : index
    %142 = vector.load %arg12[%141, %c0_77] : memref<256x128xf32, #tpu.memory_space<vmem>>, vector<32x128xf32>
    tpu.vector_store %arg12[%141, %c0_77], %138 {strides = array<i32>} : memref<256x128xf32, #tpu.memory_space<vmem>>, vector<32x128xf32>,
    %c3_i32 = arith.constant 3 : i32
    %c32_i32_78 = arith.constant 32 : i32
    %143 = arith.muli %c3_i32, %c32_i32_78 : i32
    %144 = tpu.assume_multiple %143, 32 : i32
    %145 = arith.index_cast %144 : i32 to index
    %c0_79 = arith.constant 0 : index
    %146 = vector.load %arg11[%145, %c0_79] : memref<256x512xf32, #tpu.memory_space<vmem>>, vector<32x512xf32>
    %c0_80 = arith.constant 0 : index
    %c0_81 = arith.constant 0 : index
    %147 = vector.load %arg9[%c0_80, %c0_81] : memref<32x128xf32, #tpu.memory_space<vmem>>, vector<32x128xf32>
    %c0_82 = arith.constant 0 : index
    %c0_83 = arith.constant 0 : index
    %148 = vector.load %arg4[%c0_82, %c0_83] : memref<128x512xf32, #tpu.memory_space<vmem>>, vector<128x512xf32>
    %cst_84 = arith.constant dense<0.000000e+00> : vector<32x512xf32>
    %149 = tpu.matmul %147, %148, %cst_84 {dimension_numbers = #tpu.dot_dimension_numbers<[1], [0], [0], [1], [0, 0, 1, 1], [], []>} : vector<32x128xf32>, vector<128x512xf32>, vector<32x512xf32> -> vector<32x512xf32>
    %150 = arith.addf %146, %149 : vector<32x512xf32>
    %151 = vector.extract_strided_slice %150 {offsets = [0, 0], sizes = [32, 128], strides = [1, 1]} : vector<32x512xf32> to vector<32x128xf32>
    %cst_85 = arith.constant 5.000000e-01 : f32
    %152 = vector.broadcast %cst_85 : f32 to vector<32x128xf32>
    %153 = arith.mulf %152, %151 : vector<32x128xf32>
    %154 = math.tanh %153 : vector<32x128xf32>
    %cst_86 = arith.constant 5.000000e-01 : f32
    %155 = vector.broadcast %cst_86 : f32 to vector<32x128xf32>
    %156 = arith.mulf %155, %154 : vector<32x128xf32>
    %cst_87 = arith.constant 5.000000e-01 : f32
    %157 = vector.broadcast %cst_87 : f32 to vector<32x128xf32>
    %158 = arith.addf %156, %157 : vector<32x128xf32>
    %159 = vector.extract_strided_slice %150 {offsets = [0, 128], sizes = [32, 128], strides = [1, 1]} : vector<32x512xf32> to vector<32x128xf32>
    %cst_88 = arith.constant 5.000000e-01 : f32
    %160 = vector.broadcast %cst_88 : f32 to vector<32x128xf32>
    %161 = arith.mulf %160, %159 : vector<32x128xf32>
    %162 = math.tanh %161 : vector<32x128xf32>
    %cst_89 = arith.constant 5.000000e-01 : f32
    %163 = vector.broadcast %cst_89 : f32 to vector<32x128xf32>
    %164 = arith.mulf %163, %162 : vector<32x128xf32>
    %cst_90 = arith.constant 5.000000e-01 : f32
    %165 = vector.broadcast %cst_90 : f32 to vector<32x128xf32>
    %166 = arith.addf %164, %165 : vector<32x128xf32>
    %167 = vector.extract_strided_slice %150 {offsets = [0, 256], sizes = [32, 128], strides = [1, 1]} : vector<32x512xf32> to vector<32x128xf32>
    %168 = math.tanh %167 : vector<32x128xf32>
    %169 = vector.extract_strided_slice %150 {offsets = [0, 384], sizes = [32, 128], strides = [1, 1]} : vector<32x512xf32> to vector<32x128xf32>
    %cst_91 = arith.constant 5.000000e-01 : f32
    %170 = vector.broadcast %cst_91 : f32 to vector<32x128xf32>
    %171 = arith.mulf %170, %169 : vector<32x128xf32>
    %172 = math.tanh %171 : vector<32x128xf32>
    %cst_92 = arith.constant 5.000000e-01 : f32
    %173 = vector.broadcast %cst_92 : f32 to vector<32x128xf32>
    %174 = arith.mulf %173, %172 : vector<32x128xf32>
    %cst_93 = arith.constant 5.000000e-01 : f32
    %175 = vector.broadcast %cst_93 : f32 to vector<32x128xf32>
    %176 = arith.addf %174, %175 : vector<32x128xf32>
    %c0_94 = arith.constant 0 : index
    %c0_95 = arith.constant 0 : index
    %177 = vector.load %arg10[%c0_94, %c0_95] : memref<32x128xf32, #tpu.memory_space<vmem>>, vector<32x128xf32>
    %178 = arith.mulf %166, %177 : vector<32x128xf32>
    %179 = arith.mulf %158, %168 : vector<32x128xf32>
    %180 = arith.addf %178, %179 : vector<32x128xf32>
    %181 = math.tanh %180 : vector<32x128xf32>
    %182 = arith.mulf %176, %181 : vector<32x128xf32>
    %c0_96 = arith.constant 0 : index
    %c0_97 = arith.constant 0 : index
    %183 = vector.load %arg10[%c0_96, %c0_97] : memref<32x128xf32, #tpu.memory_space<vmem>>, vector<32x128xf32>
    tpu.vector_store %arg10[%c0_96, %c0_97], %180 {strides = array<i32>} : memref<32x128xf32, #tpu.memory_space<vmem>>, vector<32x128xf32>,
    %c0_98 = arith.constant 0 : index
    %c0_99 = arith.constant 0 : index
    %184 = vector.load %arg9[%c0_98, %c0_99] : memref<32x128xf32, #tpu.memory_space<vmem>>, vector<32x128xf32>
    tpu.vector_store %arg9[%c0_98, %c0_99], %182 {strides = array<i32>} : memref<32x128xf32, #tpu.memory_space<vmem>>, vector<32x128xf32>,
    %185 = arith.index_cast %144 : i32 to index
    %c0_100 = arith.constant 0 : index
    %186 = vector.load %arg12[%185, %c0_100] : memref<256x128xf32, #tpu.memory_space<vmem>>, vector<32x128xf32>
    tpu.vector_store %arg12[%185, %c0_100], %182 {strides = array<i32>} : memref<256x128xf32, #tpu.memory_space<vmem>>, vector<32x128xf32>,
    %c4_i32 = arith.constant 4 : i32
    %c32_i32_101 = arith.constant 32 : i32
    %187 = arith.muli %c4_i32, %c32_i32_101 : i32
    %188 = tpu.assume_multiple %187, 32 : i32
    %189 = arith.index_cast %188 : i32 to index
    %c0_102 = arith.constant 0 : index
    %190 = vector.load %arg11[%189, %c0_102] : memref<256x512xf32, #tpu.memory_space<vmem>>, vector<32x512xf32>
    %c0_103 = arith.constant 0 : index
    %c0_104 = arith.constant 0 : index
    %191 = vector.load %arg9[%c0_103, %c0_104] : memref<32x128xf32, #tpu.memory_space<vmem>>, vector<32x128xf32>
    %c0_105 = arith.constant 0 : index
    %c0_106 = arith.constant 0 : index
    %192 = vector.load %arg4[%c0_105, %c0_106] : memref<128x512xf32, #tpu.memory_space<vmem>>, vector<128x512xf32>
    %cst_107 = arith.constant dense<0.000000e+00> : vector<32x512xf32>
    %193 = tpu.matmul %191, %192, %cst_107 {dimension_numbers = #tpu.dot_dimension_numbers<[1], [0], [0], [1], [0, 0, 1, 1], [], []>} : vector<32x128xf32>, vector<128x512xf32>, vector<32x512xf32> -> vector<32x512xf32>
    %194 = arith.addf %190, %193 : vector<32x512xf32>
    %195 = vector.extract_strided_slice %194 {offsets = [0, 0], sizes = [32, 128], strides = [1, 1]} : vector<32x512xf32> to vector<32x128xf32>
    %cst_108 = arith.constant 5.000000e-01 : f32
    %196 = vector.broadcast %cst_108 : f32 to vector<32x128xf32>
    %197 = arith.mulf %196, %195 : vector<32x128xf32>
    %198 = math.tanh %197 : vector<32x128xf32>
    %cst_109 = arith.constant 5.000000e-01 : f32
    %199 = vector.broadcast %cst_109 : f32 to vector<32x128xf32>
    %200 = arith.mulf %199, %198 : vector<32x128xf32>
    %cst_110 = arith.constant 5.000000e-01 : f32
    %201 = vector.broadcast %cst_110 : f32 to vector<32x128xf32>
    %202 = arith.addf %200, %201 : vector<32x128xf32>
    %203 = vector.extract_strided_slice %194 {offsets = [0, 128], sizes = [32, 128], strides = [1, 1]} : vector<32x512xf32> to vector<32x128xf32>
    %cst_111 = arith.constant 5.000000e-01 : f32
    %204 = vector.broadcast %cst_111 : f32 to vector<32x128xf32>
    %205 = arith.mulf %204, %203 : vector<32x128xf32>
    %206 = math.tanh %205 : vector<32x128xf32>
    %cst_112 = arith.constant 5.000000e-01 : f32
    %207 = vector.broadcast %cst_112 : f32 to vector<32x128xf32>
    %208 = arith.mulf %207, %206 : vector<32x128xf32>
    %cst_113 = arith.constant 5.000000e-01 : f32
    %209 = vector.broadcast %cst_113 : f32 to vector<32x128xf32>
    %210 = arith.addf %208, %209 : vector<32x128xf32>
    %211 = vector.extract_strided_slice %194 {offsets = [0, 256], sizes = [32, 128], strides = [1, 1]} : vector<32x512xf32> to vector<32x128xf32>
    %212 = math.tanh %211 : vector<32x128xf32>
    %213 = vector.extract_strided_slice %194 {offsets = [0, 384], sizes = [32, 128], strides = [1, 1]} : vector<32x512xf32> to vector<32x128xf32>
    %cst_114 = arith.constant 5.000000e-01 : f32
    %214 = vector.broadcast %cst_114 : f32 to vector<32x128xf32>
    %215 = arith.mulf %214, %213 : vector<32x128xf32>
    %216 = math.tanh %215 : vector<32x128xf32>
    %cst_115 = arith.constant 5.000000e-01 : f32
    %217 = vector.broadcast %cst_115 : f32 to vector<32x128xf32>
    %218 = arith.mulf %217, %216 : vector<32x128xf32>
    %cst_116 = arith.constant 5.000000e-01 : f32
    %219 = vector.broadcast %cst_116 : f32 to vector<32x128xf32>
    %220 = arith.addf %218, %219 : vector<32x128xf32>
    %c0_117 = arith.constant 0 : index
    %c0_118 = arith.constant 0 : index
    %221 = vector.load %arg10[%c0_117, %c0_118] : memref<32x128xf32, #tpu.memory_space<vmem>>, vector<32x128xf32>
    %222 = arith.mulf %210, %221 : vector<32x128xf32>
    %223 = arith.mulf %202, %212 : vector<32x128xf32>
    %224 = arith.addf %222, %223 : vector<32x128xf32>
    %225 = math.tanh %224 : vector<32x128xf32>
    %226 = arith.mulf %220, %225 : vector<32x128xf32>
    %c0_119 = arith.constant 0 : index
    %c0_120 = arith.constant 0 : index
    %227 = vector.load %arg10[%c0_119, %c0_120] : memref<32x128xf32, #tpu.memory_space<vmem>>, vector<32x128xf32>
    tpu.vector_store %arg10[%c0_119, %c0_120], %224 {strides = array<i32>} : memref<32x128xf32, #tpu.memory_space<vmem>>, vector<32x128xf32>,
    %c0_121 = arith.constant 0 : index
    %c0_122 = arith.constant 0 : index
    %228 = vector.load %arg9[%c0_121, %c0_122] : memref<32x128xf32, #tpu.memory_space<vmem>>, vector<32x128xf32>
    tpu.vector_store %arg9[%c0_121, %c0_122], %226 {strides = array<i32>} : memref<32x128xf32, #tpu.memory_space<vmem>>, vector<32x128xf32>,
    %229 = arith.index_cast %188 : i32 to index
    %c0_123 = arith.constant 0 : index
    %230 = vector.load %arg12[%229, %c0_123] : memref<256x128xf32, #tpu.memory_space<vmem>>, vector<32x128xf32>
    tpu.vector_store %arg12[%229, %c0_123], %226 {strides = array<i32>} : memref<256x128xf32, #tpu.memory_space<vmem>>, vector<32x128xf32>,
    %c5_i32 = arith.constant 5 : i32
    %c32_i32_124 = arith.constant 32 : i32
    %231 = arith.muli %c5_i32, %c32_i32_124 : i32
    %232 = tpu.assume_multiple %231, 32 : i32
    %233 = arith.index_cast %232 : i32 to index
    %c0_125 = arith.constant 0 : index
    %234 = vector.load %arg11[%233, %c0_125] : memref<256x512xf32, #tpu.memory_space<vmem>>, vector<32x512xf32>
    %c0_126 = arith.constant 0 : index
    %c0_127 = arith.constant 0 : index
    %235 = vector.load %arg9[%c0_126, %c0_127] : memref<32x128xf32, #tpu.memory_space<vmem>>, vector<32x128xf32>
    %c0_128 = arith.constant 0 : index
    %c0_129 = arith.constant 0 : index
    %236 = vector.load %arg4[%c0_128, %c0_129] : memref<128x512xf32, #tpu.memory_space<vmem>>, vector<128x512xf32>
    %cst_130 = arith.constant dense<0.000000e+00> : vector<32x512xf32>
    %237 = tpu.matmul %235, %236, %cst_130 {dimension_numbers = #tpu.dot_dimension_numbers<[1], [0], [0], [1], [0, 0, 1, 1], [], []>} : vector<32x128xf32>, vector<128x512xf32>, vector<32x512xf32> -> vector<32x512xf32>
    %238 = arith.addf %234, %237 : vector<32x512xf32>
    %239 = vector.extract_strided_slice %238 {offsets = [0, 0], sizes = [32, 128], strides = [1, 1]} : vector<32x512xf32> to vector<32x128xf32>
    %cst_131 = arith.constant 5.000000e-01 : f32
    %240 = vector.broadcast %cst_131 : f32 to vector<32x128xf32>
    %241 = arith.mulf %240, %239 : vector<32x128xf32>
    %242 = math.tanh %241 : vector<32x128xf32>
    %cst_132 = arith.constant 5.000000e-01 : f32
    %243 = vector.broadcast %cst_132 : f32 to vector<32x128xf32>
    %244 = arith.mulf %243, %242 : vector<32x128xf32>
    %cst_133 = arith.constant 5.000000e-01 : f32
    %245 = vector.broadcast %cst_133 : f32 to vector<32x128xf32>
    %246 = arith.addf %244, %245 : vector<32x128xf32>
    %247 = vector.extract_strided_slice %238 {offsets = [0, 128], sizes = [32, 128], strides = [1, 1]} : vector<32x512xf32> to vector<32x128xf32>
    %cst_134 = arith.constant 5.000000e-01 : f32
    %248 = vector.broadcast %cst_134 : f32 to vector<32x128xf32>
    %249 = arith.mulf %248, %247 : vector<32x128xf32>
    %250 = math.tanh %249 : vector<32x128xf32>
    %cst_135 = arith.constant 5.000000e-01 : f32
    %251 = vector.broadcast %cst_135 : f32 to vector<32x128xf32>
    %252 = arith.mulf %251, %250 : vector<32x128xf32>
    %cst_136 = arith.constant 5.000000e-01 : f32
    %253 = vector.broadcast %cst_136 : f32 to vector<32x128xf32>
    %254 = arith.addf %252, %253 : vector<32x128xf32>
    %255 = vector.extract_strided_slice %238 {offsets = [0, 256], sizes = [32, 128], strides = [1, 1]} : vector<32x512xf32> to vector<32x128xf32>
    %256 = math.tanh %255 : vector<32x128xf32>
    %257 = vector.extract_strided_slice %238 {offsets = [0, 384], sizes = [32, 128], strides = [1, 1]} : vector<32x512xf32> to vector<32x128xf32>
    %cst_137 = arith.constant 5.000000e-01 : f32
    %258 = vector.broadcast %cst_137 : f32 to vector<32x128xf32>
    %259 = arith.mulf %258, %257 : vector<32x128xf32>
    %260 = math.tanh %259 : vector<32x128xf32>
    %cst_138 = arith.constant 5.000000e-01 : f32
    %261 = vector.broadcast %cst_138 : f32 to vector<32x128xf32>
    %262 = arith.mulf %261, %260 : vector<32x128xf32>
    %cst_139 = arith.constant 5.000000e-01 : f32
    %263 = vector.broadcast %cst_139 : f32 to vector<32x128xf32>
    %264 = arith.addf %262, %263 : vector<32x128xf32>
    %c0_140 = arith.constant 0 : index
    %c0_141 = arith.constant 0 : index
    %265 = vector.load %arg10[%c0_140, %c0_141] : memref<32x128xf32, #tpu.memory_space<vmem>>, vector<32x128xf32>
    %266 = arith.mulf %254, %265 : vector<32x128xf32>
    %267 = arith.mulf %246, %256 : vector<32x128xf32>
    %268 = arith.addf %266, %267 : vector<32x128xf32>
    %269 = math.tanh %268 : vector<32x128xf32>
    %270 = arith.mulf %264, %269 : vector<32x128xf32>
    %c0_142 = arith.constant 0 : index
    %c0_143 = arith.constant 0 : index
    %271 = vector.load %arg10[%c0_142, %c0_143] : memref<32x128xf32, #tpu.memory_space<vmem>>, vector<32x128xf32>
    tpu.vector_store %arg10[%c0_142, %c0_143], %268 {strides = array<i32>} : memref<32x128xf32, #tpu.memory_space<vmem>>, vector<32x128xf32>,
    %c0_144 = arith.constant 0 : index
    %c0_145 = arith.constant 0 : index
    %272 = vector.load %arg9[%c0_144, %c0_145] : memref<32x128xf32, #tpu.memory_space<vmem>>, vector<32x128xf32>
    tpu.vector_store %arg9[%c0_144, %c0_145], %270 {strides = array<i32>} : memref<32x128xf32, #tpu.memory_space<vmem>>, vector<32x128xf32>,
    %273 = arith.index_cast %232 : i32 to index
    %c0_146 = arith.constant 0 : index
    %274 = vector.load %arg12[%273, %c0_146] : memref<256x128xf32, #tpu.memory_space<vmem>>, vector<32x128xf32>
    tpu.vector_store %arg12[%273, %c0_146], %270 {strides = array<i32>} : memref<256x128xf32, #tpu.memory_space<vmem>>, vector<32x128xf32>,
    %c6_i32 = arith.constant 6 : i32
    %c32_i32_147 = arith.constant 32 : i32
    %275 = arith.muli %c6_i32, %c32_i32_147 : i32
    %276 = tpu.assume_multiple %275, 32 : i32
    %277 = arith.index_cast %276 : i32 to index
    %c0_148 = arith.constant 0 : index
    %278 = vector.load %arg11[%277, %c0_148] : memref<256x512xf32, #tpu.memory_space<vmem>>, vector<32x512xf32>
    %c0_149 = arith.constant 0 : index
    %c0_150 = arith.constant 0 : index
    %279 = vector.load %arg9[%c0_149, %c0_150] : memref<32x128xf32, #tpu.memory_space<vmem>>, vector<32x128xf32>
    %c0_151 = arith.constant 0 : index
    %c0_152 = arith.constant 0 : index
    %280 = vector.load %arg4[%c0_151, %c0_152] : memref<128x512xf32, #tpu.memory_space<vmem>>, vector<128x512xf32>
    %cst_153 = arith.constant dense<0.000000e+00> : vector<32x512xf32>
    %281 = tpu.matmul %279, %280, %cst_153 {dimension_numbers = #tpu.dot_dimension_numbers<[1], [0], [0], [1], [0, 0, 1, 1], [], []>} : vector<32x128xf32>, vector<128x512xf32>, vector<32x512xf32> -> vector<32x512xf32>
    %282 = arith.addf %278, %281 : vector<32x512xf32>
    %283 = vector.extract_strided_slice %282 {offsets = [0, 0], sizes = [32, 128], strides = [1, 1]} : vector<32x512xf32> to vector<32x128xf32>
    %cst_154 = arith.constant 5.000000e-01 : f32
    %284 = vector.broadcast %cst_154 : f32 to vector<32x128xf32>
    %285 = arith.mulf %284, %283 : vector<32x128xf32>
    %286 = math.tanh %285 : vector<32x128xf32>
    %cst_155 = arith.constant 5.000000e-01 : f32
    %287 = vector.broadcast %cst_155 : f32 to vector<32x128xf32>
    %288 = arith.mulf %287, %286 : vector<32x128xf32>
    %cst_156 = arith.constant 5.000000e-01 : f32
    %289 = vector.broadcast %cst_156 : f32 to vector<32x128xf32>
    %290 = arith.addf %288, %289 : vector<32x128xf32>
    %291 = vector.extract_strided_slice %282 {offsets = [0, 128], sizes = [32, 128], strides = [1, 1]} : vector<32x512xf32> to vector<32x128xf32>
    %cst_157 = arith.constant 5.000000e-01 : f32
    %292 = vector.broadcast %cst_157 : f32 to vector<32x128xf32>
    %293 = arith.mulf %292, %291 : vector<32x128xf32>
    %294 = math.tanh %293 : vector<32x128xf32>
    %cst_158 = arith.constant 5.000000e-01 : f32
    %295 = vector.broadcast %cst_158 : f32 to vector<32x128xf32>
    %296 = arith.mulf %295, %294 : vector<32x128xf32>
    %cst_159 = arith.constant 5.000000e-01 : f32
    %297 = vector.broadcast %cst_159 : f32 to vector<32x128xf32>
    %298 = arith.addf %296, %297 : vector<32x128xf32>
    %299 = vector.extract_strided_slice %282 {offsets = [0, 256], sizes = [32, 128], strides = [1, 1]} : vector<32x512xf32> to vector<32x128xf32>
    %300 = math.tanh %299 : vector<32x128xf32>
    %301 = vector.extract_strided_slice %282 {offsets = [0, 384], sizes = [32, 128], strides = [1, 1]} : vector<32x512xf32> to vector<32x128xf32>
    %cst_160 = arith.constant 5.000000e-01 : f32
    %302 = vector.broadcast %cst_160 : f32 to vector<32x128xf32>
    %303 = arith.mulf %302, %301 : vector<32x128xf32>
    %304 = math.tanh %303 : vector<32x128xf32>
    %cst_161 = arith.constant 5.000000e-01 : f32
    %305 = vector.broadcast %cst_161 : f32 to vector<32x128xf32>
    %306 = arith.mulf %305, %304 : vector<32x128xf32>
    %cst_162 = arith.constant 5.000000e-01 : f32
    %307 = vector.broadcast %cst_162 : f32 to vector<32x128xf32>
    %308 = arith.addf %306, %307 : vector<32x128xf32>
    %c0_163 = arith.constant 0 : index
    %c0_164 = arith.constant 0 : index
    %309 = vector.load %arg10[%c0_163, %c0_164] : memref<32x128xf32, #tpu.memory_space<vmem>>, vector<32x128xf32>
    %310 = arith.mulf %298, %309 : vector<32x128xf32>
    %311 = arith.mulf %290, %300 : vector<32x128xf32>
    %312 = arith.addf %310, %311 : vector<32x128xf32>
    %313 = math.tanh %312 : vector<32x128xf32>
    %314 = arith.mulf %308, %313 : vector<32x128xf32>
    %c0_165 = arith.constant 0 : index
    %c0_166 = arith.constant 0 : index
    %315 = vector.load %arg10[%c0_165, %c0_166] : memref<32x128xf32, #tpu.memory_space<vmem>>, vector<32x128xf32>
    tpu.vector_store %arg10[%c0_165, %c0_166], %312 {strides = array<i32>} : memref<32x128xf32, #tpu.memory_space<vmem>>, vector<32x128xf32>,
    %c0_167 = arith.constant 0 : index
    %c0_168 = arith.constant 0 : index
    %316 = vector.load %arg9[%c0_167, %c0_168] : memref<32x128xf32, #tpu.memory_space<vmem>>, vector<32x128xf32>
    tpu.vector_store %arg9[%c0_167, %c0_168], %314 {strides = array<i32>} : memref<32x128xf32, #tpu.memory_space<vmem>>, vector<32x128xf32>,
    %317 = arith.index_cast %276 : i32 to index
    %c0_169 = arith.constant 0 : index
    %318 = vector.load %arg12[%317, %c0_169] : memref<256x128xf32, #tpu.memory_space<vmem>>, vector<32x128xf32>
    tpu.vector_store %arg12[%317, %c0_169], %314 {strides = array<i32>} : memref<256x128xf32, #tpu.memory_space<vmem>>, vector<32x128xf32>,
    %c7_i32 = arith.constant 7 : i32
    %c32_i32_170 = arith.constant 32 : i32
    %319 = arith.muli %c7_i32, %c32_i32_170 : i32
    %320 = tpu.assume_multiple %319, 32 : i32
    %321 = arith.index_cast %320 : i32 to index
    %c0_171 = arith.constant 0 : index
    %322 = vector.load %arg11[%321, %c0_171] : memref<256x512xf32, #tpu.memory_space<vmem>>, vector<32x512xf32>
    %c0_172 = arith.constant 0 : index
    %c0_173 = arith.constant 0 : index
    %323 = vector.load %arg9[%c0_172, %c0_173] : memref<32x128xf32, #tpu.memory_space<vmem>>, vector<32x128xf32>
    %c0_174 = arith.constant 0 : index
    %c0_175 = arith.constant 0 : index
    %324 = vector.load %arg4[%c0_174, %c0_175] : memref<128x512xf32, #tpu.memory_space<vmem>>, vector<128x512xf32>
    %cst_176 = arith.constant dense<0.000000e+00> : vector<32x512xf32>
    %325 = tpu.matmul %323, %324, %cst_176 {dimension_numbers = #tpu.dot_dimension_numbers<[1], [0], [0], [1], [0, 0, 1, 1], [], []>} : vector<32x128xf32>, vector<128x512xf32>, vector<32x512xf32> -> vector<32x512xf32>
    %326 = arith.addf %322, %325 : vector<32x512xf32>
    %327 = vector.extract_strided_slice %326 {offsets = [0, 0], sizes = [32, 128], strides = [1, 1]} : vector<32x512xf32> to vector<32x128xf32>
    %cst_177 = arith.constant 5.000000e-01 : f32
    %328 = vector.broadcast %cst_177 : f32 to vector<32x128xf32>
    %329 = arith.mulf %328, %327 : vector<32x128xf32>
    %330 = math.tanh %329 : vector<32x128xf32>
    %cst_178 = arith.constant 5.000000e-01 : f32
    %331 = vector.broadcast %cst_178 : f32 to vector<32x128xf32>
    %332 = arith.mulf %331, %330 : vector<32x128xf32>
    %cst_179 = arith.constant 5.000000e-01 : f32
    %333 = vector.broadcast %cst_179 : f32 to vector<32x128xf32>
    %334 = arith.addf %332, %333 : vector<32x128xf32>
    %335 = vector.extract_strided_slice %326 {offsets = [0, 128], sizes = [32, 128], strides = [1, 1]} : vector<32x512xf32> to vector<32x128xf32>
    %cst_180 = arith.constant 5.000000e-01 : f32
    %336 = vector.broadcast %cst_180 : f32 to vector<32x128xf32>
    %337 = arith.mulf %336, %335 : vector<32x128xf32>
    %338 = math.tanh %337 : vector<32x128xf32>
    %cst_181 = arith.constant 5.000000e-01 : f32
    %339 = vector.broadcast %cst_181 : f32 to vector<32x128xf32>
    %340 = arith.mulf %339, %338 : vector<32x128xf32>
    %cst_182 = arith.constant 5.000000e-01 : f32
    %341 = vector.broadcast %cst_182 : f32 to vector<32x128xf32>
    %342 = arith.addf %340, %341 : vector<32x128xf32>
    %343 = vector.extract_strided_slice %326 {offsets = [0, 256], sizes = [32, 128], strides = [1, 1]} : vector<32x512xf32> to vector<32x128xf32>
    %344 = math.tanh %343 : vector<32x128xf32>
    %345 = vector.extract_strided_slice %326 {offsets = [0, 384], sizes = [32, 128], strides = [1, 1]} : vector<32x512xf32> to vector<32x128xf32>
    %cst_183 = arith.constant 5.000000e-01 : f32
    %346 = vector.broadcast %cst_183 : f32 to vector<32x128xf32>
    %347 = arith.mulf %346, %345 : vector<32x128xf32>
    %348 = math.tanh %347 : vector<32x128xf32>
    %cst_184 = arith.constant 5.000000e-01 : f32
    %349 = vector.broadcast %cst_184 : f32 to vector<32x128xf32>
    %350 = arith.mulf %349, %348 : vector<32x128xf32>
    %cst_185 = arith.constant 5.000000e-01 : f32
    %351 = vector.broadcast %cst_185 : f32 to vector<32x128xf32>
    %352 = arith.addf %350, %351 : vector<32x128xf32>
    %c0_186 = arith.constant 0 : index
    %c0_187 = arith.constant 0 : index
    %353 = vector.load %arg10[%c0_186, %c0_187] : memref<32x128xf32, #tpu.memory_space<vmem>>, vector<32x128xf32>
    %354 = arith.mulf %342, %353 : vector<32x128xf32>
    %355 = arith.mulf %334, %344 : vector<32x128xf32>
    %356 = arith.addf %354, %355 : vector<32x128xf32>
    %357 = math.tanh %356 : vector<32x128xf32>
    %358 = arith.mulf %352, %357 : vector<32x128xf32>
    %c0_188 = arith.constant 0 : index
    %c0_189 = arith.constant 0 : index
    %359 = vector.load %arg10[%c0_188, %c0_189] : memref<32x128xf32, #tpu.memory_space<vmem>>, vector<32x128xf32>
    tpu.vector_store %arg10[%c0_188, %c0_189], %356 {strides = array<i32>} : memref<32x128xf32, #tpu.memory_space<vmem>>, vector<32x128xf32>,
    %c0_190 = arith.constant 0 : index
    %c0_191 = arith.constant 0 : index
    %360 = vector.load %arg9[%c0_190, %c0_191] : memref<32x128xf32, #tpu.memory_space<vmem>>, vector<32x128xf32>
    tpu.vector_store %arg9[%c0_190, %c0_191], %358 {strides = array<i32>} : memref<32x128xf32, #tpu.memory_space<vmem>>, vector<32x128xf32>,
    %361 = arith.index_cast %320 : i32 to index
    %c0_192 = arith.constant 0 : index
    %362 = vector.load %arg12[%361, %c0_192] : memref<256x128xf32, #tpu.memory_space<vmem>>, vector<32x128xf32>
    tpu.vector_store %arg12[%361, %c0_192], %358 {strides = array<i32>} : memref<256x128xf32, #tpu.memory_space<vmem>>, vector<32x128xf32>,
    %c8_i32 = arith.constant 8 : i32
    %c0_193 = arith.constant 0 : index
    %c0_194 = arith.constant 0 : index
    %363 = vector.load %arg12[%c0_193, %c0_194] : memref<256x128xf32, #tpu.memory_space<vmem>>, vector<256x128xf32>
    %c0_195 = arith.constant 0 : index
    %c0_196 = arith.constant 0 : index
    %364 = vector.load %arg6[%c0_195, %c0_196] : memref<128x128xf32, #tpu.memory_space<vmem>>, vector<128x128xf32>
    %cst_197 = arith.constant dense<0.000000e+00> : vector<256x128xf32>
    %365 = tpu.matmul %363, %364, %cst_197 {dimension_numbers = #tpu.dot_dimension_numbers<[1], [0], [0], [1], [0, 0, 1, 1], [], []>} : vector<256x128xf32>, vector<128x128xf32>, vector<256x128xf32> -> vector<256x128xf32>
    %c0_198 = arith.constant 0 : index
    %c0_199 = arith.constant 0 : index
    %366 = vector.load %arg7[%c0_198, %c0_199] : memref<1x128xf32, #tpu.memory_space<vmem>>, vector<1x128xf32>
    %367 = vector.broadcast %366 : vector<1x128xf32> to vector<256x128xf32>
    %368 = arith.addf %365, %367 : vector<256x128xf32>
    %369 = vector.shape_cast %368 : vector<256x128xf32> to vector<8x32x128xf32>
    %c0_200 = arith.constant 0 : index
    %c0_201 = arith.constant 0 : index
    %c0_202 = arith.constant 0 : index
    %370 = vector.load %arg8[%c0_200, %c0_201, %c0_202] : memref<8x32x128xf32, #tpu.memory_space<vmem>>, vector<8x32x128xf32>
    tpu.vector_store %arg8[%c0_200, %c0_201, %c0_202], %369 {strides = array<i32>} : memref<8x32x128xf32, #tpu.memory_space<vmem>>, vector<8x32x128xf32>,
    return
  }
  func.func @transform_0(%arg0: i32, %arg1: i32) -> (i32, i32, i32) {
    %c0_i32 = arith.constant 0 : i32
    %c0_i32_0 = arith.constant 0 : i32
    return %arg1, %arg0, %c0_i32 : i32, i32, i32
  }
  func.func @transform_1(%arg0: i32, %arg1: i32) -> (i32, i32) {
    %c0_i32 = arith.constant 0 : i32
    %c0_i32_0 = arith.constant 0 : i32
    %c0_i32_1 = arith.constant 0 : i32
    return %c0_i32, %c0_i32_0 : i32, i32
  }
  func.func @transform_2(%arg0: i32, %arg1: i32) -> (i32, i32) {
    %c0_i32 = arith.constant 0 : i32
    %c0_i32_0 = arith.constant 0 : i32
    %c0_i32_1 = arith.constant 0 : i32
    return %c0_i32, %c0_i32_0 : i32, i32
  }
  func.func @transform_3(%arg0: i32, %arg1: i32) -> (i32, i32) {
    %c0_i32 = arith.constant 0 : i32
    %c0_i32_0 = arith.constant 0 : i32
    %c0_i32_1 = arith.constant 0 : i32
    return %c0_i32, %c0_i32_0 : i32, i32
  }
  func.func @transform_4(%arg0: i32, %arg1: i32) -> (i32, i32) {
    %c0_i32 = arith.constant 0 : i32
    %c0_i32_0 = arith.constant 0 : i32
    %c0_i32_1 = arith.constant 0 : i32
    return %c0_i32, %c0_i32_0 : i32, i32
  }
  func.func @transform_5(%arg0: i32, %arg1: i32) -> (i32, i32) {
    %c0_i32 = arith.constant 0 : i32
    %c0_i32_0 = arith.constant 0 : i32
    %c0_i32_1 = arith.constant 0 : i32
    return %c0_i32, %c0_i32_0 : i32, i32
  }
  func.func @transform_6(%arg0: i32, %arg1: i32) -> (i32, i32, i32) {
    %c0_i32 = arith.constant 0 : i32
    %c0_i32_0 = arith.constant 0 : i32
    return %arg1, %arg0, %c0_i32 : i32, i32, i32
  }
}

</mosaic_0001>

<llo_original>
// kernel: tpu_custom_call.1
$region0: #{tpu_custom_call.1}
  #allocation0 [shape = 'u32[]', space=smem, size = 0x4, offset = 0x4, fixed_abs, tag = 'smem constant byte address 0x4 - core index']
  #allocation1 [shape = 'u32[144,128]{1,0:T(1,128)}', space=vmem, size = 0x12000, scoped, tag = 'internal scratch']
  #allocation2 [shape = 'f32[32,128]{1,0:T(8,128)}', space=vmem, size = 0x4000, scoped, tag = 'scratch operand']
  #allocation3 [shape = 'f32[32,128]{1,0:T(8,128)}', space=vmem, size = 0x4000, scoped, tag = 'scratch operand']
  #allocation4 [shape = 'f32[256,512]{1,0:T(8,128)}', space=vmem, size = 0x80000, scoped, tag = 'scratch operand']
  #allocation5 [shape = 'f32[256,128]{1,0:T(8,128)}', space=vmem, size = 0x20000, scoped, tag = 'scratch operand']
  %s0 = inlined_call_operand.vmem [shape: f32[16,32,4], index: 0, kind: input, shape index: {}]
  %s1 = inlined_call_operand.vmem [shape: f32[4,512], index: 1, kind: input, shape index: {}]
  %s2 = inlined_call_operand.vmem [shape: f32[128,512], index: 2, kind: input, shape index: {}]
  %s3 = inlined_call_operand.vmem [shape: f32[1,512], index: 3, kind: input, shape index: {}]
  %s4 = inlined_call_operand.hbm [shape: f32[128,128], index: 4, kind: input, shape index: {}]
  %s5 = inlined_call_operand.vmem [shape: f32[1,128], index: 5, kind: input, shape index: {}]
  %s6 = inlined_call_operand.hbm [shape: f32[16,32,128], index: 6, kind: output, shape index: {}]
  %s7 = sld [smem:[#allocation0]]
  $region65: #{tpu_custom_call.1} parent=0
    _
  %s9 = ssub.s32 1, %s7
  %s10 = scalar_select 0, %s9, %s7
  $region1: #{tpu_custom_call.1} parent=0
    #allocation6 [shape = 'u8[65536]{0}', space=vmem, size = 0x10000, scoped, tag = 'input window, operand 4, single buffered']
    #allocation7 [shape = 's32[2]{0}', space=sflag, size = 0x8, scoped, tag = 'scoped memory for tpu_custom_call.1']
    #allocation8 [shape = 's32[2]{0}', space=sflag, size = 0x8, scoped, tag = 'scoped memory for tpu_custom_call.1']
    #allocation9 [shape = 'u8[262144]{0}', space=vmem, size = 0x40000, scoped, tag = 'output window, operand 0']
    %11 = vsyncpa [#allocation7], 0
    %12 = vsyncpa [#allocation8], 0
    %s13 = scalar_lea.sflag [#allocation8], 1
    %14 = vsyncpa %s13, 0
    loop: start=0, step=1, limit=4
    $region2: #{tpu_custom_call.1} parent=1 // loop_pre_header
      _
    $region3: #{tpu_custom_call.1} parent=1 // loop_header
      %s16 = sphi 0, %s20
      %p17 = scmp.ge.s32.totalorder %s16, 4
      %s23 = sphi 0, %s35
      %s24 = sphi 0, %s31
      %s25 = sphi 0, %s23
      %s26 = sphi 0, %s24
      %s27 = sphi 0, %s25
      %s28 = sphi 0, %s26
      %s40 = sphi 0, %s42
      %s43 = sphi 0, %s40
      %s44 = sphi 0, %s43
      %s60 = sphi 0, %s44
      %s64 = sphi 0, %s64
      %s66 = sphi 0, %s64
      %s67 = sphi 0, %s66
      %s81 = sphi 0, %s67
      %s85 = sphi 0, %s85
      %s87 = sphi 0, %s85
      %s88 = sphi 0, %s87
      %s102 = sphi 0, %s88
      %s106 = sphi 0, %s106
      %s108 = sphi 0, %s106
      %s109 = sphi 0, %s108
      %s123 = sphi 0, %s109
      %s127 = sphi 0, %s127
      %s129 = sphi 0, %s127
      %s130 = sphi 0, %s129
      %s144 = sphi 0, %s130
      %s148 = sphi 0, %s148
      %s150 = sphi 0, %s148
      %s151 = sphi 0, %s150
      %s165 = sphi 0, %s151
      %s173 = sphi 0, %s175
      %s176 = sphi 0, %s173
      %s177 = sphi 0, %s176
      %s193 = sphi 0, %s177
    $region4: #{tpu_custom_call.1} parent=1 // loop_header_branch
      %19 = sbr.rel (%p17) target = $region8
    $region5: #{tpu_custom_call.1} parent=1 // loop_body
      %s21 = ssub.s32 %s16, 1
      %s22 = ssub.s32 %s16, 2
      %s29 = sadd.s32 1, %s24
      %p30 = scmp.ge.s32.totalorder %s29, 2
      %s31 = scalar_select %p30, 0, %s29
      %s32 = sadd.s32 1, %s23
      %s33 = scalar_select %p30, %s32, %s23
      %p34 = scmp.ge.s32.totalorder %s33, 1
      %s35 = scalar_select %p34, 0, %s33
      %s36 = ssub.s32 %s24, %s31
      %s37 = ssub.s32 %s23, %s35
      %s38 = sor.u32 %s36, %s37
      %p39 = scmp.eq.s32.totalorder %s38, 0
      %s41 = sadd.s32 %s40, 1
      %s42 = scalar_select %p39, %s40, %s41
      %p45 = pneg %p39
      %p46 = scmp.eq.s32.totalorder %s16, 1
      %p47 = por %p45, %p46
      %p48 = scmp.ne.s32.totalorder %s40, %s43
      %p49 = scmp.eq.s32.totalorder %s16, 0
      %p50 = por %p48, %p49
      %p51 = scmp.ne.s32.totalorder %s40, %s43
      %p52 = scmp.eq.s32.totalorder %s21, 1
      %p53 = por %p51, %p52
      %p54 = scmp.ne.s32.totalorder %s43, %s44
      %p55 = scmp.eq.s32.totalorder %s21, 0
      %p56 = por %p54, %p55
      %p57 = scmp.ne.s32.totalorder %s43, %s44
      %p58 = scmp.eq.s32.totalorder %s22, 1
      %p59 = por %p57, %p58
      %p61 = scmp.ne.s32.totalorder %s44, %s60
      %p62 = scmp.eq.s32.totalorder %s22, 0
      %p63 = por %p61, %p62
      %s65 = sadd.s32 %s64, 1
      %p68 = scmp.eq.s32.totalorder %s16, 1
      %p69 = scmp.ne.s32.totalorder %s64, %s66
      %p70 = scmp.eq.s32.totalorder %s16, 0
      %p71 = por %p69, %p70
      %p72 = scmp.ne.s32.totalorder %s64, %s66
      %p73 = scmp.eq.s32.totalorder %s21, 1
      %p74 = por %p72, %p73
      %p75 = scmp.ne.s32.totalorder %s66, %s67
      %p76 = scmp.eq.s32.totalorder %s21, 0
      %p77 = por %p75, %p76
      %p78 = scmp.ne.s32.totalorder %s66, %s67
      %p79 = scmp.eq.s32.totalorder %s22, 1
      %p80 = por %p78, %p79
      %p82 = scmp.ne.s32.totalorder %s67, %s81
      %p83 = scmp.eq.s32.totalorder %s22, 0
      %p84 = por %p82, %p83
      %s86 = sadd.s32 %s85, 1
      %p89 = scmp.eq.s32.totalorder %s16, 1
      %p90 = scmp.ne.s32.totalorder %s85, %s87
      %p91 = scmp.eq.s32.totalorder %s16, 0
      %p92 = por %p90, %p91
      %p93 = scmp.ne.s32.totalorder %s85, %s87
      %p94 = scmp.eq.s32.totalorder %s21, 1
      %p95 = por %p93, %p94
      %p96 = scmp.ne.s32.totalorder %s87, %s88
      %p97 = scmp.eq.s32.totalorder %s21, 0
      %p98 = por %p96, %p97
      %p99 = scmp.ne.s32.totalorder %s87, %s88
      %p100 = scmp.eq.s32.totalorder %s22, 1
      %p101 = por %p99, %p100
      %p103 = scmp.ne.s32.totalorder %s88, %s102
      %p104 = scmp.eq.s32.totalorder %s22, 0
      %p105 = por %p103, %p104
      %s107 = sadd.s32 %s106, 1
      %p110 = scmp.eq.s32.totalorder %s16, 1
      %p111 = scmp.ne.s32.totalorder %s106, %s108
      %p112 = scmp.eq.s32.totalorder %s16, 0
      %p113 = por %p111, %p112
      %p114 = scmp.ne.s32.totalorder %s106, %s108
      %p115 = scmp.eq.s32.totalorder %s21, 1
      %p116 = por %p114, %p115
      %p117 = scmp.ne.s32.totalorder %s108, %s109
      %p118 = scmp.eq.s32.totalorder %s21, 0
      %p119 = por %p117, %p118
      %p120 = scmp.ne.s32.totalorder %s108, %s109
      %p121 = scmp.eq.s32.totalorder %s22, 1
      %p122 = por %p120, %p121
      %p124 = scmp.ne.s32.totalorder %s109, %s123
      %p125 = scmp.eq.s32.totalorder %s22, 0
      %p126 = por %p124, %p125
      %s128 = sadd.s32 %s127, 1
      %p131 = scmp.eq.s32.totalorder %s16, 1
      %p132 = scmp.ne.s32.totalorder %s127, %s129
      %p133 = scmp.eq.s32.totalorder %s16, 0
      %p134 = por %p132, %p133
      %p135 = scmp.ne.s32.totalorder %s127, %s129
      %p136 = scmp.eq.s32.totalorder %s21, 1
      %p137 = por %p135, %p136
      %p138 = scmp.ne.s32.totalorder %s129, %s130
      %p139 = scmp.eq.s32.totalorder %s21, 0
      %p140 = por %p138, %p139
      %p141 = scmp.ne.s32.totalorder %s129, %s130
      %p142 = scmp.eq.s32.totalorder %s22, 1
      %p143 = por %p141, %p142
      %p145 = scmp.ne.s32.totalorder %s130, %s144
      %p146 = scmp.eq.s32.totalorder %s22, 0
      %p147 = por %p145, %p146
      %s149 = sadd.s32 %s148, 1
      %p152 = scmp.eq.s32.totalorder %s16, 1
      %p153 = scmp.ne.s32.totalorder %s148, %s150
      %p154 = scmp.eq.s32.totalorder %s16, 0
      %p155 = por %p153, %p154
      %p156 = scmp.ne.s32.totalorder %s148, %s150
      %p157 = scmp.eq.s32.totalorder %s21, 1
      %p158 = por %p156, %p157
      %p159 = scmp.ne.s32.totalorder %s150, %s151
      %p160 = scmp.eq.s32.totalorder %s21, 0
      %p161 = por %p159, %p160
      %p162 = scmp.ne.s32.totalorder %s150, %s151
      %p163 = scmp.eq.s32.totalorder %s22, 1
      %p164 = por %p162, %p163
      %p166 = scmp.ne.s32.totalorder %s151, %s165
      %p167 = scmp.eq.s32.totalorder %s22, 0
      %p168 = por %p166, %p167
      %s169 = ssub.s32 %s24, %s31
      %s170 = ssub.s32 %s23, %s35
      %s171 = sor.u32 %s169, %s170
      %p172 = scmp.eq.s32.totalorder %s171, 0
      %s174 = sadd.s32 %s173, 1
      %s175 = scalar_select %p172, %s173, %s174
      %p178 = pneg %p172
      %p179 = scmp.eq.s32.totalorder %s16, 1
      %p180 = por %p178, %p179
      %p181 = scmp.ne.s32.totalorder %s173, %s176
      %p182 = scmp.eq.s32.totalorder %s16, 0
      %p183 = por %p181, %p182
      %p184 = scmp.ne.s32.totalorder %s173, %s176
      %p185 = scmp.eq.s32.totalorder %s21, 1
      %p186 = por %p184, %p185
      %p187 = scmp.ne.s32.totalorder %s176, %s177
      %p188 = scmp.eq.s32.totalorder %s21, 0
      %p189 = por %p187, %p188
      %p190 = scmp.ne.s32.totalorder %s176, %s177
      %p191 = scmp.eq.s32.totalorder %s22, 1
      %p192 = por %p190, %p191
      %p194 = scmp.ne.s32.totalorder %s177, %s193
      %p195 = scmp.eq.s32.totalorder %s22, 0
      %p196 = por %p194, %p195
      %p197 = scmp.le.s32.totalorder 1, %s16
      %p198 = scmp.lt.s32.totalorder %s16, 3
      %p199 = pnand %p197, %p198
      %p200 = pneg %p199
      // Predicated region
      $region9: #{tpu_custom_call.1} parent=5 // pred_check
        _
      $region10: #{tpu_custom_call.1} parent=5 // pred_check_branch
        %202 = sbr.rel (%p199) target = $region12
      $region11: #{tpu_custom_call.1} parent=5 // pred_region
        %s203 = ssub.s32 %s16, 1
        // Predicated region
        $region13: #{tpu_custom_call.1} parent=11 // pred_check
          %p204 = pneg %p77
        $region14: #{tpu_custom_call.1} parent=11 // pred_check_branch
          %206 = sbr.rel (%p204) target = $region16
        $region15: #{tpu_custom_call.1} parent=11 // pred_region
          _
        $region16: #{tpu_custom_call.1} parent=11 // pred_fallthru
          _
        // Predicated region
        $region17: #{tpu_custom_call.1} parent=11 // pred_check
          %p207 = pneg %p98
        $region18: #{tpu_custom_call.1} parent=11 // pred_check_branch
          %209 = sbr.rel (%p207) target = $region20
        $region19: #{tpu_custom_call.1} parent=11 // pred_region
          _
        $region20: #{tpu_custom_call.1} parent=11 // pred_fallthru
          _
        // Predicated region
        $region21: #{tpu_custom_call.1} parent=11 // pred_check
          %p210 = pneg %p119
        $region22: #{tpu_custom_call.1} parent=11 // pred_check_branch
          %212 = sbr.rel (%p210) target = $region24
        $region23: #{tpu_custom_call.1} parent=11 // pred_region
          _
        $region24: #{tpu_custom_call.1} parent=11 // pred_fallthru
          _
        // Predicated region
        $region25: #{tpu_custom_call.1} parent=11 // pred_check
          %p213 = pneg %p140
        $region26: #{tpu_custom_call.1} parent=11 // pred_check_branch
          %215 = sbr.rel (%p213) target = $region28
        $region27: #{tpu_custom_call.1} parent=11 // pred_region
          %s217 = ssub.s32 2048, 2048
          %218 = vsyncadd [#allocation7], %s217
          %s219 = sshll.u32 [#allocation6], 4
          %s220 = int_to_ptr.vmem [resolvable:$true] %s219
          %225 = dma.hbm_to_vmem [thread:$0]  %s4, 2048, %s220, [#allocation7], 128, 128, 8
        $region28: #{tpu_custom_call.1} parent=11 // pred_fallthru
          _
        // Predicated region
        $region29: #{tpu_custom_call.1} parent=11 // pred_check
          %p226 = pneg %p161
        $region30: #{tpu_custom_call.1} parent=11 // pred_check_branch
          %228 = sbr.rel (%p226) target = $region32
        $region31: #{tpu_custom_call.1} parent=11 // pred_region
          _
        $region32: #{tpu_custom_call.1} parent=11 // pred_fallthru
          _
      $region12: #{tpu_custom_call.1} parent=5 // pred_fallthru
        _
      %p229 = scmp.lt.s32.totalorder %s16, 2
      // Predicated region
      $region33: #{tpu_custom_call.1} parent=5 // pred_check
        %p230 = pneg %p229
      $region34: #{tpu_custom_call.1} parent=5 // pred_check_branch
        %232 = sbr.rel (%p230) target = $region36
      $region35: #{tpu_custom_call.1} parent=5 // pred_region
        // Predicated region
        $region37: #{tpu_custom_call.1} parent=35 // pred_check
          %p233 = pneg %p50
        $region38: #{tpu_custom_call.1} parent=35 // pred_check_branch
          %235 = sbr.rel (%p233) target = $region40
        $region39: #{tpu_custom_call.1} parent=35 // pred_region
          %s236 = smul.u32 8, %s24
          %s237 = smul.u32 4, %s23
          %p238 = scmp.lt.s32.totalorder %s236, 15
          %s239 = scalar_select %p238, %s236, 15
          %p240 = scmp.lt.s32.totalorder %s237, 3
          %s241 = scalar_select %p240, %s237, 3
          %s242 = smul.addr %s239, 4
          %s243 = sadd.s32 %s241, %s242
          %s244 = smul.addr %s243, 8
          %s245 = scalar_lea.vmem %s0, %s244
          %s246 = smul.u32 8, %s24
          %s247 = smul.u32 4, %s23
        $region40: #{tpu_custom_call.1} parent=35 // pred_fallthru
          _
      $region36: #{tpu_custom_call.1} parent=5 // pred_fallthru
        _
      %p248 = scmp.le.s32.totalorder 1, %s16
      %p249 = scmp.lt.s32.totalorder %s16, 3
      %p250 = pnand %p248, %p249
      %p251 = pneg %p250
      // Predicated region
      $region41: #{tpu_custom_call.1} parent=5 // pred_check
        _
      $region42: #{tpu_custom_call.1} parent=5 // pred_check_branch
        %253 = sbr.rel (%p250) target = $region44
      $region43: #{tpu_custom_call.1} parent=5 // pred_region
        %s254 = ssub.s32 %s16, 1
        // Predicated region
        $region45: #{tpu_custom_call.1} parent=43 // pred_check
          %p255 = pneg %p140
        $region46: #{tpu_custom_call.1} parent=43 // pred_check_branch
          %257 = sbr.rel (%p255) target = $region48
        $region47: #{tpu_custom_call.1} parent=43 // pred_region
          %258 = dma.done [#allocation7], 2048
        $region48: #{tpu_custom_call.1} parent=43 // pred_fallthru
          _
        %s259 = smul.u32 8, %s26
        %s260 = smul.u32 4, %s25
        %p261 = scmp.lt.s32.totalorder %s259, 15
        %s262 = scalar_select %p261, %s259, 15
        %p263 = scmp.lt.s32.totalorder %s260, 3
        %s264 = scalar_select %p263, %s260, 3
        %s265 = smul.addr %s262, 4
        %s266 = sadd.s32 %s264, %s265
        %s267 = smul.addr %s266, 8
        %s268 = scalar_lea.vmem %s0, %s267
        %p269 = pneg %p56
        %p270 = pneg %p53
        %p271 = pneg %p77
        %p272 = pneg %p74
        %p273 = pneg %p98
        %p274 = pneg %p95
        %p275 = pneg %p119
        %p276 = pneg %p116
        %p277 = pneg %p140
        %p278 = pneg %p137
        %p279 = pneg %p161
        %p280 = pneg %p158
        %p281 = pneg %p189
        %p282 = pneg %p186
        %s283 = sand.u32 %s176, 1
        %s284 = scalar_lea.sflag [#allocation8], %s283
        %s285 = sand.u32 %s176, 1
        %s286 = smul.addr %s285, 256
        %s287 = scalar_lea.vmem [#allocation9], %s286
        %s288 = smul.u32 8, %s26
        %s289 = smul.u32 4, %s25
        %p290 = scmp.lt.s32.totalorder %s288, 15
        %s291 = scalar_select %p290, %s288, 15
        %p292 = scmp.lt.s32.totalorder %s289, 3
        %s293 = scalar_select %p292, %s289, 3
        %s294 = smul.addr %s291, 4
        %s295 = sadd.s32 %s293, %s294
        %s296 = smul.addr %s295, 8
        %s297 = scalar_lea.vmem %s0, %s296
        %s298 = smul.u32 8, %s26
        %s299 = smul.u32 4, %s25
        %s300 = smul.u32 8, %s26
        %s301 = smul.u32 4, %s25
        %p302 = scmp.eq.s32.totalorder %s26, 0
        // Predicated region
        $region49: #{tpu_custom_call.1} parent=43 // pred_check
          %p303 = pneg %p302
        $region50: #{tpu_custom_call.1} parent=43 // pred_check_branch
          %305 = sbr.rel (%p303) target = $region52
        $region51: #{tpu_custom_call.1} parent=43 // pred_region
          %306 = vst [vmem:[#allocation2] sm:$0xff] 0.0
          %307 = vst [vmem:[#allocation2 + $0x8] sm:$0xff] 0.0
          %308 = vst [vmem:[#allocation2 + $0x10] sm:$0xff] 0.0
          %309 = vst [vmem:[#allocation2 + $0x18] sm:$0xff] 0.0
          %310 = vst [vmem:[#allocation3] sm:$0xff] 0.0
          %311 = vst [vmem:[#allocation3 + $0x8] sm:$0xff] 0.0
          %312 = vst [vmem:[#allocation3 + $0x10] sm:$0xff] 0.0
          %313 = vst [vmem:[#allocation3 + $0x18] sm:$0xff] 0.0
        $region52: #{tpu_custom_call.1} parent=43 // pred_fallthru
          _
        %v314 = vld [vmem:[%s297] sm:$0xff]
        %v315 = vld [vmem:[%s297 + $0x8] sm:$0xff]
        %v316 = vld [vmem:[%s297 + $0x10] sm:$0xff]
        %v317 = vld [vmem:[%s297 + $0x18] sm:$0xff]
        %v318 = vld [vmem:[%s297 + $0x20] sm:$0xff]
        %v319 = vld [vmem:[%s297 + $0x28] sm:$0xff]
        %v320 = vld [vmem:[%s297 + $0x30] sm:$0xff]
        %v321 = vld [vmem:[%s297 + $0x38] sm:$0xff]
        %v322 = vld [vmem:[%s297 + $0x40] sm:$0xff]
        %v323 = vld [vmem:[%s297 + $0x48] sm:$0xff]
        %v324 = vld [vmem:[%s297 + $0x50] sm:$0xff]
        %v325 = vld [vmem:[%s297 + $0x58] sm:$0xff]
        %v326 = vld [vmem:[%s297 + $0x60] sm:$0xff]
        %v327 = vld [vmem:[%s297 + $0x68] sm:$0xff]
        %v328 = vld [vmem:[%s297 + $0x70] sm:$0xff]
        %v329 = vld [vmem:[%s297 + $0x78] sm:$0xff]
        %v330 = vld [vmem:[%s297 + $0x80] sm:$0xff]
        %v331 = vld [vmem:[%s297 + $0x88] sm:$0xff]
        %v332 = vld [vmem:[%s297 + $0x90] sm:$0xff]
        %v333 = vld [vmem:[%s297 + $0x98] sm:$0xff]
        %v334 = vld [vmem:[%s297 + $0xa0] sm:$0xff]
        %v335 = vld [vmem:[%s297 + $0xa8] sm:$0xff]
        %v336 = vld [vmem:[%s297 + $0xb0] sm:$0xff]
        %v337 = vld [vmem:[%s297 + $0xb8] sm:$0xff]
        %v338 = vld [vmem:[%s297 + $0xc0] sm:$0xff]
        %v339 = vld [vmem:[%s297 + $0xc8] sm:$0xff]
        %v340 = vld [vmem:[%s297 + $0xd0] sm:$0xff]
        %v341 = vld [vmem:[%s297 + $0xd8] sm:$0xff]
        %v342 = vld [vmem:[%s297 + $0xe0] sm:$0xff]
        %v343 = vld [vmem:[%s297 + $0xe8] sm:$0xff]
        %v344 = vld [vmem:[%s297 + $0xf0] sm:$0xff]
        %v345 = vld [vmem:[%s297 + $0xf8] sm:$0xff]
        %v346 = vld [vmem:[%s1] sm:$0xff]
        %v347 = vld [vmem:[%s1 + $0x8] sm:$0xff]
        %v348 = vld [vmem:[%s3] sm:$0xf]
        %v350 = vlaneseq
        %v351 = vshrl.u32 %v350, 7
        %v352 = vsub.s32 0, %v351
        %v353 = vrot.slane %v348, %v352
        %v354 = vlaneseq
        %v355 = vshrl.u32 %v354, 7
        %v356 = vsub.s32 1, %v355
        %v357 = vrot.slane %v348, %v356
        %v358 = vlaneseq
        %v359 = vshrl.u32 %v358, 7
        %v360 = vsub.s32 2, %v359
        %v361 = vrot.slane %v348, %v360
        %v362 = vlaneseq
        %v363 = vshrl.u32 %v362, 7
        %v364 = vsub.s32 3, %v363
        %v365 = vrot.slane %v348, %v364
        %v372 = vcombine.high %v346, %v346
        %v373 = vcombine.high %v347, %v347
        %vm374 = vcmask 31744
        %v376 = vsel %vm374, %v314, 0
        %v379 = vsel %vm374, %v315, 0
        %v382 = vsel %vm374, %v316, 0
        %v385 = vsel %vm374, %v317, 0
        %v388 = vsel %vm374, %v318, 0
        %v391 = vsel %vm374, %v319, 0
        %v394 = vsel %vm374, %v320, 0
        %v397 = vsel %vm374, %v321, 0
        %v400 = vsel %vm374, %v322, 0
        %v403 = vsel %vm374, %v323, 0
        %v406 = vsel %vm374, %v324, 0
        %v409 = vsel %vm374, %v325, 0
        %v412 = vsel %vm374, %v326, 0
        %v415 = vsel %vm374, %v327, 0
        %v418 = vsel %vm374, %v328, 0
        %v421 = vsel %vm374, %v329, 0
        %v424 = vsel %vm374, %v330, 0
        %v427 = vsel %vm374, %v331, 0
        %v430 = vsel %vm374, %v332, 0
        %v433 = vsel %vm374, %v333, 0
        %v436 = vsel %vm374, %v334, 0
        %v439 = vsel %vm374, %v335, 0
        %v442 = vsel %vm374, %v336, 0
        %v445 = vsel %vm374, %v337, 0
        %v448 = vsel %vm374, %v338, 0
        %v451 = vsel %vm374, %v339, 0
        %v454 = vsel %vm374, %v340, 0
        %v457 = vsel %vm374, %v341, 0
        %v460 = vsel %vm374, %v342, 0
        %v463 = vsel %vm374, %v343, 0
        %v466 = vsel %vm374, %v344, 0
        %v469 = vsel %vm374, %v345, 0
        %vm471 = vcmask 1043456
        %v472 = vsel %vm471, %v346, 0
        %v474 = vsel %vm471, %v372, 0
        %v476 = vsel %vm471, %v347, 0
        %v478 = vsel %vm471, %v373, 0
        %480 = vmatprep.subr.mxu0 %v474
        %481 = vmatpush1.msra.mxu0 %v472
        %482 = vmatprep.subr.mxu0 0.0
        %483 = vmatpush1.msra.mxu0 0.0
        %484 = vmatprep.subr.mxu0 0.0
        %485 = vmatpush1.msra.mxu0 0.0
        %486 = vmatprep.subr.mxu0 0.0
        %487 = vmatpush1.msra.mxu0 0.0
        %488 = vmatprep.subr.mxu0 0.0
        %489 = vmatpush1.msra.mxu0 0.0
        %490 = vmatprep.subr.mxu0 0.0
        %491 = vmatpush1.msra.mxu0 0.0
        %492 = vmatprep.subr.mxu0 0.0
        %493 = vmatpush1.msra.mxu0 0.0
        %494 = vmatprep.subr.mxu0 0.0
        %495 = vmatpush1.msra.mxu0 0.0
        %496 = vmatprep.subr.mxu0 0.0
        %497 = vmatpush1.msra.mxu0 0.0
        %498 = vmatprep.subr.mxu0 0.0
        %499 = vmatpush1.msra.mxu0 0.0
        %500 = vmatprep.subr.mxu0 0.0
        %501 = vmatpush1.msra.mxu0 0.0
        %502 = vmatprep.subr.mxu0 0.0
        %503 = vmatpush1.msra.mxu0 0.0
        %504 = vmatprep.subr.mxu0 0.0
        %505 = vmatpush1.msra.mxu0 0.0
        %506 = vmatprep.subr.mxu0 0.0
        %507 = vmatpush1.msra.mxu0 0.0
        %508 = vmatprep.subr.mxu0 0.0
        %509 = vmatpush1.msra.mxu0 0.0
        %510 = vmatprep.subr.mxu0 0.0
        %511 = vmatpush1.msra.mxu0 0.0
        %512 = vmatprep.subr.mxu0 0.0
        %513 = vmatpush1.msra.mxu0 0.0
        %514 = vmatprep.subr.mxu0 0.0
        %515 = vmatpush1.msra.mxu0 0.0
        %516 = vmatprep.subr.mxu0 0.0
        %517 = vmatpush1.msra.mxu0 0.0
        %518 = vmatprep.subr.mxu0 0.0
        %519 = vmatpush1.msra.mxu0 0.0
        %520 = vmatprep.subr.mxu0 0.0
        %521 = vmatpush1.msra.mxu0 0.0
        %522 = vmatprep.subr.mxu0 0.0
        %523 = vmatpush1.msra.mxu0 0.0
        %524 = vmatprep.subr.mxu0 0.0
        %525 = vmatpush1.msra.mxu0 0.0
        %526 = vmatprep.subr.mxu0 0.0
        %527 = vmatpush1.msra.mxu0 0.0
        %528 = vmatprep.subr.mxu0 0.0
        %529 = vmatpush1.msra.mxu0 0.0
        %530 = vmatprep.subr.mxu0 0.0
        %531 = vmatpush1.msra.mxu0 0.0
        %532 = vmatprep.subr.mxu0 0.0
        %533 = vmatpush1.msra.mxu0 0.0
        %534 = vmatprep.subr.mxu0 0.0
        %535 = vmatpush1.msra.mxu0 0.0
        %536 = vmatprep.subr.mxu0 0.0
        %537 = vmatpush1.msra.mxu0 0.0
        %538 = vmatprep.subr.mxu0 0.0
        %539 = vmatpush1.msra.mxu0 0.0
        %540 = vmatprep.subr.mxu0 0.0
        %541 = vmatpush1.msra.mxu0 0.0
        %542 = vmatprep.subr.mxu0 0.0
        %543 = vmatpush1.msra.mxu0 0.0
        %544 = vmatprep.mubr.f32.mxu0 0.0
        %545 = vmatmul.mubr.f32.gmra.mrb[0].mxu0 %v376
        %v546 = vpop.f32.mrb[0].mxu0
        %v547 = vadd.f32 %v353, %v546
        %v548 = vpop.f32.mrb[0].mxu0
        %v549 = vadd.f32 %v357, %v548
        %550 = vmatprep.mubr.f32.mxu0 0.0
        %551 = vmatmul.mubr.f32.gmra.mrb[0].mxu0 %v379
        %v552 = vpop.f32.mrb[0].mxu0
        %v553 = vadd.f32 %v353, %v552
        %v554 = vpop.f32.mrb[0].mxu0
        %v555 = vadd.f32 %v357, %v554
        %556 = vmatprep.mubr.f32.mxu0 0.0
        %557 = vmatmul.mubr.f32.gmra.mrb[0].mxu0 %v382
        %v558 = vpop.f32.mrb[0].mxu0
        %v559 = vadd.f32 %v353, %v558
        %v560 = vpop.f32.mrb[0].mxu0
        %v561 = vadd.f32 %v357, %v560
        %562 = vmatprep.mubr.f32.mxu0 0.0
        %563 = vmatmul.mubr.f32.gmra.mrb[0].mxu0 %v385
        %v564 = vpop.f32.mrb[0].mxu0
        %v565 = vadd.f32 %v353, %v564
        %v566 = vpop.f32.mrb[0].mxu0
        %v567 = vadd.f32 %v357, %v566
        %568 = vmatprep.mubr.f32.mxu0 0.0
        %569 = vmatmul.mubr.f32.gmra.mrb[0].mxu0 %v388
        %v570 = vpop.f32.mrb[0].mxu0
        %v571 = vadd.f32 %v353, %v570
        %v572 = vpop.f32.mrb[0].mxu0
        %v573 = vadd.f32 %v357, %v572
        %574 = vmatprep.mubr.f32.mxu0 0.0
        %575 = vmatmul.mubr.f32.gmra.mrb[0].mxu0 %v391
        %v576 = vpop.f32.mrb[0].mxu0
        %v577 = vadd.f32 %v353, %v576
        %v578 = vpop.f32.mrb[0].mxu0
        %v579 = vadd.f32 %v357, %v578
        %580 = vmatprep.mubr.f32.mxu0 0.0
        %581 = vmatmul.mubr.f32.gmra.mrb[0].mxu0 %v394
        %v582 = vpop.f32.mrb[0].mxu0
        %v583 = vadd.f32 %v353, %v582
        %v584 = vpop.f32.mrb[0].mxu0
        %v585 = vadd.f32 %v357, %v584
        %586 = vmatprep.mubr.f32.mxu0 0.0
        %587 = vmatmul.mubr.f32.gmra.mrb[0].mxu0 %v397
        %v588 = vpop.f32.mrb[0].mxu0
        %v589 = vadd.f32 %v353, %v588
        %v590 = vpop.f32.mrb[0].mxu0
        %v591 = vadd.f32 %v357, %v590
        %592 = vmatprep.mubr.f32.mxu0 0.0
        %593 = vmatmul.mubr.f32.gmra.mrb[0].mxu0 %v400
        %v594 = vpop.f32.mrb[0].mxu0
        %v595 = vadd.f32 %v353, %v594
        %v596 = vpop.f32.mrb[0].mxu0
        %v597 = vadd.f32 %v357, %v596
        %598 = vmatprep.mubr.f32.mxu0 0.0
        %599 = vmatmul.mubr.f32.gmra.mrb[0].mxu0 %v403
        %v600 = vpop.f32.mrb[0].mxu0
        %v601 = vadd.f32 %v353, %v600
        %v602 = vpop.f32.mrb[0].mxu0
        %v603 = vadd.f32 %v357, %v602
        %604 = vmatprep.mubr.f32.mxu0 0.0
        %605 = vmatmul.mubr.f32.gmra.mrb[0].mxu0 %v406
        %v606 = vpop.f32.mrb[0].mxu0
        %v607 = vadd.f32 %v353, %v606
        %v608 = vpop.f32.mrb[0].mxu0
        %v609 = vadd.f32 %v357, %v608
        %610 = vmatprep.mubr.f32.mxu0 0.0
        %611 = vmatmul.mubr.f32.gmra.mrb[0].mxu0 %v409
        %v612 = vpop.f32.mrb[0].mxu0
        %v613 = vadd.f32 %v353, %v612
        %v614 = vpop.f32.mrb[0].mxu0
        %v615 = vadd.f32 %v357, %v614
        %616 = vmatprep.mubr.f32.mxu0 0.0
        %617 = vmatmul.mubr.f32.gmra.mrb[0].mxu0 %v412
        %v618 = vpop.f32.mrb[0].mxu0
        %v619 = vadd.f32 %v353, %v618
        %v620 = vpop.f32.mrb[0].mxu0
        %v621 = vadd.f32 %v357, %v620
        %622 = vmatprep.mubr.f32.mxu0 0.0
        %623 = vmatmul.mubr.f32.gmra.mrb[0].mxu0 %v415
        %v624 = vpop.f32.mrb[0].mxu0
        %v625 = vadd.f32 %v353, %v624
        %v626 = vpop.f32.mrb[0].mxu0
        %v627 = vadd.f32 %v357, %v626
        %628 = vmatprep.mubr.f32.mxu0 0.0
        %629 = vmatmul.mubr.f32.gmra.mrb[0].mxu0 %v418
        %v630 = vpop.f32.mrb[0].mxu0
        %v631 = vadd.f32 %v353, %v630
        %v632 = vpop.f32.mrb[0].mxu0
        %v633 = vadd.f32 %v357, %v632
        %634 = vmatprep.mubr.f32.mxu0 0.0
        %635 = vmatmul.mubr.f32.gmra.mrb[0].mxu0 %v421
        %v636 = vpop.f32.mrb[0].mxu0
        %v637 = vadd.f32 %v353, %v636
        %v638 = vpop.f32.mrb[0].mxu0
        %v639 = vadd.f32 %v357, %v638
        %640 = vmatprep.mubr.f32.mxu0 0.0
        %641 = vmatmul.mubr.f32.gmra.mrb[0].mxu0 %v424
        %v642 = vpop.f32.mrb[0].mxu0
        %v643 = vadd.f32 %v353, %v642
        %v644 = vpop.f32.mrb[0].mxu0
        %v645 = vadd.f32 %v357, %v644
        %646 = vmatprep.mubr.f32.mxu0 0.0
        %647 = vmatmul.mubr.f32.gmra.mrb[0].mxu0 %v427
        %v648 = vpop.f32.mrb[0].mxu0
        %v649 = vadd.f32 %v353, %v648
        %v650 = vpop.f32.mrb[0].mxu0
        %v651 = vadd.f32 %v357, %v650
        %652 = vmatprep.mubr.f32.mxu0 0.0
        %653 = vmatmul.mubr.f32.gmra.mrb[0].mxu0 %v430
        %v654 = vpop.f32.mrb[0].mxu0
        %v655 = vadd.f32 %v353, %v654
        %v656 = vpop.f32.mrb[0].mxu0
        %v657 = vadd.f32 %v357, %v656
        %658 = vmatprep.mubr.f32.mxu0 0.0
        %659 = vmatmul.mubr.f32.gmra.mrb[0].mxu0 %v433
        %v660 = vpop.f32.mrb[0].mxu0
        %v661 = vadd.f32 %v353, %v660
        %v662 = vpop.f32.mrb[0].mxu0
        %v663 = vadd.f32 %v357, %v662
        %664 = vmatprep.mubr.f32.mxu0 0.0
        %665 = vmatmul.mubr.f32.gmra.mrb[0].mxu0 %v436
        %v666 = vpop.f32.mrb[0].mxu0
        %v667 = vadd.f32 %v353, %v666
        %v668 = vpop.f32.mrb[0].mxu0
        %v669 = vadd.f32 %v357, %v668
        %670 = vmatprep.mubr.f32.mxu0 0.0
        %671 = vmatmul.mubr.f32.gmra.mrb[0].mxu0 %v439
        %v672 = vpop.f32.mrb[0].mxu0
        %v673 = vadd.f32 %v353, %v672
        %v674 = vpop.f32.mrb[0].mxu0
        %v675 = vadd.f32 %v357, %v674
        %676 = vmatprep.mubr.f32.mxu0 0.0
        %677 = vmatmul.mubr.f32.gmra.mrb[0].mxu0 %v442
        %v678 = vpop.f32.mrb[0].mxu0
        %v679 = vadd.f32 %v353, %v678
        %v680 = vpop.f32.mrb[0].mxu0
        %v681 = vadd.f32 %v357, %v680
        %682 = vmatprep.mubr.f32.mxu0 0.0
        %683 = vmatmul.mubr.f32.gmra.mrb[0].mxu0 %v445
        %v684 = vpop.f32.mrb[0].mxu0
        %v685 = vadd.f32 %v353, %v684
        %v686 = vpop.f32.mrb[0].mxu0
        %v687 = vadd.f32 %v357, %v686
        %688 = vmatprep.mubr.f32.mxu0 0.0
        %689 = vmatmul.mubr.f32.gmra.mrb[0].mxu0 %v448
        %v690 = vpop.f32.mrb[0].mxu0
        %v691 = vadd.f32 %v353, %v690
        %v692 = vpop.f32.mrb[0].mxu0
        %v693 = vadd.f32 %v357, %v692
        %694 = vmatprep.mubr.f32.mxu0 0.0
        %695 = vmatmul.mubr.f32.gmra.mrb[0].mxu0 %v451
        %v696 = vpop.f32.mrb[0].mxu0
        %v697 = vadd.f32 %v353, %v696
        %v698 = vpop.f32.mrb[0].mxu0
        %v699 = vadd.f32 %v357, %v698
        %700 = vmatprep.mubr.f32.mxu0 0.0
        %701 = vmatmul.mubr.f32.gmra.mrb[0].mxu0 %v454
        %v702 = vpop.f32.mrb[0].mxu0
        %v703 = vadd.f32 %v353, %v702
        %v704 = vpop.f32.mrb[0].mxu0
        %v705 = vadd.f32 %v357, %v704
        %706 = vmatprep.mubr.f32.mxu0 0.0
        %707 = vmatmul.mubr.f32.gmra.mrb[0].mxu0 %v457
        %v708 = vpop.f32.mrb[0].mxu0
        %v709 = vadd.f32 %v353, %v708
        %v710 = vpop.f32.mrb[0].mxu0
        %v711 = vadd.f32 %v357, %v710
        %712 = vmatprep.mubr.f32.mxu0 0.0
        %713 = vmatmul.mubr.f32.gmra.mrb[0].mxu0 %v460
        %v714 = vpop.f32.mrb[0].mxu0
        %v715 = vadd.f32 %v353, %v714
        %v716 = vpop.f32.mrb[0].mxu0
        %v717 = vadd.f32 %v357, %v716
        %718 = vmatprep.mubr.f32.mxu0 0.0
        %719 = vmatmul.mubr.f32.gmra.mrb[0].mxu0 %v463
        %v720 = vpop.f32.mrb[0].mxu0
        %v721 = vadd.f32 %v353, %v720
        %v722 = vpop.f32.mrb[0].mxu0
        %v723 = vadd.f32 %v357, %v722
        %724 = vmatprep.mubr.f32.mxu0 0.0
        %725 = vmatmul.mubr.f32.gmra.mrb[0].mxu0 %v466
        %v726 = vpop.f32.mrb[0].mxu0
        %v727 = vadd.f32 %v353, %v726
        %v728 = vpop.f32.mrb[0].mxu0
        %v729 = vadd.f32 %v357, %v728
        %730 = vmatprep.mubr.f32.mxu0 0.0
        %731 = vmatmul.mubr.f32.gmra.mrb[0].mxu0 %v469
        %v732 = vpop.f32.mrb[0].mxu0
        %v733 = vadd.f32 %v353, %v732
        %v734 = vpop.f32.mrb[0].mxu0
        %v735 = vadd.f32 %v357, %v734
        %736 = vdwg.mxu0
        %737 = vmatprep.subr.mxu0 %v478
        %738 = vmatpush1.msra.mxu0 %v476
        %739 = vmatprep.subr.mxu0 0.0
        %740 = vmatpush1.msra.mxu0 0.0
        %741 = vmatprep.subr.mxu0 0.0
        %742 = vmatpush1.msra.mxu0 0.0
        %743 = vmatprep.subr.mxu0 0.0
        %744 = vmatpush1.msra.mxu0 0.0
        %745 = vmatprep.subr.mxu0 0.0
        %746 = vmatpush1.msra.mxu0 0.0
        %747 = vmatprep.subr.mxu0 0.0
        %748 = vmatpush1.msra.mxu0 0.0
        %749 = vmatprep.subr.mxu0 0.0
        %750 = vmatpush1.msra.mxu0 0.0
        %751 = vmatprep.subr.mxu0 0.0
        %752 = vmatpush1.msra.mxu0 0.0
        %753 = vmatprep.subr.mxu0 0.0
        %754 = vmatpush1.msra.mxu0 0.0
        %755 = vmatprep.subr.mxu0 0.0
        %756 = vmatpush1.msra.mxu0 0.0
        %757 = vmatprep.subr.mxu0 0.0
        %758 = vmatpush1.msra.mxu0 0.0
        %759 = vmatprep.subr.mxu0 0.0
        %760 = vmatpush1.msra.mxu0 0.0
        %761 = vmatprep.subr.mxu0 0.0
        %762 = vmatpush1.msra.mxu0 0.0
        %763 = vmatprep.subr.mxu0 0.0
        %764 = vmatpush1.msra.mxu0 0.0
        %765 = vmatprep.subr.mxu0 0.0
        %766 = vmatpush1.msra.mxu0 0.0
        %767 = vmatprep.subr.mxu0 0.0
        %768 = vmatpush1.msra.mxu0 0.0
        %769 = vmatprep.subr.mxu0 0.0
        %770 = vmatpush1.msra.mxu0 0.0
        %771 = vmatprep.subr.mxu0 0.0
        %772 = vmatpush1.msra.mxu0 0.0
        %773 = vmatprep.subr.mxu0 0.0
        %774 = vmatpush1.msra.mxu0 0.0
        %775 = vmatprep.subr.mxu0 0.0
        %776 = vmatpush1.msra.mxu0 0.0
        %777 = vmatprep.subr.mxu0 0.0
        %778 = vmatpush1.msra.mxu0 0.0
        %779 = vmatprep.subr.mxu0 0.0
        %780 = vmatpush1.msra.mxu0 0.0
        %781 = vmatprep.subr.mxu0 0.0
        %782 = vmatpush1.msra.mxu0 0.0
        %783 = vmatprep.subr.mxu0 0.0
        %784 = vmatpush1.msra.mxu0 0.0
        %785 = vmatprep.subr.mxu0 0.0
        %786 = vmatpush1.msra.mxu0 0.0
        %787 = vmatprep.subr.mxu0 0.0
        %788 = vmatpush1.msra.mxu0 0.0
        %789 = vmatprep.subr.mxu0 0.0
        %790 = vmatpush1.msra.mxu0 0.0
        %791 = vmatprep.subr.mxu0 0.0
        %792 = vmatpush1.msra.mxu0 0.0
        %793 = vmatprep.subr.mxu0 0.0
        %794 = vmatpush1.msra.mxu0 0.0
        %795 = vmatprep.subr.mxu0 0.0
        %796 = vmatpush1.msra.mxu0 0.0
        %797 = vmatprep.subr.mxu0 0.0
        %798 = vmatpush1.msra.mxu0 0.0
        %799 = vmatprep.subr.mxu0 0.0
        %800 = vmatpush1.msra.mxu0 0.0
        %801 = vmatprep.mubr.f32.mxu0 0.0
        %802 = vmatmul.mubr.f32.gmra.mrb[0].mxu0 %v376
        %v803 = vpop.f32.mrb[0].mxu0
        %v804 = vadd.f32 %v361, %v803
        %v805 = vpop.f32.mrb[0].mxu0
        %v806 = vadd.f32 %v365, %v805
        %807 = vmatprep.mubr.f32.mxu0 0.0
        %808 = vmatmul.mubr.f32.gmra.mrb[0].mxu0 %v379
        %v809 = vpop.f32.mrb[0].mxu0
        %v810 = vadd.f32 %v361, %v809
        %v811 = vpop.f32.mrb[0].mxu0
        %v812 = vadd.f32 %v365, %v811
        %813 = vmatprep.mubr.f32.mxu0 0.0
        %814 = vmatmul.mubr.f32.gmra.mrb[0].mxu0 %v382
        %v815 = vpop.f32.mrb[0].mxu0
        %v816 = vadd.f32 %v361, %v815
        %v817 = vpop.f32.mrb[0].mxu0
        %v818 = vadd.f32 %v365, %v817
        %819 = vmatprep.mubr.f32.mxu0 0.0
        %820 = vmatmul.mubr.f32.gmra.mrb[0].mxu0 %v385
        %v821 = vpop.f32.mrb[0].mxu0
        %v822 = vadd.f32 %v361, %v821
        %v823 = vpop.f32.mrb[0].mxu0
        %v824 = vadd.f32 %v365, %v823
        %825 = vmatprep.mubr.f32.mxu0 0.0
        %826 = vmatmul.mubr.f32.gmra.mrb[0].mxu0 %v388
        %v827 = vpop.f32.mrb[0].mxu0
        %v828 = vadd.f32 %v361, %v827
        %v829 = vpop.f32.mrb[0].mxu0
        %v830 = vadd.f32 %v365, %v829
        %831 = vmatprep.mubr.f32.mxu0 0.0
        %832 = vmatmul.mubr.f32.gmra.mrb[0].mxu0 %v391
        %v833 = vpop.f32.mrb[0].mxu0
        %v834 = vadd.f32 %v361, %v833
        %v835 = vpop.f32.mrb[0].mxu0
        %v836 = vadd.f32 %v365, %v835
        %837 = vmatprep.mubr.f32.mxu0 0.0
        %838 = vmatmul.mubr.f32.gmra.mrb[0].mxu0 %v394
        %v839 = vpop.f32.mrb[0].mxu0
        %v840 = vadd.f32 %v361, %v839
        %v841 = vpop.f32.mrb[0].mxu0
        %v842 = vadd.f32 %v365, %v841
        %843 = vmatprep.mubr.f32.mxu0 0.0
        %844 = vmatmul.mubr.f32.gmra.mrb[0].mxu0 %v397
        %v845 = vpop.f32.mrb[0].mxu0
        %v846 = vadd.f32 %v361, %v845
        %v847 = vpop.f32.mrb[0].mxu0
        %v848 = vadd.f32 %v365, %v847
        %849 = vmatprep.mubr.f32.mxu0 0.0
        %850 = vmatmul.mubr.f32.gmra.mrb[0].mxu0 %v400
        %v851 = vpop.f32.mrb[0].mxu0
        %v852 = vadd.f32 %v361, %v851
        %v853 = vpop.f32.mrb[0].mxu0
        %v854 = vadd.f32 %v365, %v853
        %855 = vmatprep.mubr.f32.mxu0 0.0
        %856 = vmatmul.mubr.f32.gmra.mrb[0].mxu0 %v403
        %v857 = vpop.f32.mrb[0].mxu0
        %v858 = vadd.f32 %v361, %v857
        %v859 = vpop.f32.mrb[0].mxu0
        %v860 = vadd.f32 %v365, %v859
        %861 = vmatprep.mubr.f32.mxu0 0.0
        %862 = vmatmul.mubr.f32.gmra.mrb[0].mxu0 %v406
        %v863 = vpop.f32.mrb[0].mxu0
        %v864 = vadd.f32 %v361, %v863
        %v865 = vpop.f32.mrb[0].mxu0
        %v866 = vadd.f32 %v365, %v865
        %867 = vmatprep.mubr.f32.mxu0 0.0
        %868 = vmatmul.mubr.f32.gmra.mrb[0].mxu0 %v409
        %v869 = vpop.f32.mrb[0].mxu0
        %v870 = vadd.f32 %v361, %v869
        %v871 = vpop.f32.mrb[0].mxu0
        %v872 = vadd.f32 %v365, %v871
        %873 = vmatprep.mubr.f32.mxu0 0.0
        %874 = vmatmul.mubr.f32.gmra.mrb[0].mxu0 %v412
        %v875 = vpop.f32.mrb[0].mxu0
        %v876 = vadd.f32 %v361, %v875
        %v877 = vpop.f32.mrb[0].mxu0
        %v878 = vadd.f32 %v365, %v877
        %879 = vmatprep.mubr.f32.mxu0 0.0
        %880 = vmatmul.mubr.f32.gmra.mrb[0].mxu0 %v415
        %v881 = vpop.f32.mrb[0].mxu0
        %v882 = vadd.f32 %v361, %v881
        %v883 = vpop.f32.mrb[0].mxu0
        %v884 = vadd.f32 %v365, %v883
        %885 = vmatprep.mubr.f32.mxu0 0.0
        %886 = vmatmul.mubr.f32.gmra.mrb[0].mxu0 %v418
        %v887 = vpop.f32.mrb[0].mxu0
        %v888 = vadd.f32 %v361, %v887
        %v889 = vpop.f32.mrb[0].mxu0
        %v890 = vadd.f32 %v365, %v889
        %891 = vmatprep.mubr.f32.mxu0 0.0
        %892 = vmatmul.mubr.f32.gmra.mrb[0].mxu0 %v421
        %v893 = vpop.f32.mrb[0].mxu0
        %v894 = vadd.f32 %v361, %v893
        %v895 = vpop.f32.mrb[0].mxu0
        %v896 = vadd.f32 %v365, %v895
        %897 = vmatprep.mubr.f32.mxu0 0.0
        %898 = vmatmul.mubr.f32.gmra.mrb[0].mxu0 %v424
        %v899 = vpop.f32.mrb[0].mxu0
        %v900 = vadd.f32 %v361, %v899
        %v901 = vpop.f32.mrb[0].mxu0
        %v902 = vadd.f32 %v365, %v901
        %903 = vmatprep.mubr.f32.mxu0 0.0
        %904 = vmatmul.mubr.f32.gmra.mrb[0].mxu0 %v427
        %v905 = vpop.f32.mrb[0].mxu0
        %v906 = vadd.f32 %v361, %v905
        %v907 = vpop.f32.mrb[0].mxu0
        %v908 = vadd.f32 %v365, %v907
        %909 = vmatprep.mubr.f32.mxu0 0.0
        %910 = vmatmul.mubr.f32.gmra.mrb[0].mxu0 %v430
        %v911 = vpop.f32.mrb[0].mxu0
        %v912 = vadd.f32 %v361, %v911
        %v913 = vpop.f32.mrb[0].mxu0
        %v914 = vadd.f32 %v365, %v913
        %915 = vmatprep.mubr.f32.mxu0 0.0
        %916 = vmatmul.mubr.f32.gmra.mrb[0].mxu0 %v433
        %v917 = vpop.f32.mrb[0].mxu0
        %v918 = vadd.f32 %v361, %v917
        %v919 = vpop.f32.mrb[0].mxu0
        %v920 = vadd.f32 %v365, %v919
        %921 = vmatprep.mubr.f32.mxu0 0.0
        %922 = vmatmul.mubr.f32.gmra.mrb[0].mxu0 %v436
        %v923 = vpop.f32.mrb[0].mxu0
        %v924 = vadd.f32 %v361, %v923
        %v925 = vpop.f32.mrb[0].mxu0
        %v926 = vadd.f32 %v365, %v925
        %927 = vmatprep.mubr.f32.mxu0 0.0
        %928 = vmatmul.mubr.f32.gmra.mrb[0].mxu0 %v439
        %v929 = vpop.f32.mrb[0].mxu0
        %v930 = vadd.f32 %v361, %v929
        %v931 = vpop.f32.mrb[0].mxu0
        %v932 = vadd.f32 %v365, %v931
        %933 = vmatprep.mubr.f32.mxu0 0.0
        %934 = vmatmul.mubr.f32.gmra.mrb[0].mxu0 %v442
        %v935 = vpop.f32.mrb[0].mxu0
        %v936 = vadd.f32 %v361, %v935
        %v937 = vpop.f32.mrb[0].mxu0
        %v938 = vadd.f32 %v365, %v937
        %939 = vmatprep.mubr.f32.mxu0 0.0
        %940 = vmatmul.mubr.f32.gmra.mrb[0].mxu0 %v445
        %v941 = vpop.f32.mrb[0].mxu0
        %v942 = vadd.f32 %v361, %v941
        %v943 = vpop.f32.mrb[0].mxu0
        %v944 = vadd.f32 %v365, %v943
        %945 = vmatprep.mubr.f32.mxu0 0.0
        %946 = vmatmul.mubr.f32.gmra.mrb[0].mxu0 %v448
        %v947 = vpop.f32.mrb[0].mxu0
        %v948 = vadd.f32 %v361, %v947
        %v949 = vpop.f32.mrb[0].mxu0
        %v950 = vadd.f32 %v365, %v949
        %951 = vmatprep.mubr.f32.mxu0 0.0
        %952 = vmatmul.mubr.f32.gmra.mrb[0].mxu0 %v451
        %v953 = vpop.f32.mrb[0].mxu0
        %v954 = vadd.f32 %v361, %v953
        %v955 = vpop.f32.mrb[0].mxu0
        %v956 = vadd.f32 %v365, %v955
        %957 = vmatprep.mubr.f32.mxu0 0.0
        %958 = vmatmul.mubr.f32.gmra.mrb[0].mxu0 %v454
        %v959 = vpop.f32.mrb[0].mxu0
        %v960 = vadd.f32 %v361, %v959
        %v961 = vpop.f32.mrb[0].mxu0
        %v962 = vadd.f32 %v365, %v961
        %963 = vmatprep.mubr.f32.mxu0 0.0
        %964 = vmatmul.mubr.f32.gmra.mrb[0].mxu0 %v457
        %v965 = vpop.f32.mrb[0].mxu0
        %v966 = vadd.f32 %v361, %v965
        %v967 = vpop.f32.mrb[0].mxu0
        %v968 = vadd.f32 %v365, %v967
        %969 = vmatprep.mubr.f32.mxu0 0.0
        %970 = vmatmul.mubr.f32.gmra.mrb[0].mxu0 %v460
        %v971 = vpop.f32.mrb[0].mxu0
        %v972 = vadd.f32 %v361, %v971
        %v973 = vpop.f32.mrb[0].mxu0
        %v974 = vadd.f32 %v365, %v973
        %975 = vmatprep.mubr.f32.mxu0 0.0
        %976 = vmatmul.mubr.f32.gmra.mrb[0].mxu0 %v463
        %v977 = vpop.f32.mrb[0].mxu0
        %v978 = vadd.f32 %v361, %v977
        %v979 = vpop.f32.mrb[0].mxu0
        %v980 = vadd.f32 %v365, %v979
        %981 = vmatprep.mubr.f32.mxu0 0.0
        %982 = vmatmul.mubr.f32.gmra.mrb[0].mxu0 %v466
        %v983 = vpop.f32.mrb[0].mxu0
        %v984 = vadd.f32 %v361, %v983
        %v985 = vpop.f32.mrb[0].mxu0
        %v986 = vadd.f32 %v365, %v985
        %987 = vmatprep.mubr.f32.mxu0 0.0
        %988 = vmatmul.mubr.f32.gmra.mrb[0].mxu0 %v469
        %v989 = vpop.f32.mrb[0].mxu0
        %v990 = vadd.f32 %v361, %v989
        %v991 = vpop.f32.mrb[0].mxu0
        %v992 = vadd.f32 %v365, %v991
        %993 = vdwg.mxu0
        %994 = vst [vmem:[#allocation4] sm:$0xff] %v547
        %995 = vst [vmem:[#allocation4 + $0x8] sm:$0xff] %v549
        %996 = vst [vmem:[#allocation4 + $0x10] sm:$0xff] %v804
        %997 = vst [vmem:[#allocation4 + $0x18] sm:$0xff] %v806
        %998 = vst [vmem:[#allocation4 + $0x20] sm:$0xff] %v553
        %999 = vst [vmem:[#allocation4 + $0x28] sm:$0xff] %v555
        %1000 = vst [vmem:[#allocation4 + $0x30] sm:$0xff] %v810
        %1001 = vst [vmem:[#allocation4 + $0x38] sm:$0xff] %v812
        %1002 = vst [vmem:[#allocation4 + $0x40] sm:$0xff] %v559
        %1003 = vst [vmem:[#allocation4 + $0x48] sm:$0xff] %v561
        %1004 = vst [vmem:[#allocation4 + $0x50] sm:$0xff] %v816
        %1005 = vst [vmem:[#allocation4 + $0x58] sm:$0xff] %v818
        %1006 = vst [vmem:[#allocation4 + $0x60] sm:$0xff] %v565
        %1007 = vst [vmem:[#allocation4 + $0x68] sm:$0xff] %v567
        %1008 = vst [vmem:[#allocation4 + $0x70] sm:$0xff] %v822
        %1009 = vst [vmem:[#allocation4 + $0x78] sm:$0xff] %v824
        %1010 = vst [vmem:[#allocation4 + $0x80] sm:$0xff] %v571
        %1011 = vst [vmem:[#allocation4 + $0x88] sm:$0xff] %v573
        %1012 = vst [vmem:[#allocation4 + $0x90] sm:$0xff] %v828
        %1013 = vst [vmem:[#allocation4 + $0x98] sm:$0xff] %v830
        %1014 = vst [vmem:[#allocation4 + $0xa0] sm:$0xff] %v577
        %1015 = vst [vmem:[#allocation4 + $0xa8] sm:$0xff] %v579
        %1016 = vst [vmem:[#allocation4 + $0xb0] sm:$0xff] %v834
        %1017 = vst [vmem:[#allocation4 + $0xb8] sm:$0xff] %v836
        %1018 = vst [vmem:[#allocation4 + $0xc0] sm:$0xff] %v583
        %1019 = vst [vmem:[#allocation4 + $0xc8] sm:$0xff] %v585
        %1020 = vst [vmem:[#allocation4 + $0xd0] sm:$0xff] %v840
        %1021 = vst [vmem:[#allocation4 + $0xd8] sm:$0xff] %v842
        %1022 = vst [vmem:[#allocation4 + $0xe0] sm:$0xff] %v589
        %1023 = vst [vmem:[#allocation4 + $0xe8] sm:$0xff] %v591
        %1024 = vst [vmem:[#allocation4 + $0xf0] sm:$0xff] %v846
        %1025 = vst [vmem:[#allocation4 + $0xf8] sm:$0xff] %v848
        %1026 = vst [vmem:[#allocation4 + $0x100] sm:$0xff] %v595
        %1027 = vst [vmem:[#allocation4 + $0x108] sm:$0xff] %v597
        %1028 = vst [vmem:[#allocation4 + $0x110] sm:$0xff] %v852
        %1029 = vst [vmem:[#allocation4 + $0x118] sm:$0xff] %v854
        %1030 = vst [vmem:[#allocation4 + $0x120] sm:$0xff] %v601
        %1031 = vst [vmem:[#allocation4 + $0x128] sm:$0xff] %v603
        %1032 = vst [vmem:[#allocation4 + $0x130] sm:$0xff] %v858
        %1033 = vst [vmem:[#allocation4 + $0x138] sm:$0xff] %v860
        %1034 = vst [vmem:[#allocation4 + $0x140] sm:$0xff] %v607
        %1035 = vst [vmem:[#allocation4 + $0x148] sm:$0xff] %v609
        %1036 = vst [vmem:[#allocation4 + $0x150] sm:$0xff] %v864
        %1037 = vst [vmem:[#allocation4 + $0x158] sm:$0xff] %v866
        %1038 = vst [vmem:[#allocation4 + $0x160] sm:$0xff] %v613
        %1039 = vst [vmem:[#allocation4 + $0x168] sm:$0xff] %v615
        %1040 = vst [vmem:[#allocation4 + $0x170] sm:$0xff] %v870
        %1041 = vst [vmem:[#allocation4 + $0x178] sm:$0xff] %v872
        %1042 = vst [vmem:[#allocation4 + $0x180] sm:$0xff] %v619
        %1043 = vst [vmem:[#allocation4 + $0x188] sm:$0xff] %v621
        %1044 = vst [vmem:[#allocation4 + $0x190] sm:$0xff] %v876
        %1045 = vst [vmem:[#allocation4 + $0x198] sm:$0xff] %v878
        %1046 = vst [vmem:[#allocation4 + $0x1a0] sm:$0xff] %v625
        %1047 = vst [vmem:[#allocation4 + $0x1a8] sm:$0xff] %v627
        %1048 = vst [vmem:[#allocation4 + $0x1b0] sm:$0xff] %v882
        %1049 = vst [vmem:[#allocation4 + $0x1b8] sm:$0xff] %v884
        %1050 = vst [vmem:[#allocation4 + $0x1c0] sm:$0xff] %v631
        %1051 = vst [vmem:[#allocation4 + $0x1c8] sm:$0xff] %v633
        %1052 = vst [vmem:[#allocation4 + $0x1d0] sm:$0xff] %v888
        %1053 = vst [vmem:[#allocation4 + $0x1d8] sm:$0xff] %v890
        %1054 = vst [vmem:[#allocation4 + $0x1e0] sm:$0xff] %v637
        %1055 = vst [vmem:[#allocation4 + $0x1e8] sm:$0xff] %v639
        %1056 = vst [vmem:[#allocation4 + $0x1f0] sm:$0xff] %v894
        %1057 = vst [vmem:[#allocation4 + $0x1f8] sm:$0xff] %v896
        %1058 = vst [vmem:[#allocation4 + $0x200] sm:$0xff] %v643
        %1059 = vst [vmem:[#allocation4 + $0x208] sm:$0xff] %v645
        %1060 = vst [vmem:[#allocation4 + $0x210] sm:$0xff] %v900
        %1061 = vst [vmem:[#allocation4 + $0x218] sm:$0xff] %v902
        %1062 = vst [vmem:[#allocation4 + $0x220] sm:$0xff] %v649
        %1063 = vst [vmem:[#allocation4 + $0x228] sm:$0xff] %v651
        %1064 = vst [vmem:[#allocation4 + $0x230] sm:$0xff] %v906
        %1065 = vst [vmem:[#allocation4 + $0x238] sm:$0xff] %v908
        %1066 = vst [vmem:[#allocation4 + $0x240] sm:$0xff] %v655
        %1067 = vst [vmem:[#allocation4 + $0x248] sm:$0xff] %v657
        %1068 = vst [vmem:[#allocation4 + $0x250] sm:$0xff] %v912
        %1069 = vst [vmem:[#allocation4 + $0x258] sm:$0xff] %v914
        %1070 = vst [vmem:[#allocation4 + $0x260] sm:$0xff] %v661
        %1071 = vst [vmem:[#allocation4 + $0x268] sm:$0xff] %v663
        %1072 = vst [vmem:[#allocation4 + $0x270] sm:$0xff] %v918
        %1073 = vst [vmem:[#allocation4 + $0x278] sm:$0xff] %v920
        %1074 = vst [vmem:[#allocation4 + $0x280] sm:$0xff] %v667
        %1075 = vst [vmem:[#allocation4 + $0x288] sm:$0xff] %v669
        %1076 = vst [vmem:[#allocation4 + $0x290] sm:$0xff] %v924
        %1077 = vst [vmem:[#allocation4 + $0x298] sm:$0xff] %v926
        %1078 = vst [vmem:[#allocation4 + $0x2a0] sm:$0xff] %v673
        %1079 = vst [vmem:[#allocation4 + $0x2a8] sm:$0xff] %v675
        %1080 = vst [vmem:[#allocation4 + $0x2b0] sm:$0xff] %v930
        %1081 = vst [vmem:[#allocation4 + $0x2b8] sm:$0xff] %v932
        %1082 = vst [vmem:[#allocation4 + $0x2c0] sm:$0xff] %v679
        %1083 = vst [vmem:[#allocation4 + $0x2c8] sm:$0xff] %v681
        %1084 = vst [vmem:[#allocation4 + $0x2d0] sm:$0xff] %v936
        %1085 = vst [vmem:[#allocation4 + $0x2d8] sm:$0xff] %v938
        %1086 = vst [vmem:[#allocation4 + $0x2e0] sm:$0xff] %v685
        %1087 = vst [vmem:[#allocation4 + $0x2e8] sm:$0xff] %v687
        %1088 = vst [vmem:[#allocation4 + $0x2f0] sm:$0xff] %v942
        %1089 = vst [vmem:[#allocation4 + $0x2f8] sm:$0xff] %v944
        %1090 = vst [vmem:[#allocation4 + $0x300] sm:$0xff] %v691
        %1091 = vst [vmem:[#allocation4 + $0x308] sm:$0xff] %v693
        %1092 = vst [vmem:[#allocation4 + $0x310] sm:$0xff] %v948
        %1093 = vst [vmem:[#allocation4 + $0x318] sm:$0xff] %v950
        %1094 = vst [vmem:[#allocation4 + $0x320] sm:$0xff] %v697
        %1095 = vst [vmem:[#allocation4 + $0x328] sm:$0xff] %v699
        %1096 = vst [vmem:[#allocation4 + $0x330] sm:$0xff] %v954
        %1097 = vst [vmem:[#allocation4 + $0x338] sm:$0xff] %v956
        %1098 = vst [vmem:[#allocation4 + $0x340] sm:$0xff] %v703
        %1099 = vst [vmem:[#allocation4 + $0x348] sm:$0xff] %v705
        %1100 = vst [vmem:[#allocation4 + $0x350] sm:$0xff] %v960
        %1101 = vst [vmem:[#allocation4 + $0x358] sm:$0xff] %v962
        %1102 = vst [vmem:[#allocation4 + $0x360] sm:$0xff] %v709
        %1103 = vst [vmem:[#allocation4 + $0x368] sm:$0xff] %v711
        %1104 = vst [vmem:[#allocation4 + $0x370] sm:$0xff] %v966
        %1105 = vst [vmem:[#allocation4 + $0x378] sm:$0xff] %v968
        %1106 = vst [vmem:[#allocation4 + $0x380] sm:$0xff] %v715
        %1107 = vst [vmem:[#allocation4 + $0x388] sm:$0xff] %v717
        %1108 = vst [vmem:[#allocation4 + $0x390] sm:$0xff] %v972
        %1109 = vst [vmem:[#allocation4 + $0x398] sm:$0xff] %v974
        %1110 = vst [vmem:[#allocation4 + $0x3a0] sm:$0xff] %v721
        %1111 = vst [vmem:[#allocation4 + $0x3a8] sm:$0xff] %v723
        %1112 = vst [vmem:[#allocation4 + $0x3b0] sm:$0xff] %v978
        %1113 = vst [vmem:[#allocation4 + $0x3b8] sm:$0xff] %v980
        %1114 = vst [vmem:[#allocation4 + $0x3c0] sm:$0xff] %v727
        %1115 = vst [vmem:[#allocation4 + $0x3c8] sm:$0xff] %v729
        %1116 = vst [vmem:[#allocation4 + $0x3d0] sm:$0xff] %v984
        %1117 = vst [vmem:[#allocation4 + $0x3d8] sm:$0xff] %v986
        %1118 = vst [vmem:[#allocation4 + $0x3e0] sm:$0xff] %v733
        %1119 = vst [vmem:[#allocation4 + $0x3e8] sm:$0xff] %v735
        %1120 = vst [vmem:[#allocation4 + $0x3f0] sm:$0xff] %v990
        %1121 = vst [vmem:[#allocation4 + $0x3f8] sm:$0xff] %v992
        %s1122 = smul.u32 0, 4
        %s1123 = smul.addr %s1122, 8
        %s1124 = scalar_lea.vmem [#allocation4], %s1123
        %v1125 = vld [vmem:[%s1124] sm:$0xff]
        %v1126 = vld [vmem:[%s1124 + $0x8] sm:$0xff]
        %v1127 = vld [vmem:[%s1124 + $0x10] sm:$0xff]
        %v1128 = vld [vmem:[%s1124 + $0x18] sm:$0xff]
        %v1129 = vld [vmem:[%s1124 + $0x20] sm:$0xff]
        %v1130 = vld [vmem:[%s1124 + $0x28] sm:$0xff]
        %v1131 = vld [vmem:[%s1124 + $0x30] sm:$0xff]
        %v1132 = vld [vmem:[%s1124 + $0x38] sm:$0xff]
        %v1133 = vld [vmem:[%s1124 + $0x40] sm:$0xff]
        %v1134 = vld [vmem:[%s1124 + $0x48] sm:$0xff]
        %v1135 = vld [vmem:[%s1124 + $0x50] sm:$0xff]
        %v1136 = vld [vmem:[%s1124 + $0x58] sm:$0xff]
        %v1137 = vld [vmem:[%s1124 + $0x60] sm:$0xff]
        %v1138 = vld [vmem:[%s1124 + $0x68] sm:$0xff]
        %v1139 = vld [vmem:[%s1124 + $0x70] sm:$0xff]
        %v1140 = vld [vmem:[%s1124 + $0x78] sm:$0xff]
        %v1141 = vld [vmem:[#allocation2] sm:$0xff]
        %v1142 = vld [vmem:[#allocation2 + $0x8] sm:$0xff]
        %v1143 = vld [vmem:[#allocation2 + $0x10] sm:$0xff]
        %v1144 = vld [vmem:[#allocation2 + $0x18] sm:$0xff]
        %v1145 = vld [vmem:[%s2] sm:$0xff]
        %v1146 = vld [vmem:[%s2 + $0x8] sm:$0xff]
        %v1147 = vld [vmem:[%s2 + $0x10] sm:$0xff]
        %v1148 = vld [vmem:[%s2 + $0x18] sm:$0xff]
        %v1149 = vld [vmem:[%s2 + $0x20] sm:$0xff]
        %v1150 = vld [vmem:[%s2 + $0x28] sm:$0xff]
        %v1151 = vld [vmem:[%s2 + $0x30] sm:$0xff]
        %v1152 = vld [vmem:[%s2 + $0x38] sm:$0xff]
        %v1153 = vld [vmem:[%s2 + $0x40] sm:$0xff]
        %v1154 = vld [vmem:[%s2 + $0x48] sm:$0xff]
        %v1155 = vld [vmem:[%s2 + $0x50] sm:$0xff]
        %v1156 = vld [vmem:[%s2 + $0x58] sm:$0xff]
        %v1157 = vld [vmem:[%s2 + $0x60] sm:$0xff]
        %v1158 = vld [vmem:[%s2 + $0x68] sm:$0xff]
        %v1159 = vld [vmem:[%s2 + $0x70] sm:$0xff]
        %v1160 = vld [vmem:[%s2 + $0x78] sm:$0xff]
        %v1161 = vld [vmem:[%s2 + $0x80] sm:$0xff]
        %v1162 = vld [vmem:[%s2 + $0x88] sm:$0xff]
        %v1163 = vld [vmem:[%s2 + $0x90] sm:$0xff]
        %v1164 = vld [vmem:[%s2 + $0x98] sm:$0xff]
        %v1165 = vld [vmem:[%s2 + $0xa0] sm:$0xff]
        %v1166 = vld [vmem:[%s2 + $0xa8] sm:$0xff]
        %v1167 = vld [vmem:[%s2 + $0xb0] sm:$0xff]
        %v1168 = vld [vmem:[%s2 + $0xb8] sm:$0xff]
        %v1169 = vld [vmem:[%s2 + $0xc0] sm:$0xff]
        %v1170 = vld [vmem:[%s2 + $0xc8] sm:$0xff]
        %v1171 = vld [vmem:[%s2 + $0xd0] sm:$0xff]
        %v1172 = vld [vmem:[%s2 + $0xd8] sm:$0xff]
        %v1173 = vld [vmem:[%s2 + $0xe0] sm:$0xff]
        %v1174 = vld [vmem:[%s2 + $0xe8] sm:$0xff]
        %v1175 = vld [vmem:[%s2 + $0xf0] sm:$0xff]
        %v1176 = vld [vmem:[%s2 + $0xf8] sm:$0xff]
        %v1177 = vld [vmem:[%s2 + $0x100] sm:$0xff]
        %v1178 = vld [vmem:[%s2 + $0x108] sm:$0xff]
        %v1179 = vld [vmem:[%s2 + $0x110] sm:$0xff]
        %v1180 = vld [vmem:[%s2 + $0x118] sm:$0xff]
        %v1181 = vld [vmem:[%s2 + $0x120] sm:$0xff]
        %v1182 = vld [vmem:[%s2 + $0x128] sm:$0xff]
        %v1183 = vld [vmem:[%s2 + $0x130] sm:$0xff]
        %v1184 = vld [vmem:[%s2 + $0x138] sm:$0xff]
        %v1185 = vld [vmem:[%s2 + $0x140] sm:$0xff]
        %v1186 = vld [vmem:[%s2 + $0x148] sm:$0xff]
        %v1187 = vld [vmem:[%s2 + $0x150] sm:$0xff]
        %v1188 = vld [vmem:[%s2 + $0x158] sm:$0xff]
        %v1189 = vld [vmem:[%s2 + $0x160] sm:$0xff]
        %v1190 = vld [vmem:[%s2 + $0x168] sm:$0xff]
        %v1191 = vld [vmem:[%s2 + $0x170] sm:$0xff]
        %v1192 = vld [vmem:[%s2 + $0x178] sm:$0xff]
        %v1193 = vld [vmem:[%s2 + $0x180] sm:$0xff]
        %v1194 = vld [vmem:[%s2 + $0x188] sm:$0xff]
        %v1195 = vld [vmem:[%s2 + $0x190] sm:$0xff]
        %v1196 = vld [vmem:[%s2 + $0x198] sm:$0xff]
        %v1197 = vld [vmem:[%s2 + $0x1a0] sm:$0xff]
        %v1198 = vld [vmem:[%s2 + $0x1a8] sm:$0xff]
        %v1199 = vld [vmem:[%s2 + $0x1b0] sm:$0xff]
        %v1200 = vld [vmem:[%s2 + $0x1b8] sm:$0xff]
        %v1201 = vld [vmem:[%s2 + $0x1c0] sm:$0xff]
        %v1202 = vld [vmem:[%s2 + $0x1c8] sm:$0xff]
        %v1203 = vld [vmem:[%s2 + $0x1d0] sm:$0xff]
        %v1204 = vld [vmem:[%s2 + $0x1d8] sm:$0xff]
        %v1205 = vld [vmem:[%s2 + $0x1e0] sm:$0xff]
        %v1206 = vld [vmem:[%s2 + $0x1e8] sm:$0xff]
        %v1207 = vld [vmem:[%s2 + $0x1f0] sm:$0xff]
        %v1208 = vld [vmem:[%s2 + $0x1f8] sm:$0xff]
        %1209 = vmatprep.subr.mxu0 %v1146
        %1210 = vmatpush1.msra.mxu0 %v1145
        %1211 = vmatprep.subr.mxu0 %v1150
        %1212 = vmatpush1.msra.mxu0 %v1149
        %1213 = vmatprep.subr.mxu0 %v1154
        %1214 = vmatpush1.msra.mxu0 %v1153
        %1215 = vmatprep.subr.mxu0 %v1158
        %1216 = vmatpush1.msra.mxu0 %v1157
        %1217 = vmatprep.subr.mxu0 %v1162
        %1218 = vmatpush1.msra.mxu0 %v1161
        %1219 = vmatprep.subr.mxu0 %v1166
        %1220 = vmatpush1.msra.mxu0 %v1165
        %1221 = vmatprep.subr.mxu0 %v1170
        %1222 = vmatpush1.msra.mxu0 %v1169
        %1223 = vmatprep.subr.mxu0 %v1174
        %1224 = vmatpush1.msra.mxu0 %v1173
        %1225 = vmatprep.subr.mxu0 %v1178
        %1226 = vmatpush1.msra.mxu0 %v1177
        %1227 = vmatprep.subr.mxu0 %v1182
        %1228 = vmatpush1.msra.mxu0 %v1181
        %1229 = vmatprep.subr.mxu0 %v1186
        %1230 = vmatpush1.msra.mxu0 %v1185
        %1231 = vmatprep.subr.mxu0 %v1190
        %1232 = vmatpush1.msra.mxu0 %v1189
        %1233 = vmatprep.subr.mxu0 %v1194
        %1234 = vmatpush1.msra.mxu0 %v1193
        %1235 = vmatprep.subr.mxu0 %v1198
        %1236 = vmatpush1.msra.mxu0 %v1197
        %1237 = vmatprep.subr.mxu0 %v1202
        %1238 = vmatpush1.msra.mxu0 %v1201
        %1239 = vmatprep.subr.mxu0 %v1206
        %1240 = vmatpush1.msra.mxu0 %v1205
        %1241 = vmatprep.subr.mxu0 0.0
        %1242 = vmatpush1.msra.mxu0 0.0
        %1243 = vmatprep.subr.mxu0 0.0
        %1244 = vmatpush1.msra.mxu0 0.0
        %1245 = vmatprep.subr.mxu0 0.0
        %1246 = vmatpush1.msra.mxu0 0.0
        %1247 = vmatprep.subr.mxu0 0.0
        %1248 = vmatpush1.msra.mxu0 0.0
        %1249 = vmatprep.subr.mxu0 0.0
        %1250 = vmatpush1.msra.mxu0 0.0
        %1251 = vmatprep.subr.mxu0 0.0
        %1252 = vmatpush1.msra.mxu0 0.0
        %1253 = vmatprep.subr.mxu0 0.0
        %1254 = vmatpush1.msra.mxu0 0.0
        %1255 = vmatprep.subr.mxu0 0.0
        %1256 = vmatpush1.msra.mxu0 0.0
        %1257 = vmatprep.subr.mxu0 0.0
        %1258 = vmatpush1.msra.mxu0 0.0
        %1259 = vmatprep.subr.mxu0 0.0
        %1260 = vmatpush1.msra.mxu0 0.0
        %1261 = vmatprep.subr.mxu0 0.0
        %1262 = vmatpush1.msra.mxu0 0.0
        %1263 = vmatprep.subr.mxu0 0.0
        %1264 = vmatpush1.msra.mxu0 0.0
        %1265 = vmatprep.subr.mxu0 0.0
        %1266 = vmatpush1.msra.mxu0 0.0
        %1267 = vmatprep.subr.mxu0 0.0
        %1268 = vmatpush1.msra.mxu0 0.0
        %1269 = vmatprep.subr.mxu0 0.0
        %1270 = vmatpush1.msra.mxu0 0.0
        %1271 = vmatprep.subr.mxu0 0.0
        %1272 = vmatpush1.msra.mxu0 0.0
        %1273 = vmatprep.mubr.f32.mxu0 0.0
        %1274 = vmatmul.mubr.f32.gmra.mrb[0].mxu0 %v1141
        %v1275 = vpop.f32.mrb[0].mxu0
        %v1276 = vadd.f32 0.0, %v1275
        %v1277 = vpop.f32.mrb[0].mxu0
        %v1278 = vadd.f32 0.0, %v1277
        %1279 = vmatprep.mubr.f32.mxu0 0.0
        %1280 = vmatmul.mubr.f32.gmra.mrb[0].mxu0 %v1142
        %v1281 = vpop.f32.mrb[0].mxu0
        %v1282 = vadd.f32 0.0, %v1281
        %v1283 = vpop.f32.mrb[0].mxu0
        %v1284 = vadd.f32 0.0, %v1283
        %1285 = vmatprep.mubr.f32.mxu0 0.0
        %1286 = vmatmul.mubr.f32.gmra.mrb[0].mxu0 %v1143
        %v1287 = vpop.f32.mrb[0].mxu0
        %v1288 = vadd.f32 0.0, %v1287
        %v1289 = vpop.f32.mrb[0].mxu0
        %v1290 = vadd.f32 0.0, %v1289
        %1291 = vmatprep.mubr.f32.mxu0 0.0
        %1292 = vmatmul.mubr.f32.gmra.mrb[0].mxu0 %v1144
        %v1293 = vpop.f32.mrb[0].mxu0
        %v1294 = vadd.f32 0.0, %v1293
        %v1295 = vpop.f32.mrb[0].mxu0
        %v1296 = vadd.f32 0.0, %v1295
        %1297 = vdwg.mxu0
        %1298 = vmatprep.subr.mxu0 %v1148
        %1299 = vmatpush1.msra.mxu0 %v1147
        %1300 = vmatprep.subr.mxu0 %v1152
        %1301 = vmatpush1.msra.mxu0 %v1151
        %1302 = vmatprep.subr.mxu0 %v1156
        %1303 = vmatpush1.msra.mxu0 %v1155
        %1304 = vmatprep.subr.mxu0 %v1160
        %1305 = vmatpush1.msra.mxu0 %v1159
        %1306 = vmatprep.subr.mxu0 %v1164
        %1307 = vmatpush1.msra.mxu0 %v1163
        %1308 = vmatprep.subr.mxu0 %v1168
        %1309 = vmatpush1.msra.mxu0 %v1167
        %1310 = vmatprep.subr.mxu0 %v1172
        %1311 = vmatpush1.msra.mxu0 %v1171
        %1312 = vmatprep.subr.mxu0 %v1176
        %1313 = vmatpush1.msra.mxu0 %v1175
        %1314 = vmatprep.subr.mxu0 %v1180
        %1315 = vmatpush1.msra.mxu0 %v1179
        %1316 = vmatprep.subr.mxu0 %v1184
        %1317 = vmatpush1.msra.mxu0 %v1183
        %1318 = vmatprep.subr.mxu0 %v1188
        %1319 = vmatpush1.msra.mxu0 %v1187
        %1320 = vmatprep.subr.mxu0 %v1192
        %1321 = vmatpush1.msra.mxu0 %v1191
        %1322 = vmatprep.subr.mxu0 %v1196
        %1323 = vmatpush1.msra.mxu0 %v1195
        %1324 = vmatprep.subr.mxu0 %v1200
        %1325 = vmatpush1.msra.mxu0 %v1199
        %1326 = vmatprep.subr.mxu0 %v1204
        %1327 = vmatpush1.msra.mxu0 %v1203
        %1328 = vmatprep.subr.mxu0 %v1208
        %1329 = vmatpush1.msra.mxu0 %v1207
        %1330 = vmatprep.subr.mxu0 0.0
        %1331 = vmatpush1.msra.mxu0 0.0
        %1332 = vmatprep.subr.mxu0 0.0
        %1333 = vmatpush1.msra.mxu0 0.0
        %1334 = vmatprep.subr.mxu0 0.0
        %1335 = vmatpush1.msra.mxu0 0.0
        %1336 = vmatprep.subr.mxu0 0.0
        %1337 = vmatpush1.msra.mxu0 0.0
        %1338 = vmatprep.subr.mxu0 0.0
        %1339 = vmatpush1.msra.mxu0 0.0
        %1340 = vmatprep.subr.mxu0 0.0
        %1341 = vmatpush1.msra.mxu0 0.0
        %1342 = vmatprep.subr.mxu0 0.0
        %1343 = vmatpush1.msra.mxu0 0.0
        %1344 = vmatprep.subr.mxu0 0.0
        %1345 = vmatpush1.msra.mxu0 0.0
        %1346 = vmatprep.subr.mxu0 0.0
        %1347 = vmatpush1.msra.mxu0 0.0
        %1348 = vmatprep.subr.mxu0 0.0
        %1349 = vmatpush1.msra.mxu0 0.0
        %1350 = vmatprep.subr.mxu0 0.0
        %1351 = vmatpush1.msra.mxu0 0.0
        %1352 = vmatprep.subr.mxu0 0.0
        %1353 = vmatpush1.msra.mxu0 0.0
        %1354 = vmatprep.subr.mxu0 0.0
        %1355 = vmatpush1.msra.mxu0 0.0
        %1356 = vmatprep.subr.mxu0 0.0
        %1357 = vmatpush1.msra.mxu0 0.0
        %1358 = vmatprep.subr.mxu0 0.0
        %1359 = vmatpush1.msra.mxu0 0.0
        %1360 = vmatprep.subr.mxu0 0.0
        %1361 = vmatpush1.msra.mxu0 0.0
        %1362 = vmatprep.mubr.f32.mxu0 0.0
        %1363 = vmatmul.mubr.f32.gmra.mrb[0].mxu0 %v1141
        %v1364 = vpop.f32.mrb[0].mxu0
        %v1365 = vadd.f32 0.0, %v1364
        %v1366 = vpop.f32.mrb[0].mxu0
        %v1367 = vadd.f32 0.0, %v1366
        %1368 = vmatprep.mubr.f32.mxu0 0.0
        %1369 = vmatmul.mubr.f32.gmra.mrb[0].mxu0 %v1142
        %v1370 = vpop.f32.mrb[0].mxu0
        %v1371 = vadd.f32 0.0, %v1370
        %v1372 = vpop.f32.mrb[0].mxu0
        %v1373 = vadd.f32 0.0, %v1372
        %1374 = vmatprep.mubr.f32.mxu0 0.0
        %1375 = vmatmul.mubr.f32.gmra.mrb[0].mxu0 %v1143
        %v1376 = vpop.f32.mrb[0].mxu0
        %v1377 = vadd.f32 0.0, %v1376
        %v1378 = vpop.f32.mrb[0].mxu0
        %v1379 = vadd.f32 0.0, %v1378
        %1380 = vmatprep.mubr.f32.mxu0 0.0
        %1381 = vmatmul.mubr.f32.gmra.mrb[0].mxu0 %v1144
        %v1382 = vpop.f32.mrb[0].mxu0
        %v1383 = vadd.f32 0.0, %v1382
        %v1384 = vpop.f32.mrb[0].mxu0
        %v1385 = vadd.f32 0.0, %v1384
        %1386 = vdwg.mxu0
        %v1387 = vadd.f32 %v1125, %v1276
        %v1388 = vadd.f32 %v1126, %v1278
        %v1389 = vadd.f32 %v1127, %v1365
        %v1390 = vadd.f32 %v1128, %v1367
        %v1391 = vadd.f32 %v1129, %v1282
        %v1392 = vadd.f32 %v1130, %v1284
        %v1393 = vadd.f32 %v1131, %v1371
        %v1394 = vadd.f32 %v1132, %v1373
        %v1395 = vadd.f32 %v1133, %v1288
        %v1396 = vadd.f32 %v1134, %v1290
        %v1397 = vadd.f32 %v1135, %v1377
        %v1398 = vadd.f32 %v1136, %v1379
        %v1399 = vadd.f32 %v1137, %v1294
        %v1400 = vadd.f32 %v1138, %v1296
        %v1401 = vadd.f32 %v1139, %v1383
        %v1402 = vadd.f32 %v1140, %v1385
        %v1403 = vmul.f32 %v1387, 0.5
        %v1404 = vmul.f32 %v1391, 0.5
        %v1405 = vmul.f32 %v1395, 0.5
        %v1406 = vmul.f32 %v1399, 0.5
        %v1407 = vtanh.pop %v1403
        %v1408 = vtanh.pop %v1404
        %v1409 = vtanh.pop %v1405
        %v1410 = vtanh.pop %v1406
        %v1411 = vmul.f32 %v1407, 0.5
        %v1412 = vmul.f32 %v1408, 0.5
        %v1413 = vmul.f32 %v1409, 0.5
        %v1414 = vmul.f32 %v1410, 0.5
        %v1415 = vadd.f32 %v1411, 0.5
        %v1416 = vadd.f32 %v1412, 0.5
        %v1417 = vadd.f32 %v1413, 0.5
        %v1418 = vadd.f32 %v1414, 0.5
        %v1419 = vmul.f32 %v1388, 0.5
        %v1420 = vmul.f32 %v1392, 0.5
        %v1421 = vmul.f32 %v1396, 0.5
        %v1422 = vmul.f32 %v1400, 0.5
        %v1423 = vtanh.pop %v1419
        %v1424 = vtanh.pop %v1420
        %v1425 = vtanh.pop %v1421
        %v1426 = vtanh.pop %v1422
        %v1427 = vmul.f32 %v1423, 0.5
        %v1428 = vmul.f32 %v1424, 0.5
        %v1429 = vmul.f32 %v1425, 0.5
        %v1430 = vmul.f32 %v1426, 0.5
        %v1431 = vadd.f32 %v1427, 0.5
        %v1432 = vadd.f32 %v1428, 0.5
        %v1433 = vadd.f32 %v1429, 0.5
        %v1434 = vadd.f32 %v1430, 0.5
        %v1435 = vtanh.pop %v1389
        %v1436 = vtanh.pop %v1393
        %v1437 = vtanh.pop %v1397
        %v1438 = vtanh.pop %v1401
        %v1439 = vmul.f32 %v1390, 0.5
        %v1440 = vmul.f32 %v1394, 0.5
        %v1441 = vmul.f32 %v1398, 0.5
        %v1442 = vmul.f32 %v1402, 0.5
        %v1443 = vtanh.pop %v1439
        %v1444 = vtanh.pop %v1440
        %v1445 = vtanh.pop %v1441
        %v1446 = vtanh.pop %v1442
        %v1447 = vmul.f32 %v1443, 0.5
        %v1448 = vmul.f32 %v1444, 0.5
        %v1449 = vmul.f32 %v1445, 0.5
        %v1450 = vmul.f32 %v1446, 0.5
        %v1451 = vadd.f32 %v1447, 0.5
        %v1452 = vadd.f32 %v1448, 0.5
        %v1453 = vadd.f32 %v1449, 0.5
        %v1454 = vadd.f32 %v1450, 0.5
        %v1455 = vld [vmem:[#allocation3] sm:$0xff]
        %v1456 = vld [vmem:[#allocation3 + $0x8] sm:$0xff]
        %v1457 = vld [vmem:[#allocation3 + $0x10] sm:$0xff]
        %v1458 = vld [vmem:[#allocation3 + $0x18] sm:$0xff]
        %v1459 = vmul.f32 %v1431, %v1455
        %v1460 = vmul.f32 %v1432, %v1456
        %v1461 = vmul.f32 %v1433, %v1457
        %v1462 = vmul.f32 %v1434, %v1458
        %v1463 = vmul.f32 %v1415, %v1435
        %v1464 = vmul.f32 %v1416, %v1436
        %v1465 = vmul.f32 %v1417, %v1437
        %v1466 = vmul.f32 %v1418, %v1438
        %v1467 = vadd.f32 %v1459, %v1463
        %v1468 = vadd.f32 %v1460, %v1464
        %v1469 = vadd.f32 %v1461, %v1465
        %v1470 = vadd.f32 %v1462, %v1466
        %v1471 = vtanh.pop %v1467
        %v1472 = vtanh.pop %v1468
        %v1473 = vtanh.pop %v1469
        %v1474 = vtanh.pop %v1470
        %v1475 = vmul.f32 %v1451, %v1471
        %v1476 = vmul.f32 %v1452, %v1472
        %v1477 = vmul.f32 %v1453, %v1473
        %v1478 = vmul.f32 %v1454, %v1474
        %1479 = vst [vmem:[#allocation3] sm:$0xff] %v1467
        %1480 = vst [vmem:[#allocation3 + $0x8] sm:$0xff] %v1468
        %1481 = vst [vmem:[#allocation3 + $0x10] sm:$0xff] %v1469
        %1482 = vst [vmem:[#allocation3 + $0x18] sm:$0xff] %v1470
        %1483 = vst [vmem:[#allocation2] sm:$0xff] %v1475
        %1484 = vst [vmem:[#allocation2 + $0x8] sm:$0xff] %v1476
        %1485 = vst [vmem:[#allocation2 + $0x10] sm:$0xff] %v1477
        %1486 = vst [vmem:[#allocation2 + $0x18] sm:$0xff] %v1478
        %1487 = vst [vmem:[#allocation5] sm:$0xff] %v1475
        %1488 = vst [vmem:[#allocation5 + $0x8] sm:$0xff] %v1476
        %1489 = vst [vmem:[#allocation5 + $0x10] sm:$0xff] %v1477
        %1490 = vst [vmem:[#allocation5 + $0x18] sm:$0xff] %v1478
        %s1491 = smul.u32 4, 4
        %s1492 = smul.addr %s1491, 8
        %s1493 = scalar_lea.vmem [#allocation4], %s1492
        %v1494 = vld [vmem:[%s1493] sm:$0xff]
        %v1495 = vld [vmem:[%s1493 + $0x8] sm:$0xff]
        %v1496 = vld [vmem:[%s1493 + $0x10] sm:$0xff]
        %v1497 = vld [vmem:[%s1493 + $0x18] sm:$0xff]
        %v1498 = vld [vmem:[%s1493 + $0x20] sm:$0xff]
        %v1499 = vld [vmem:[%s1493 + $0x28] sm:$0xff]
        %v1500 = vld [vmem:[%s1493 + $0x30] sm:$0xff]
        %v1501 = vld [vmem:[%s1493 + $0x38] sm:$0xff]
        %v1502 = vld [vmem:[%s1493 + $0x40] sm:$0xff]
        %v1503 = vld [vmem:[%s1493 + $0x48] sm:$0xff]
        %v1504 = vld [vmem:[%s1493 + $0x50] sm:$0xff]
        %v1505 = vld [vmem:[%s1493 + $0x58] sm:$0xff]
        %v1506 = vld [vmem:[%s1493 + $0x60] sm:$0xff]
        %v1507 = vld [vmem:[%s1493 + $0x68] sm:$0xff]
        %v1508 = vld [vmem:[%s1493 + $0x70] sm:$0xff]
        %v1509 = vld [vmem:[%s1493 + $0x78] sm:$0xff]
        %v1510 = vld [vmem:[#allocation2] sm:$0xff]
        %v1511 = vld [vmem:[#allocation2 + $0x8] sm:$0xff]
        %v1512 = vld [vmem:[#allocation2 + $0x10] sm:$0xff]
        %v1513 = vld [vmem:[#allocation2 + $0x18] sm:$0xff]
        %v1514 = vld [vmem:[%s2] sm:$0xff]
        %v1515 = vld [vmem:[%s2 + $0x8] sm:$0xff]
        %v1516 = vld [vmem:[%s2 + $0x10] sm:$0xff]
        %v1517 = vld [vmem:[%s2 + $0x18] sm:$0xff]
        %v1518 = vld [vmem:[%s2 + $0x20] sm:$0xff]
        %v1519 = vld [vmem:[%s2 + $0x28] sm:$0xff]
        %v1520 = vld [vmem:[%s2 + $0x30] sm:$0xff]
        %v1521 = vld [vmem:[%s2 + $0x38] sm:$0xff]
        %v1522 = vld [vmem:[%s2 + $0x40] sm:$0xff]
        %v1523 = vld [vmem:[%s2 + $0x48] sm:$0xff]
        %v1524 = vld [vmem:[%s2 + $0x50] sm:$0xff]
        %v1525 = vld [vmem:[%s2 + $0x58] sm:$0xff]
        %v1526 = vld [vmem:[%s2 + $0x60] sm:$0xff]
        %v1527 = vld [vmem:[%s2 + $0x68] sm:$0xff]
        %v1528 = vld [vmem:[%s2 + $0x70] sm:$0xff]
        %v1529 = vld [vmem:[%s2 + $0x78] sm:$0xff]
        %v1530 = vld [vmem:[%s2 + $0x80] sm:$0xff]
        %v1531 = vld [vmem:[%s2 + $0x88] sm:$0xff]
        %v1532 = vld [vmem:[%s2 + $0x90] sm:$0xff]
        %v1533 = vld [vmem:[%s2 + $0x98] sm:$0xff]
        %v1534 = vld [vmem:[%s2 + $0xa0] sm:$0xff]
        %v1535 = vld [vmem:[%s2 + $0xa8] sm:$0xff]
        %v1536 = vld [vmem:[%s2 + $0xb0] sm:$0xff]
        %v1537 = vld [vmem:[%s2 + $0xb8] sm:$0xff]
        %v1538 = vld [vmem:[%s2 + $0xc0] sm:$0xff]
        %v1539 = vld [vmem:[%s2 + $0xc8] sm:$0xff]
        %v1540 = vld [vmem:[%s2 + $0xd0] sm:$0xff]
        %v1541 = vld [vmem:[%s2 + $0xd8] sm:$0xff]
        %v1542 = vld [vmem:[%s2 + $0xe0] sm:$0xff]
        %v1543 = vld [vmem:[%s2 + $0xe8] sm:$0xff]
        %v1544 = vld [vmem:[%s2 + $0xf0] sm:$0xff]
        %v1545 = vld [vmem:[%s2 + $0xf8] sm:$0xff]
        %v1546 = vld [vmem:[%s2 + $0x100] sm:$0xff]
        %v1547 = vld [vmem:[%s2 + $0x108] sm:$0xff]
        %v1548 = vld [vmem:[%s2 + $0x110] sm:$0xff]
        %v1549 = vld [vmem:[%s2 + $0x118] sm:$0xff]
        %v1550 = vld [vmem:[%s2 + $0x120] sm:$0xff]
        %v1551 = vld [vmem:[%s2 + $0x128] sm:$0xff]
        %v1552 = vld [vmem:[%s2 + $0x130] sm:$0xff]
        %v1553 = vld [vmem:[%s2 + $0x138] sm:$0xff]
        %v1554 = vld [vmem:[%s2 + $0x140] sm:$0xff]
        %v1555 = vld [vmem:[%s2 + $0x148] sm:$0xff]
        %v1556 = vld [vmem:[%s2 + $0x150] sm:$0xff]
        %v1557 = vld [vmem:[%s2 + $0x158] sm:$0xff]
        %v1558 = vld [vmem:[%s2 + $0x160] sm:$0xff]
        %v1559 = vld [vmem:[%s2 + $0x168] sm:$0xff]
        %v1560 = vld [vmem:[%s2 + $0x170] sm:$0xff]
        %v1561 = vld [vmem:[%s2 + $0x178] sm:$0xff]
        %v1562 = vld [vmem:[%s2 + $0x180] sm:$0xff]
        %v1563 = vld [vmem:[%s2 + $0x188] sm:$0xff]
        %v1564 = vld [vmem:[%s2 + $0x190] sm:$0xff]
        %v1565 = vld [vmem:[%s2 + $0x198] sm:$0xff]
        %v1566 = vld [vmem:[%s2 + $0x1a0] sm:$0xff]
        %v1567 = vld [vmem:[%s2 + $0x1a8] sm:$0xff]
        %v1568 = vld [vmem:[%s2 + $0x1b0] sm:$0xff]
        %v1569 = vld [vmem:[%s2 + $0x1b8] sm:$0xff]
        %v1570 = vld [vmem:[%s2 + $0x1c0] sm:$0xff]
        %v1571 = vld [vmem:[%s2 + $0x1c8] sm:$0xff]
        %v1572 = vld [vmem:[%s2 + $0x1d0] sm:$0xff]
        %v1573 = vld [vmem:[%s2 + $0x1d8] sm:$0xff]
        %v1574 = vld [vmem:[%s2 + $0x1e0] sm:$0xff]
        %v1575 = vld [vmem:[%s2 + $0x1e8] sm:$0xff]
        %v1576 = vld [vmem:[%s2 + $0x1f0] sm:$0xff]
        %v1577 = vld [vmem:[%s2 + $0x1f8] sm:$0xff]
        %1578 = vmatprep.subr.mxu0 %v1515
        %1579 = vmatpush1.msra.mxu0 %v1514
        %1580 = vmatprep.subr.mxu0 %v1519
        %1581 = vmatpush1.msra.mxu0 %v1518
        %1582 = vmatprep.subr.mxu0 %v1523
        %1583 = vmatpush1.msra.mxu0 %v1522
        %1584 = vmatprep.subr.mxu0 %v1527
        %1585 = vmatpush1.msra.mxu0 %v1526
        %1586 = vmatprep.subr.mxu0 %v1531
        %1587 = vmatpush1.msra.mxu0 %v1530
        %1588 = vmatprep.subr.mxu0 %v1535
        %1589 = vmatpush1.msra.mxu0 %v1534
        %1590 = vmatprep.subr.mxu0 %v1539
        %1591 = vmatpush1.msra.mxu0 %v1538
        %1592 = vmatprep.subr.mxu0 %v1543
        %1593 = vmatpush1.msra.mxu0 %v1542
        %1594 = vmatprep.subr.mxu0 %v1547
        %1595 = vmatpush1.msra.mxu0 %v1546
        %1596 = vmatprep.subr.mxu0 %v1551
        %1597 = vmatpush1.msra.mxu0 %v1550
        %1598 = vmatprep.subr.mxu0 %v1555
        %1599 = vmatpush1.msra.mxu0 %v1554
        %1600 = vmatprep.subr.mxu0 %v1559
        %1601 = vmatpush1.msra.mxu0 %v1558
        %1602 = vmatprep.subr.mxu0 %v1563
        %1603 = vmatpush1.msra.mxu0 %v1562
        %1604 = vmatprep.subr.mxu0 %v1567
        %1605 = vmatpush1.msra.mxu0 %v1566
        %1606 = vmatprep.subr.mxu0 %v1571
        %1607 = vmatpush1.msra.mxu0 %v1570
        %1608 = vmatprep.subr.mxu0 %v1575
        %1609 = vmatpush1.msra.mxu0 %v1574
        %1610 = vmatprep.subr.mxu0 0.0
        %1611 = vmatpush1.msra.mxu0 0.0
        %1612 = vmatprep.subr.mxu0 0.0
        %1613 = vmatpush1.msra.mxu0 0.0
        %1614 = vmatprep.subr.mxu0 0.0
        %1615 = vmatpush1.msra.mxu0 0.0
        %1616 = vmatprep.subr.mxu0 0.0
        %1617 = vmatpush1.msra.mxu0 0.0
        %1618 = vmatprep.subr.mxu0 0.0
        %1619 = vmatpush1.msra.mxu0 0.0
        %1620 = vmatprep.subr.mxu0 0.0
        %1621 = vmatpush1.msra.mxu0 0.0
        %1622 = vmatprep.subr.mxu0 0.0
        %1623 = vmatpush1.msra.mxu0 0.0
        %1624 = vmatprep.subr.mxu0 0.0
        %1625 = vmatpush1.msra.mxu0 0.0
        %1626 = vmatprep.subr.mxu0 0.0
        %1627 = vmatpush1.msra.mxu0 0.0
        %1628 = vmatprep.subr.mxu0 0.0
        %1629 = vmatpush1.msra.mxu0 0.0
        %1630 = vmatprep.subr.mxu0 0.0
        %1631 = vmatpush1.msra.mxu0 0.0
        %1632 = vmatprep.subr.mxu0 0.0
        %1633 = vmatpush1.msra.mxu0 0.0
        %1634 = vmatprep.subr.mxu0 0.0
        %1635 = vmatpush1.msra.mxu0 0.0
        %1636 = vmatprep.subr.mxu0 0.0
        %1637 = vmatpush1.msra.mxu0 0.0
        %1638 = vmatprep.subr.mxu0 0.0
        %1639 = vmatpush1.msra.mxu0 0.0
        %1640 = vmatprep.subr.mxu0 0.0
        %1641 = vmatpush1.msra.mxu0 0.0
        %1642 = vmatprep.mubr.f32.mxu0 0.0
        %1643 = vmatmul.mubr.f32.gmra.mrb[0].mxu0 %v1510
        %v1644 = vpop.f32.mrb[0].mxu0
        %v1645 = vadd.f32 0.0, %v1644
        %v1646 = vpop.f32.mrb[0].mxu0
        %v1647 = vadd.f32 0.0, %v1646
        %1648 = vmatprep.mubr.f32.mxu0 0.0
        %1649 = vmatmul.mubr.f32.gmra.mrb[0].mxu0 %v1511
        %v1650 = vpop.f32.mrb[0].mxu0
        %v1651 = vadd.f32 0.0, %v1650
        %v1652 = vpop.f32.mrb[0].mxu0
        %v1653 = vadd.f32 0.0, %v1652
        %1654 = vmatprep.mubr.f32.mxu0 0.0
        %1655 = vmatmul.mubr.f32.gmra.mrb[0].mxu0 %v1512
        %v1656 = vpop.f32.mrb[0].mxu0
        %v1657 = vadd.f32 0.0, %v1656
        %v1658 = vpop.f32.mrb[0].mxu0
        %v1659 = vadd.f32 0.0, %v1658
        %1660 = vmatprep.mubr.f32.mxu0 0.0
        %1661 = vmatmul.mubr.f32.gmra.mrb[0].mxu0 %v1513
        %v1662 = vpop.f32.mrb[0].mxu0
        %v1663 = vadd.f32 0.0, %v1662
        %v1664 = vpop.f32.mrb[0].mxu0
        %v1665 = vadd.f32 0.0, %v1664
        %1666 = vdwg.mxu0
        %1667 = vmatprep.subr.mxu0 %v1517
        %1668 = vmatpush1.msra.mxu0 %v1516
        %1669 = vmatprep.subr.mxu0 %v1521
        %1670 = vmatpush1.msra.mxu0 %v1520
        %1671 = vmatprep.subr.mxu0 %v1525
        %1672 = vmatpush1.msra.mxu0 %v1524
        %1673 = vmatprep.subr.mxu0 %v1529
        %1674 = vmatpush1.msra.mxu0 %v1528
        %1675 = vmatprep.subr.mxu0 %v1533
        %1676 = vmatpush1.msra.mxu0 %v1532
        %1677 = vmatprep.subr.mxu0 %v1537
        %1678 = vmatpush1.msra.mxu0 %v1536
        %1679 = vmatprep.subr.mxu0 %v1541
        %1680 = vmatpush1.msra.mxu0 %v1540
        %1681 = vmatprep.subr.mxu0 %v1545
        %1682 = vmatpush1.msra.mxu0 %v1544
        %1683 = vmatprep.subr.mxu0 %v1549
        %1684 = vmatpush1.msra.mxu0 %v1548
        %1685 = vmatprep.subr.mxu0 %v1553
        %1686 = vmatpush1.msra.mxu0 %v1552
        %1687 = vmatprep.subr.mxu0 %v1557
        %1688 = vmatpush1.msra.mxu0 %v1556
        %1689 = vmatprep.subr.mxu0 %v1561
        %1690 = vmatpush1.msra.mxu0 %v1560
        %1691 = vmatprep.subr.mxu0 %v1565
        %1692 = vmatpush1.msra.mxu0 %v1564
        %1693 = vmatprep.subr.mxu0 %v1569
        %1694 = vmatpush1.msra.mxu0 %v1568
        %1695 = vmatprep.subr.mxu0 %v1573
        %1696 = vmatpush1.msra.mxu0 %v1572
        %1697 = vmatprep.subr.mxu0 %v1577
        %1698 = vmatpush1.msra.mxu0 %v1576
        %1699 = vmatprep.subr.mxu0 0.0
        %1700 = vmatpush1.msra.mxu0 0.0
        %1701 = vmatprep.subr.mxu0 0.0
        %1702 = vmatpush1.msra.mxu0 0.0
        %1703 = vmatprep.subr.mxu0 0.0
        %1704 = vmatpush1.msra.mxu0 0.0
        %1705 = vmatprep.subr.mxu0 0.0
        %1706 = vmatpush1.msra.mxu0 0.0
        %1707 = vmatprep.subr.mxu0 0.0
        %1708 = vmatpush1.msra.mxu0 0.0
        %1709 = vmatprep.subr.mxu0 0.0
        %1710 = vmatpush1.msra.mxu0 0.0
        %1711 = vmatprep.subr.mxu0 0.0
        %1712 = vmatpush1.msra.mxu0 0.0
        %1713 = vmatprep.subr.mxu0 0.0
        %1714 = vmatpush1.msra.mxu0 0.0
        %1715 = vmatprep.subr.mxu0 0.0
        %1716 = vmatpush1.msra.mxu0 0.0
        %1717 = vmatprep.subr.mxu0 0.0
        %1718 = vmatpush1.msra.mxu0 0.0
        %1719 = vmatprep.subr.mxu0 0.0
        %1720 = vmatpush1.msra.mxu0 0.0
        %1721 = vmatprep.subr.mxu0 0.0
        %1722 = vmatpush1.msra.mxu0 0.0
        %1723 = vmatprep.subr.mxu0 0.0
        %1724 = vmatpush1.msra.mxu0 0.0
        %1725 = vmatprep.subr.mxu0 0.0
        %1726 = vmatpush1.msra.mxu0 0.0
        %1727 = vmatprep.subr.mxu0 0.0
        %1728 = vmatpush1.msra.mxu0 0.0
        %1729 = vmatprep.subr.mxu0 0.0
        %1730 = vmatpush1.msra.mxu0 0.0
        %1731 = vmatprep.mubr.f32.mxu0 0.0
        %1732 = vmatmul.mubr.f32.gmra.mrb[0].mxu0 %v1510
        %v1733 = vpop.f32.mrb[0].mxu0
        %v1734 = vadd.f32 0.0, %v1733
        %v1735 = vpop.f32.mrb[0].mxu0
        %v1736 = vadd.f32 0.0, %v1735
        %1737 = vmatprep.mubr.f32.mxu0 0.0
        %1738 = vmatmul.mubr.f32.gmra.mrb[0].mxu0 %v1511
        %v1739 = vpop.f32.mrb[0].mxu0
        %v1740 = vadd.f32 0.0, %v1739
        %v1741 = vpop.f32.mrb[0].mxu0
        %v1742 = vadd.f32 0.0, %v1741
        %1743 = vmatprep.mubr.f32.mxu0 0.0
        %1744 = vmatmul.mubr.f32.gmra.mrb[0].mxu0 %v1512
        %v1745 = vpop.f32.mrb[0].mxu0
        %v1746 = vadd.f32 0.0, %v1745
        %v1747 = vpop.f32.mrb[0].mxu0
        %v1748 = vadd.f32 0.0, %v1747
        %1749 = vmatprep.mubr.f32.mxu0 0.0
        %1750 = vmatmul.mubr.f32.gmra.mrb[0].mxu0 %v1513
        %v1751 = vpop.f32.mrb[0].mxu0
        %v1752 = vadd.f32 0.0, %v1751
        %v1753 = vpop.f32.mrb[0].mxu0
        %v1754 = vadd.f32 0.0, %v1753
        %1755 = vdwg.mxu0
        %v1756 = vadd.f32 %v1494, %v1645
        %v1757 = vadd.f32 %v1495, %v1647
        %v1758 = vadd.f32 %v1496, %v1734
        %v1759 = vadd.f32 %v1497, %v1736
        %v1760 = vadd.f32 %v1498, %v1651
        %v1761 = vadd.f32 %v1499, %v1653
        %v1762 = vadd.f32 %v1500, %v1740
        %v1763 = vadd.f32 %v1501, %v1742
        %v1764 = vadd.f32 %v1502, %v1657
        %v1765 = vadd.f32 %v1503, %v1659
        %v1766 = vadd.f32 %v1504, %v1746
        %v1767 = vadd.f32 %v1505, %v1748
        %v1768 = vadd.f32 %v1506, %v1663
        %v1769 = vadd.f32 %v1507, %v1665
        %v1770 = vadd.f32 %v1508, %v1752
        %v1771 = vadd.f32 %v1509, %v1754
        %v1772 = vmul.f32 %v1756, 0.5
        %v1773 = vmul.f32 %v1760, 0.5
        %v1774 = vmul.f32 %v1764, 0.5
        %v1775 = vmul.f32 %v1768, 0.5
        %v1776 = vtanh.pop %v1772
        %v1777 = vtanh.pop %v1773
        %v1778 = vtanh.pop %v1774
        %v1779 = vtanh.pop %v1775
        %v1780 = vmul.f32 %v1776, 0.5
        %v1781 = vmul.f32 %v1777, 0.5
        %v1782 = vmul.f32 %v1778, 0.5
        %v1783 = vmul.f32 %v1779, 0.5
        %v1784 = vadd.f32 %v1780, 0.5
        %v1785 = vadd.f32 %v1781, 0.5
        %v1786 = vadd.f32 %v1782, 0.5
        %v1787 = vadd.f32 %v1783, 0.5
        %v1788 = vmul.f32 %v1757, 0.5
        %v1789 = vmul.f32 %v1761, 0.5
        %v1790 = vmul.f32 %v1765, 0.5
        %v1791 = vmul.f32 %v1769, 0.5
        %v1792 = vtanh.pop %v1788
        %v1793 = vtanh.pop %v1789
        %v1794 = vtanh.pop %v1790
        %v1795 = vtanh.pop %v1791
        %v1796 = vmul.f32 %v1792, 0.5
        %v1797 = vmul.f32 %v1793, 0.5
        %v1798 = vmul.f32 %v1794, 0.5
        %v1799 = vmul.f32 %v1795, 0.5
        %v1800 = vadd.f32 %v1796, 0.5
        %v1801 = vadd.f32 %v1797, 0.5
        %v1802 = vadd.f32 %v1798, 0.5
        %v1803 = vadd.f32 %v1799, 0.5
        %v1804 = vtanh.pop %v1758
        %v1805 = vtanh.pop %v1762
        %v1806 = vtanh.pop %v1766
        %v1807 = vtanh.pop %v1770
        %v1808 = vmul.f32 %v1759, 0.5
        %v1809 = vmul.f32 %v1763, 0.5
        %v1810 = vmul.f32 %v1767, 0.5
        %v1811 = vmul.f32 %v1771, 0.5
        %v1812 = vtanh.pop %v1808
        %v1813 = vtanh.pop %v1809
        %v1814 = vtanh.pop %v1810
        %v1815 = vtanh.pop %v1811
        %v1816 = vmul.f32 %v1812, 0.5
        %v1817 = vmul.f32 %v1813, 0.5
        %v1818 = vmul.f32 %v1814, 0.5
        %v1819 = vmul.f32 %v1815, 0.5
        %v1820 = vadd.f32 %v1816, 0.5
        %v1821 = vadd.f32 %v1817, 0.5
        %v1822 = vadd.f32 %v1818, 0.5
        %v1823 = vadd.f32 %v1819, 0.5
        %v1824 = vld [vmem:[#allocation3] sm:$0xff]
        %v1825 = vld [vmem:[#allocation3 + $0x8] sm:$0xff]
        %v1826 = vld [vmem:[#allocation3 + $0x10] sm:$0xff]
        %v1827 = vld [vmem:[#allocation3 + $0x18] sm:$0xff]
        %v1828 = vmul.f32 %v1800, %v1824
        %v1829 = vmul.f32 %v1801, %v1825
        %v1830 = vmul.f32 %v1802, %v1826
        %v1831 = vmul.f32 %v1803, %v1827
        %v1832 = vmul.f32 %v1784, %v1804
        %v1833 = vmul.f32 %v1785, %v1805
        %v1834 = vmul.f32 %v1786, %v1806
        %v1835 = vmul.f32 %v1787, %v1807
        %v1836 = vadd.f32 %v1828, %v1832
        %v1837 = vadd.f32 %v1829, %v1833
        %v1838 = vadd.f32 %v1830, %v1834
        %v1839 = vadd.f32 %v1831, %v1835
        %v1840 = vtanh.pop %v1836
        %v1841 = vtanh.pop %v1837
        %v1842 = vtanh.pop %v1838
        %v1843 = vtanh.pop %v1839
        %v1844 = vmul.f32 %v1820, %v1840
        %v1845 = vmul.f32 %v1821, %v1841
        %v1846 = vmul.f32 %v1822, %v1842
        %v1847 = vmul.f32 %v1823, %v1843
        %1848 = vst [vmem:[#allocation3] sm:$0xff] %v1836
        %1849 = vst [vmem:[#allocation3 + $0x8] sm:$0xff] %v1837
        %1850 = vst [vmem:[#allocation3 + $0x10] sm:$0xff] %v1838
        %1851 = vst [vmem:[#allocation3 + $0x18] sm:$0xff] %v1839
        %1852 = vst [vmem:[#allocation2] sm:$0xff] %v1844
        %1853 = vst [vmem:[#allocation2 + $0x8] sm:$0xff] %v1845
        %1854 = vst [vmem:[#allocation2 + $0x10] sm:$0xff] %v1846
        %1855 = vst [vmem:[#allocation2 + $0x18] sm:$0xff] %v1847
        %s1856 = scalar_lea.vmem [#allocation5], 32
        %1857 = vst [vmem:[%s1856] sm:$0xff] %v1844
        %1858 = vst [vmem:[%s1856 + $0x8] sm:$0xff] %v1845
        %1859 = vst [vmem:[%s1856 + $0x10] sm:$0xff] %v1846
        %1860 = vst [vmem:[%s1856 + $0x18] sm:$0xff] %v1847
        %s1861 = smul.u32 8, 4
        %s1862 = smul.addr %s1861, 8
        %s1863 = scalar_lea.vmem [#allocation4], %s1862
        %v1864 = vld [vmem:[%s1863] sm:$0xff]
        %v1865 = vld [vmem:[%s1863 + $0x8] sm:$0xff]
        %v1866 = vld [vmem:[%s1863 + $0x10] sm:$0xff]
        %v1867 = vld [vmem:[%s1863 + $0x18] sm:$0xff]
        %v1868 = vld [vmem:[%s1863 + $0x20] sm:$0xff]
        %v1869 = vld [vmem:[%s1863 + $0x28] sm:$0xff]
        %v1870 = vld [vmem:[%s1863 + $0x30] sm:$0xff]
        %v1871 = vld [vmem:[%s1863 + $0x38] sm:$0xff]
        %v1872 = vld [vmem:[%s1863 + $0x40] sm:$0xff]
        %v1873 = vld [vmem:[%s1863 + $0x48] sm:$0xff]
        %v1874 = vld [vmem:[%s1863 + $0x50] sm:$0xff]
        %v1875 = vld [vmem:[%s1863 + $0x58] sm:$0xff]
        %v1876 = vld [vmem:[%s1863 + $0x60] sm:$0xff]
        %v1877 = vld [vmem:[%s1863 + $0x68] sm:$0xff]
        %v1878 = vld [vmem:[%s1863 + $0x70] sm:$0xff]
        %v1879 = vld [vmem:[%s1863 + $0x78] sm:$0xff]
        %v1880 = vld [vmem:[#allocation2] sm:$0xff]
        %v1881 = vld [vmem:[#allocation2 + $0x8] sm:$0xff]
        %v1882 = vld [vmem:[#allocation2 + $0x10] sm:$0xff]
        %v1883 = vld [vmem:[#allocation2 + $0x18] sm:$0xff]
        %v1884 = vld [vmem:[%s2] sm:$0xff]
        %v1885 = vld [vmem:[%s2 + $0x8] sm:$0xff]
        %v1886 = vld [vmem:[%s2 + $0x10] sm:$0xff]
        %v1887 = vld [vmem:[%s2 + $0x18] sm:$0xff]
        %v1888 = vld [vmem:[%s2 + $0x20] sm:$0xff]
        %v1889 = vld [vmem:[%s2 + $0x28] sm:$0xff]
        %v1890 = vld [vmem:[%s2 + $0x30] sm:$0xff]
        %v1891 = vld [vmem:[%s2 + $0x38] sm:$0xff]
        %v1892 = vld [vmem:[%s2 + $0x40] sm:$0xff]
        %v1893 = vld [vmem:[%s2 + $0x48] sm:$0xff]
        %v1894 = vld [vmem:[%s2 + $0x50] sm:$0xff]
        %v1895 = vld [vmem:[%s2 + $0x58] sm:$0xff]
        %v1896 = vld [vmem:[%s2 + $0x60] sm:$0xff]
        %v1897 = vld [vmem:[%s2 + $0x68] sm:$0xff]
        %v1898 = vld [vmem:[%s2 + $0x70] sm:$0xff]
        %v1899 = vld [vmem:[%s2 + $0x78] sm:$0xff]
        %v1900 = vld [vmem:[%s2 + $0x80] sm:$0xff]
        %v1901 = vld [vmem:[%s2 + $0x88] sm:$0xff]
        %v1902 = vld [vmem:[%s2 + $0x90] sm:$0xff]
        %v1903 = vld [vmem:[%s2 + $0x98] sm:$0xff]
        %v1904 = vld [vmem:[%s2 + $0xa0] sm:$0xff]
        %v1905 = vld [vmem:[%s2 + $0xa8] sm:$0xff]
        %v1906 = vld [vmem:[%s2 + $0xb0] sm:$0xff]
        %v1907 = vld [vmem:[%s2 + $0xb8] sm:$0xff]
        %v1908 = vld [vmem:[%s2 + $0xc0] sm:$0xff]
        %v1909 = vld [vmem:[%s2 + $0xc8] sm:$0xff]
        %v1910 = vld [vmem:[%s2 + $0xd0] sm:$0xff]
        %v1911 = vld [vmem:[%s2 + $0xd8] sm:$0xff]
        %v1912 = vld [vmem:[%s2 + $0xe0] sm:$0xff]
        %v1913 = vld [vmem:[%s2 + $0xe8] sm:$0xff]
        %v1914 = vld [vmem:[%s2 + $0xf0] sm:$0xff]
        %v1915 = vld [vmem:[%s2 + $0xf8] sm:$0xff]
        %v1916 = vld [vmem:[%s2 + $0x100] sm:$0xff]
        %v1917 = vld [vmem:[%s2 + $0x108] sm:$0xff]
        %v1918 = vld [vmem:[%s2 + $0x110] sm:$0xff]
        %v1919 = vld [vmem:[%s2 + $0x118] sm:$0xff]
        %v1920 = vld [vmem:[%s2 + $0x120] sm:$0xff]
        %v1921 = vld [vmem:[%s2 + $0x128] sm:$0xff]
        %v1922 = vld [vmem:[%s2 + $0x130] sm:$0xff]
        %v1923 = vld [vmem:[%s2 + $0x138] sm:$0xff]
        %v1924 = vld [vmem:[%s2 + $0x140] sm:$0xff]
        %v1925 = vld [vmem:[%s2 + $0x148] sm:$0xff]
        %v1926 = vld [vmem:[%s2 + $0x150] sm:$0xff]
        %v1927 = vld [vmem:[%s2 + $0x158] sm:$0xff]
        %v1928 = vld [vmem:[%s2 + $0x160] sm:$0xff]
        %v1929 = vld [vmem:[%s2 + $0x168] sm:$0xff]
        %v1930 = vld [vmem:[%s2 + $0x170] sm:$0xff]
        %v1931 = vld [vmem:[%s2 + $0x178] sm:$0xff]
        %v1932 = vld [vmem:[%s2 + $0x180] sm:$0xff]
        %v1933 = vld [vmem:[%s2 + $0x188] sm:$0xff]
        %v1934 = vld [vmem:[%s2 + $0x190] sm:$0xff]
        %v1935 = vld [vmem:[%s2 + $0x198] sm:$0xff]
        %v1936 = vld [vmem:[%s2 + $0x1a0] sm:$0xff]
        %v1937 = vld [vmem:[%s2 + $0x1a8] sm:$0xff]
        %v1938 = vld [vmem:[%s2 + $0x1b0] sm:$0xff]
        %v1939 = vld [vmem:[%s2 + $0x1b8] sm:$0xff]
        %v1940 = vld [vmem:[%s2 + $0x1c0] sm:$0xff]
        %v1941 = vld [vmem:[%s2 + $0x1c8] sm:$0xff]
        %v1942 = vld [vmem:[%s2 + $0x1d0] sm:$0xff]
        %v1943 = vld [vmem:[%s2 + $0x1d8] sm:$0xff]
        %v1944 = vld [vmem:[%s2 + $0x1e0] sm:$0xff]
        %v1945 = vld [vmem:[%s2 + $0x1e8] sm:$0xff]
        %v1946 = vld [vmem:[%s2 + $0x1f0] sm:$0xff]
        %v1947 = vld [vmem:[%s2 + $0x1f8] sm:$0xff]
        %1948 = vmatprep.subr.mxu0 %v1885
        %1949 = vmatpush1.msra.mxu0 %v1884
        %1950 = vmatprep.subr.mxu0 %v1889
        %1951 = vmatpush1.msra.mxu0 %v1888
        %1952 = vmatprep.subr.mxu0 %v1893
        %1953 = vmatpush1.msra.mxu0 %v1892
        %1954 = vmatprep.subr.mxu0 %v1897
        %1955 = vmatpush1.msra.mxu0 %v1896
        %1956 = vmatprep.subr.mxu0 %v1901
        %1957 = vmatpush1.msra.mxu0 %v1900
        %1958 = vmatprep.subr.mxu0 %v1905
        %1959 = vmatpush1.msra.mxu0 %v1904
        %1960 = vmatprep.subr.mxu0 %v1909
        %1961 = vmatpush1.msra.mxu0 %v1908
        %1962 = vmatprep.subr.mxu0 %v1913
        %1963 = vmatpush1.msra.mxu0 %v1912
        %1964 = vmatprep.subr.mxu0 %v1917
        %1965 = vmatpush1.msra.mxu0 %v1916
        %1966 = vmatprep.subr.mxu0 %v1921
        %1967 = vmatpush1.msra.mxu0 %v1920
        %1968 = vmatprep.subr.mxu0 %v1925
        %1969 = vmatpush1.msra.mxu0 %v1924
        %1970 = vmatprep.subr.mxu0 %v1929
        %1971 = vmatpush1.msra.mxu0 %v1928
        %1972 = vmatprep.subr.mxu0 %v1933
        %1973 = vmatpush1.msra.mxu0 %v1932
        %1974 = vmatprep.subr.mxu0 %v1937
        %1975 = vmatpush1.msra.mxu0 %v1936
        %1976 = vmatprep.subr.mxu0 %v1941
        %1977 = vmatpush1.msra.mxu0 %v1940
        %1978 = vmatprep.subr.mxu0 %v1945
        %1979 = vmatpush1.msra.mxu0 %v1944
        %1980 = vmatprep.subr.mxu0 0.0
        %1981 = vmatpush1.msra.mxu0 0.0
        %1982 = vmatprep.subr.mxu0 0.0
        %1983 = vmatpush1.msra.mxu0 0.0
        %1984 = vmatprep.subr.mxu0 0.0
        %1985 = vmatpush1.msra.mxu0 0.0
        %1986 = vmatprep.subr.mxu0 0.0
        %1987 = vmatpush1.msra.mxu0 0.0
        %1988 = vmatprep.subr.mxu0 0.0
        %1989 = vmatpush1.msra.mxu0 0.0
        %1990 = vmatprep.subr.mxu0 0.0
        %1991 = vmatpush1.msra.mxu0 0.0
        %1992 = vmatprep.subr.mxu0 0.0
        %1993 = vmatpush1.msra.mxu0 0.0
        %1994 = vmatprep.subr.mxu0 0.0
        %1995 = vmatpush1.msra.mxu0 0.0
        %1996 = vmatprep.subr.mxu0 0.0
        %1997 = vmatpush1.msra.mxu0 0.0
        %1998 = vmatprep.subr.mxu0 0.0
        %1999 = vmatpush1.msra.mxu0 0.0
        %2000 = vmatprep.subr.mxu0 0.0
        %2001 = vmatpush1.msra.mxu0 0.0
        %2002 = vmatprep.subr.mxu0 0.0
        %2003 = vmatpush1.msra.mxu0 0.0
        %2004 = vmatprep.subr.mxu0 0.0
        %2005 = vmatpush1.msra.mxu0 0.0
        %2006 = vmatprep.subr.mxu0 0.0
        %2007 = vmatpush1.msra.mxu0 0.0
        %2008 = vmatprep.subr.mxu0 0.0
        %2009 = vmatpush1.msra.mxu0 0.0
        %2010 = vmatprep.subr.mxu0 0.0
        %2011 = vmatpush1.msra.mxu0 0.0
        %2012 = vmatprep.mubr.f32.mxu0 0.0
        %2013 = vmatmul.mubr.f32.gmra.mrb[0].mxu0 %v1880
        %v2014 = vpop.f32.mrb[0].mxu0
        %v2015 = vadd.f32 0.0, %v2014
        %v2016 = vpop.f32.mrb[0].mxu0
        %v2017 = vadd.f32 0.0, %v2016
        %2018 = vmatprep.mubr.f32.mxu0 0.0
        %2019 = vmatmul.mubr.f32.gmra.mrb[0].mxu0 %v1881
        %v2020 = vpop.f32.mrb[0].mxu0
        %v2021 = vadd.f32 0.0, %v2020
        %v2022 = vpop.f32.mrb[0].mxu0
        %v2023 = vadd.f32 0.0, %v2022
        %2024 = vmatprep.mubr.f32.mxu0 0.0
        %2025 = vmatmul.mubr.f32.gmra.mrb[0].mxu0 %v1882
        %v2026 = vpop.f32.mrb[0].mxu0
        %v2027 = vadd.f32 0.0, %v2026
        %v2028 = vpop.f32.mrb[0].mxu0
        %v2029 = vadd.f32 0.0, %v2028
        %2030 = vmatprep.mubr.f32.mxu0 0.0
        %2031 = vmatmul.mubr.f32.gmra.mrb[0].mxu0 %v1883
        %v2032 = vpop.f32.mrb[0].mxu0
        %v2033 = vadd.f32 0.0, %v2032
        %v2034 = vpop.f32.mrb[0].mxu0
        %v2035 = vadd.f32 0.0, %v2034
        %2036 = vdwg.mxu0
        %2037 = vmatprep.subr.mxu0 %v1887
        %2038 = vmatpush1.msra.mxu0 %v1886
        %2039 = vmatprep.subr.mxu0 %v1891
        %2040 = vmatpush1.msra.mxu0 %v1890
        %2041 = vmatprep.subr.mxu0 %v1895
        %2042 = vmatpush1.msra.mxu0 %v1894
        %2043 = vmatprep.subr.mxu0 %v1899
        %2044 = vmatpush1.msra.mxu0 %v1898
        %2045 = vmatprep.subr.mxu0 %v1903
        %2046 = vmatpush1.msra.mxu0 %v1902
        %2047 = vmatprep.subr.mxu0 %v1907
        %2048 = vmatpush1.msra.mxu0 %v1906
        %2049 = vmatprep.subr.mxu0 %v1911
        %2050 = vmatpush1.msra.mxu0 %v1910
        %2051 = vmatprep.subr.mxu0 %v1915
        %2052 = vmatpush1.msra.mxu0 %v1914
        %2053 = vmatprep.subr.mxu0 %v1919
        %2054 = vmatpush1.msra.mxu0 %v1918
        %2055 = vmatprep.subr.mxu0 %v1923
        %2056 = vmatpush1.msra.mxu0 %v1922
        %2057 = vmatprep.subr.mxu0 %v1927
        %2058 = vmatpush1.msra.mxu0 %v1926
        %2059 = vmatprep.subr.mxu0 %v1931
        %2060 = vmatpush1.msra.mxu0 %v1930
        %2061 = vmatprep.subr.mxu0 %v1935
        %2062 = vmatpush1.msra.mxu0 %v1934
        %2063 = vmatprep.subr.mxu0 %v1939
        %2064 = vmatpush1.msra.mxu0 %v1938
        %2065 = vmatprep.subr.mxu0 %v1943
        %2066 = vmatpush1.msra.mxu0 %v1942
        %2067 = vmatprep.subr.mxu0 %v1947
        %2068 = vmatpush1.msra.mxu0 %v1946
        %2069 = vmatprep.subr.mxu0 0.0
        %2070 = vmatpush1.msra.mxu0 0.0
        %2071 = vmatprep.subr.mxu0 0.0
        %2072 = vmatpush1.msra.mxu0 0.0
        %2073 = vmatprep.subr.mxu0 0.0
        %2074 = vmatpush1.msra.mxu0 0.0
        %2075 = vmatprep.subr.mxu0 0.0
        %2076 = vmatpush1.msra.mxu0 0.0
        %2077 = vmatprep.subr.mxu0 0.0
        %2078 = vmatpush1.msra.mxu0 0.0
        %2079 = vmatprep.subr.mxu0 0.0
        %2080 = vmatpush1.msra.mxu0 0.0
        %2081 = vmatprep.subr.mxu0 0.0
        %2082 = vmatpush1.msra.mxu0 0.0
        %2083 = vmatprep.subr.mxu0 0.0
        %2084 = vmatpush1.msra.mxu0 0.0
        %2085 = vmatprep.subr.mxu0 0.0
        %2086 = vmatpush1.msra.mxu0 0.0
        %2087 = vmatprep.subr.mxu0 0.0
        %2088 = vmatpush1.msra.mxu0 0.0
        %2089 = vmatprep.subr.mxu0 0.0
        %2090 = vmatpush1.msra.mxu0 0.0
        %2091 = vmatprep.subr.mxu0 0.0
        %2092 = vmatpush1.msra.mxu0 0.0
        %2093 = vmatprep.subr.mxu0 0.0
        %2094 = vmatpush1.msra.mxu0 0.0
        %2095 = vmatprep.subr.mxu0 0.0
        %2096 = vmatpush1.msra.mxu0 0.0
        %2097 = vmatprep.subr.mxu0 0.0
        %2098 = vmatpush1.msra.mxu0 0.0
        %2099 = vmatprep.subr.mxu0 0.0
        %2100 = vmatpush1.msra.mxu0 0.0
        %2101 = vmatprep.mubr.f32.mxu0 0.0
        %2102 = vmatmul.mubr.f32.gmra.mrb[0].mxu0 %v1880
        %v2103 = vpop.f32.mrb[0].mxu0
        %v2104 = vadd.f32 0.0, %v2103
        %v2105 = vpop.f32.mrb[0].mxu0
        %v2106 = vadd.f32 0.0, %v2105
        %2107 = vmatprep.mubr.f32.mxu0 0.0
        %2108 = vmatmul.mubr.f32.gmra.mrb[0].mxu0 %v1881
        %v2109 = vpop.f32.mrb[0].mxu0
        %v2110 = vadd.f32 0.0, %v2109
        %v2111 = vpop.f32.mrb[0].mxu0
        %v2112 = vadd.f32 0.0, %v2111
        %2113 = vmatprep.mubr.f32.mxu0 0.0
        %2114 = vmatmul.mubr.f32.gmra.mrb[0].mxu0 %v1882
        %v2115 = vpop.f32.mrb[0].mxu0
        %v2116 = vadd.f32 0.0, %v2115
        %v2117 = vpop.f32.mrb[0].mxu0
        %v2118 = vadd.f32 0.0, %v2117
        %2119 = vmatprep.mubr.f32.mxu0 0.0
        %2120 = vmatmul.mubr.f32.gmra.mrb[0].mxu0 %v1883
        %v2121 = vpop.f32.mrb[0].mxu0
        %v2122 = vadd.f32 0.0, %v2121
        %v2123 = vpop.f32.mrb[0].mxu0
        %v2124 = vadd.f32 0.0, %v2123
        %2125 = vdwg.mxu0
        %v2126 = vadd.f32 %v1864, %v2015
        %v2127 = vadd.f32 %v1865, %v2017
        %v2128 = vadd.f32 %v1866, %v2104
        %v2129 = vadd.f32 %v1867, %v2106
        %v2130 = vadd.f32 %v1868, %v2021
        %v2131 = vadd.f32 %v1869, %v2023
        %v2132 = vadd.f32 %v1870, %v2110
        %v2133 = vadd.f32 %v1871, %v2112
        %v2134 = vadd.f32 %v1872, %v2027
        %v2135 = vadd.f32 %v1873, %v2029
        %v2136 = vadd.f32 %v1874, %v2116
        %v2137 = vadd.f32 %v1875, %v2118
        %v2138 = vadd.f32 %v1876, %v2033
        %v2139 = vadd.f32 %v1877, %v2035
        %v2140 = vadd.f32 %v1878, %v2122
        %v2141 = vadd.f32 %v1879, %v2124
        %v2142 = vmul.f32 %v2126, 0.5
        %v2143 = vmul.f32 %v2130, 0.5
        %v2144 = vmul.f32 %v2134, 0.5
        %v2145 = vmul.f32 %v2138, 0.5
        %v2146 = vtanh.pop %v2142
        %v2147 = vtanh.pop %v2143
        %v2148 = vtanh.pop %v2144
        %v2149 = vtanh.pop %v2145
        %v2150 = vmul.f32 %v2146, 0.5
        %v2151 = vmul.f32 %v2147, 0.5
        %v2152 = vmul.f32 %v2148, 0.5
        %v2153 = vmul.f32 %v2149, 0.5
        %v2154 = vadd.f32 %v2150, 0.5
        %v2155 = vadd.f32 %v2151, 0.5
        %v2156 = vadd.f32 %v2152, 0.5
        %v2157 = vadd.f32 %v2153, 0.5
        %v2158 = vmul.f32 %v2127, 0.5
        %v2159 = vmul.f32 %v2131, 0.5
        %v2160 = vmul.f32 %v2135, 0.5
        %v2161 = vmul.f32 %v2139, 0.5
        %v2162 = vtanh.pop %v2158
        %v2163 = vtanh.pop %v2159
        %v2164 = vtanh.pop %v2160
        %v2165 = vtanh.pop %v2161
        %v2166 = vmul.f32 %v2162, 0.5
        %v2167 = vmul.f32 %v2163, 0.5
        %v2168 = vmul.f32 %v2164, 0.5
        %v2169 = vmul.f32 %v2165, 0.5
        %v2170 = vadd.f32 %v2166, 0.5
        %v2171 = vadd.f32 %v2167, 0.5
        %v2172 = vadd.f32 %v2168, 0.5
        %v2173 = vadd.f32 %v2169, 0.5
        %v2174 = vtanh.pop %v2128
        %v2175 = vtanh.pop %v2132
        %v2176 = vtanh.pop %v2136
        %v2177 = vtanh.pop %v2140
        %v2178 = vmul.f32 %v2129, 0.5
        %v2179 = vmul.f32 %v2133, 0.5
        %v2180 = vmul.f32 %v2137, 0.5
        %v2181 = vmul.f32 %v2141, 0.5
        %v2182 = vtanh.pop %v2178
        %v2183 = vtanh.pop %v2179
        %v2184 = vtanh.pop %v2180
        %v2185 = vtanh.pop %v2181
        %v2186 = vmul.f32 %v2182, 0.5
        %v2187 = vmul.f32 %v2183, 0.5
        %v2188 = vmul.f32 %v2184, 0.5
        %v2189 = vmul.f32 %v2185, 0.5
        %v2190 = vadd.f32 %v2186, 0.5
        %v2191 = vadd.f32 %v2187, 0.5
        %v2192 = vadd.f32 %v2188, 0.5
        %v2193 = vadd.f32 %v2189, 0.5
        %v2194 = vld [vmem:[#allocation3] sm:$0xff]
        %v2195 = vld [vmem:[#allocation3 + $0x8] sm:$0xff]
        %v2196 = vld [vmem:[#allocation3 + $0x10] sm:$0xff]
        %v2197 = vld [vmem:[#allocation3 + $0x18] sm:$0xff]
        %v2198 = vmul.f32 %v2170, %v2194
        %v2199 = vmul.f32 %v2171, %v2195
        %v2200 = vmul.f32 %v2172, %v2196
        %v2201 = vmul.f32 %v2173, %v2197
        %v2202 = vmul.f32 %v2154, %v2174
        %v2203 = vmul.f32 %v2155, %v2175
        %v2204 = vmul.f32 %v2156, %v2176
        %v2205 = vmul.f32 %v2157, %v2177
        %v2206 = vadd.f32 %v2198, %v2202
        %v2207 = vadd.f32 %v2199, %v2203
        %v2208 = vadd.f32 %v2200, %v2204
        %v2209 = vadd.f32 %v2201, %v2205
        %v2210 = vtanh.pop %v2206
        %v2211 = vtanh.pop %v2207
        %v2212 = vtanh.pop %v2208
        %v2213 = vtanh.pop %v2209
        %v2214 = vmul.f32 %v2190, %v2210
        %v2215 = vmul.f32 %v2191, %v2211
        %v2216 = vmul.f32 %v2192, %v2212
        %v2217 = vmul.f32 %v2193, %v2213
        %2218 = vst [vmem:[#allocation3] sm:$0xff] %v2206
        %2219 = vst [vmem:[#allocation3 + $0x8] sm:$0xff] %v2207
        %2220 = vst [vmem:[#allocation3 + $0x10] sm:$0xff] %v2208
        %2221 = vst [vmem:[#allocation3 + $0x18] sm:$0xff] %v2209
        %2222 = vst [vmem:[#allocation2] sm:$0xff] %v2214
        %2223 = vst [vmem:[#allocation2 + $0x8] sm:$0xff] %v2215
        %2224 = vst [vmem:[#allocation2 + $0x10] sm:$0xff] %v2216
        %2225 = vst [vmem:[#allocation2 + $0x18] sm:$0xff] %v2217
        %s2226 = scalar_lea.vmem [#allocation5], 64
        %2227 = vst [vmem:[%s2226] sm:$0xff] %v2214
        %2228 = vst [vmem:[%s2226 + $0x8] sm:$0xff] %v2215
        %2229 = vst [vmem:[%s2226 + $0x10] sm:$0xff] %v2216
        %2230 = vst [vmem:[%s2226 + $0x18] sm:$0xff] %v2217
        %s2231 = smul.u32 12, 4
        %s2232 = smul.addr %s2231, 8
        %s2233 = scalar_lea.vmem [#allocation4], %s2232
        %v2234 = vld [vmem:[%s2233] sm:$0xff]
        %v2235 = vld [vmem:[%s2233 + $0x8] sm:$0xff]
        %v2236 = vld [vmem:[%s2233 + $0x10] sm:$0xff]
        %v2237 = vld [vmem:[%s2233 + $0x18] sm:$0xff]
        %v2238 = vld [vmem:[%s2233 + $0x20] sm:$0xff]
        %v2239 = vld [vmem:[%s2233 + $0x28] sm:$0xff]
        %v2240 = vld [vmem:[%s2233 + $0x30] sm:$0xff]
        %v2241 = vld [vmem:[%s2233 + $0x38] sm:$0xff]
        %v2242 = vld [vmem:[%s2233 + $0x40] sm:$0xff]
        %v2243 = vld [vmem:[%s2233 + $0x48] sm:$0xff]
        %v2244 = vld [vmem:[%s2233 + $0x50] sm:$0xff]
        %v2245 = vld [vmem:[%s2233 + $0x58] sm:$0xff]
        %v2246 = vld [vmem:[%s2233 + $0x60] sm:$0xff]
        %v2247 = vld [vmem:[%s2233 + $0x68] sm:$0xff]
        %v2248 = vld [vmem:[%s2233 + $0x70] sm:$0xff]
        %v2249 = vld [vmem:[%s2233 + $0x78] sm:$0xff]
        %v2250 = vld [vmem:[#allocation2] sm:$0xff]
        %v2251 = vld [vmem:[#allocation2 + $0x8] sm:$0xff]
        %v2252 = vld [vmem:[#allocation2 + $0x10] sm:$0xff]
        %v2253 = vld [vmem:[#allocation2 + $0x18] sm:$0xff]
        %v2254 = vld [vmem:[%s2] sm:$0xff]
        %v2255 = vld [vmem:[%s2 + $0x8] sm:$0xff]
        %v2256 = vld [vmem:[%s2 + $0x10] sm:$0xff]
        %v2257 = vld [vmem:[%s2 + $0x18] sm:$0xff]
        %v2258 = vld [vmem:[%s2 + $0x20] sm:$0xff]
        %v2259 = vld [vmem:[%s2 + $0x28] sm:$0xff]
        %v2260 = vld [vmem:[%s2 + $0x30] sm:$0xff]
        %v2261 = vld [vmem:[%s2 + $0x38] sm:$0xff]
        %v2262 = vld [vmem:[%s2 + $0x40] sm:$0xff]
        %v2263 = vld [vmem:[%s2 + $0x48] sm:$0xff]
        %v2264 = vld [vmem:[%s2 + $0x50] sm:$0xff]
        %v2265 = vld [vmem:[%s2 + $0x58] sm:$0xff]
        %v2266 = vld [vmem:[%s2 + $0x60] sm:$0xff]
        %v2267 = vld [vmem:[%s2 + $0x68] sm:$0xff]
        %v2268 = vld [vmem:[%s2 + $0x70] sm:$0xff]
        %v2269 = vld [vmem:[%s2 + $0x78] sm:$0xff]
        %v2270 = vld [vmem:[%s2 + $0x80] sm:$0xff]
        %v2271 = vld [vmem:[%s2 + $0x88] sm:$0xff]
        %v2272 = vld [vmem:[%s2 + $0x90] sm:$0xff]
        %v2273 = vld [vmem:[%s2 + $0x98] sm:$0xff]
        %v2274 = vld [vmem:[%s2 + $0xa0] sm:$0xff]
        %v2275 = vld [vmem:[%s2 + $0xa8] sm:$0xff]
        %v2276 = vld [vmem:[%s2 + $0xb0] sm:$0xff]
        %v2277 = vld [vmem:[%s2 + $0xb8] sm:$0xff]
        %v2278 = vld [vmem:[%s2 + $0xc0] sm:$0xff]
        %v2279 = vld [vmem:[%s2 + $0xc8] sm:$0xff]
        %v2280 = vld [vmem:[%s2 + $0xd0] sm:$0xff]
        %v2281 = vld [vmem:[%s2 + $0xd8] sm:$0xff]
        %v2282 = vld [vmem:[%s2 + $0xe0] sm:$0xff]
        %v2283 = vld [vmem:[%s2 + $0xe8] sm:$0xff]
        %v2284 = vld [vmem:[%s2 + $0xf0] sm:$0xff]
        %v2285 = vld [vmem:[%s2 + $0xf8] sm:$0xff]
        %v2286 = vld [vmem:[%s2 + $0x100] sm:$0xff]
        %v2287 = vld [vmem:[%s2 + $0x108] sm:$0xff]
        %v2288 = vld [vmem:[%s2 + $0x110] sm:$0xff]
        %v2289 = vld [vmem:[%s2 + $0x118] sm:$0xff]
        %v2290 = vld [vmem:[%s2 + $0x120] sm:$0xff]
        %v2291 = vld [vmem:[%s2 + $0x128] sm:$0xff]
        %v2292 = vld [vmem:[%s2 + $0x130] sm:$0xff]
        %v2293 = vld [vmem:[%s2 + $0x138] sm:$0xff]
        %v2294 = vld [vmem:[%s2 + $0x140] sm:$0xff]
        %v2295 = vld [vmem:[%s2 + $0x148] sm:$0xff]
        %v2296 = vld [vmem:[%s2 + $0x150] sm:$0xff]
        %v2297 = vld [vmem:[%s2 + $0x158] sm:$0xff]
        %v2298 = vld [vmem:[%s2 + $0x160] sm:$0xff]
        %v2299 = vld [vmem:[%s2 + $0x168] sm:$0xff]
        %v2300 = vld [vmem:[%s2 + $0x170] sm:$0xff]
        %v2301 = vld [vmem:[%s2 + $0x178] sm:$0xff]
        %v2302 = vld [vmem:[%s2 + $0x180] sm:$0xff]
        %v2303 = vld [vmem:[%s2 + $0x188] sm:$0xff]
        %v2304 = vld [vmem:[%s2 + $0x190] sm:$0xff]
        %v2305 = vld [vmem:[%s2 + $0x198] sm:$0xff]
        %v2306 = vld [vmem:[%s2 + $0x1a0] sm:$0xff]
        %v2307 = vld [vmem:[%s2 + $0x1a8] sm:$0xff]
        %v2308 = vld [vmem:[%s2 + $0x1b0] sm:$0xff]
        %v2309 = vld [vmem:[%s2 + $0x1b8] sm:$0xff]
        %v2310 = vld [vmem:[%s2 + $0x1c0] sm:$0xff]
        %v2311 = vld [vmem:[%s2 + $0x1c8] sm:$0xff]
        %v2312 = vld [vmem:[%s2 + $0x1d0] sm:$0xff]
        %v2313 = vld [vmem:[%s2 + $0x1d8] sm:$0xff]
        %v2314 = vld [vmem:[%s2 + $0x1e0] sm:$0xff]
        %v2315 = vld [vmem:[%s2 + $0x1e8] sm:$0xff]
        %v2316 = vld [vmem:[%s2 + $0x1f0] sm:$0xff]
        %v2317 = vld [vmem:[%s2 + $0x1f8] sm:$0xff]
        %2318 = vmatprep.subr.mxu0 %v2255
        %2319 = vmatpush1.msra.mxu0 %v2254
        %2320 = vmatprep.subr.mxu0 %v2259
        %2321 = vmatpush1.msra.mxu0 %v2258
        %2322 = vmatprep.subr.mxu0 %v2263
        %2323 = vmatpush1.msra.mxu0 %v2262
        %2324 = vmatprep.subr.mxu0 %v2267
        %2325 = vmatpush1.msra.mxu0 %v2266
        %2326 = vmatprep.subr.mxu0 %v2271
        %2327 = vmatpush1.msra.mxu0 %v2270
        %2328 = vmatprep.subr.mxu0 %v2275
        %2329 = vmatpush1.msra.mxu0 %v2274
        %2330 = vmatprep.subr.mxu0 %v2279
        %2331 = vmatpush1.msra.mxu0 %v2278
        %2332 = vmatprep.subr.mxu0 %v2283
        %2333 = vmatpush1.msra.mxu0 %v2282
        %2334 = vmatprep.subr.mxu0 %v2287
        %2335 = vmatpush1.msra.mxu0 %v2286
        %2336 = vmatprep.subr.mxu0 %v2291
        %2337 = vmatpush1.msra.mxu0 %v2290
        %2338 = vmatprep.subr.mxu0 %v2295
        %2339 = vmatpush1.msra.mxu0 %v2294
        %2340 = vmatprep.subr.mxu0 %v2299
        %2341 = vmatpush1.msra.mxu0 %v2298
        %2342 = vmatprep.subr.mxu0 %v2303
        %2343 = vmatpush1.msra.mxu0 %v2302
        %2344 = vmatprep.subr.mxu0 %v2307
        %2345 = vmatpush1.msra.mxu0 %v2306
        %2346 = vmatprep.subr.mxu0 %v2311
        %2347 = vmatpush1.msra.mxu0 %v2310
        %2348 = vmatprep.subr.mxu0 %v2315
        %2349 = vmatpush1.msra.mxu0 %v2314
        %2350 = vmatprep.subr.mxu0 0.0
        %2351 = vmatpush1.msra.mxu0 0.0
        %2352 = vmatprep.subr.mxu0 0.0
        %2353 = vmatpush1.msra.mxu0 0.0
        %2354 = vmatprep.subr.mxu0 0.0
        %2355 = vmatpush1.msra.mxu0 0.0
        %2356 = vmatprep.subr.mxu0 0.0
        %2357 = vmatpush1.msra.mxu0 0.0
        %2358 = vmatprep.subr.mxu0 0.0
        %2359 = vmatpush1.msra.mxu0 0.0
        %2360 = vmatprep.subr.mxu0 0.0
        %2361 = vmatpush1.msra.mxu0 0.0
        %2362 = vmatprep.subr.mxu0 0.0
        %2363 = vmatpush1.msra.mxu0 0.0
        %2364 = vmatprep.subr.mxu0 0.0
        %2365 = vmatpush1.msra.mxu0 0.0
        %2366 = vmatprep.subr.mxu0 0.0
        %2367 = vmatpush1.msra.mxu0 0.0
        %2368 = vmatprep.subr.mxu0 0.0
        %2369 = vmatpush1.msra.mxu0 0.0
        %2370 = vmatprep.subr.mxu0 0.0
        %2371 = vmatpush1.msra.mxu0 0.0
        %2372 = vmatprep.subr.mxu0 0.0
        %2373 = vmatpush1.msra.mxu0 0.0
        %2374 = vmatprep.subr.mxu0 0.0
        %2375 = vmatpush1.msra.mxu0 0.0
        %2376 = vmatprep.subr.mxu0 0.0
        %2377 = vmatpush1.msra.mxu0 0.0
        %2378 = vmatprep.subr.mxu0 0.0
        %2379 = vmatpush1.msra.mxu0 0.0
        %2380 = vmatprep.subr.mxu0 0.0
        %2381 = vmatpush1.msra.mxu0 0.0
        %2382 = vmatprep.mubr.f32.mxu0 0.0
        %2383 = vmatmul.mubr.f32.gmra.mrb[0].mxu0 %v2250
        %v2384 = vpop.f32.mrb[0].mxu0
        %v2385 = vadd.f32 0.0, %v2384
        %v2386 = vpop.f32.mrb[0].mxu0
        %v2387 = vadd.f32 0.0, %v2386
        %2388 = vmatprep.mubr.f32.mxu0 0.0
        %2389 = vmatmul.mubr.f32.gmra.mrb[0].mxu0 %v2251
        %v2390 = vpop.f32.mrb[0].mxu0
        %v2391 = vadd.f32 0.0, %v2390
        %v2392 = vpop.f32.mrb[0].mxu0
        %v2393 = vadd.f32 0.0, %v2392
        %2394 = vmatprep.mubr.f32.mxu0 0.0
        %2395 = vmatmul.mubr.f32.gmra.mrb[0].mxu0 %v2252
        %v2396 = vpop.f32.mrb[0].mxu0
        %v2397 = vadd.f32 0.0, %v2396
        %v2398 = vpop.f32.mrb[0].mxu0
        %v2399 = vadd.f32 0.0, %v2398
        %2400 = vmatprep.mubr.f32.mxu0 0.0
        %2401 = vmatmul.mubr.f32.gmra.mrb[0].mxu0 %v2253
        %v2402 = vpop.f32.mrb[0].mxu0
        %v2403 = vadd.f32 0.0, %v2402
        %v2404 = vpop.f32.mrb[0].mxu0
        %v2405 = vadd.f32 0.0, %v2404
        %2406 = vdwg.mxu0
        %2407 = vmatprep.subr.mxu0 %v2257
        %2408 = vmatpush1.msra.mxu0 %v2256
        %2409 = vmatprep.subr.mxu0 %v2261
        %2410 = vmatpush1.msra.mxu0 %v2260
        %2411 = vmatprep.subr.mxu0 %v2265
        %2412 = vmatpush1.msra.mxu0 %v2264
        %2413 = vmatprep.subr.mxu0 %v2269
        %2414 = vmatpush1.msra.mxu0 %v2268
        %2415 = vmatprep.subr.mxu0 %v2273
        %2416 = vmatpush1.msra.mxu0 %v2272
        %2417 = vmatprep.subr.mxu0 %v2277
        %2418 = vmatpush1.msra.mxu0 %v2276
        %2419 = vmatprep.subr.mxu0 %v2281
        %2420 = vmatpush1.msra.mxu0 %v2280
        %2421 = vmatprep.subr.mxu0 %v2285
        %2422 = vmatpush1.msra.mxu0 %v2284
        %2423 = vmatprep.subr.mxu0 %v2289
        %2424 = vmatpush1.msra.mxu0 %v2288
        %2425 = vmatprep.subr.mxu0 %v2293
        %2426 = vmatpush1.msra.mxu0 %v2292
        %2427 = vmatprep.subr.mxu0 %v2297
        %2428 = vmatpush1.msra.mxu0 %v2296
        %2429 = vmatprep.subr.mxu0 %v2301
        %2430 = vmatpush1.msra.mxu0 %v2300
        %2431 = vmatprep.subr.mxu0 %v2305
        %2432 = vmatpush1.msra.mxu0 %v2304
        %2433 = vmatprep.subr.mxu0 %v2309
        %2434 = vmatpush1.msra.mxu0 %v2308
        %2435 = vmatprep.subr.mxu0 %v2313
        %2436 = vmatpush1.msra.mxu0 %v2312
        %2437 = vmatprep.subr.mxu0 %v2317
        %2438 = vmatpush1.msra.mxu0 %v2316
        %2439 = vmatprep.subr.mxu0 0.0
        %2440 = vmatpush1.msra.mxu0 0.0
        %2441 = vmatprep.subr.mxu0 0.0
        %2442 = vmatpush1.msra.mxu0 0.0
        %2443 = vmatprep.subr.mxu0 0.0
        %2444 = vmatpush1.msra.mxu0 0.0
        %2445 = vmatprep.subr.mxu0 0.0
        %2446 = vmatpush1.msra.mxu0 0.0
        %2447 = vmatprep.subr.mxu0 0.0
        %2448 = vmatpush1.msra.mxu0 0.0
        %2449 = vmatprep.subr.mxu0 0.0
        %2450 = vmatpush1.msra.mxu0 0.0
        %2451 = vmatprep.subr.mxu0 0.0
        %2452 = vmatpush1.msra.mxu0 0.0
        %2453 = vmatprep.subr.mxu0 0.0
        %2454 = vmatpush1.msra.mxu0 0.0
        %2455 = vmatprep.subr.mxu0 0.0
        %2456 = vmatpush1.msra.mxu0 0.0
        %2457 = vmatprep.subr.mxu0 0.0
        %2458 = vmatpush1.msra.mxu0 0.0
        %2459 = vmatprep.subr.mxu0 0.0
        %2460 = vmatpush1.msra.mxu0 0.0
        %2461 = vmatprep.subr.mxu0 0.0
        %2462 = vmatpush1.msra.mxu0 0.0
        %2463 = vmatprep.subr.mxu0 0.0
        %2464 = vmatpush1.msra.mxu0 0.0
        %2465 = vmatprep.subr.mxu0 0.0
        %2466 = vmatpush1.msra.mxu0 0.0
        %2467 = vmatprep.subr.mxu0 0.0
        %2468 = vmatpush1.msra.mxu0 0.0
        %2469 = vmatprep.subr.mxu0 0.0
        %2470 = vmatpush1.msra.mxu0 0.0
        %2471 = vmatprep.mubr.f32.mxu0 0.0
        %2472 = vmatmul.mubr.f32.gmra.mrb[0].mxu0 %v2250
        %v2473 = vpop.f32.mrb[0].mxu0
        %v2474 = vadd.f32 0.0, %v2473
        %v2475 = vpop.f32.mrb[0].mxu0
        %v2476 = vadd.f32 0.0, %v2475
        %2477 = vmatprep.mubr.f32.mxu0 0.0
        %2478 = vmatmul.mubr.f32.gmra.mrb[0].mxu0 %v2251
        %v2479 = vpop.f32.mrb[0].mxu0
        %v2480 = vadd.f32 0.0, %v2479
        %v2481 = vpop.f32.mrb[0].mxu0
        %v2482 = vadd.f32 0.0, %v2481
        %2483 = vmatprep.mubr.f32.mxu0 0.0
        %2484 = vmatmul.mubr.f32.gmra.mrb[0].mxu0 %v2252
        %v2485 = vpop.f32.mrb[0].mxu0
        %v2486 = vadd.f32 0.0, %v2485
        %v2487 = vpop.f32.mrb[0].mxu0
        %v2488 = vadd.f32 0.0, %v2487
        %2489 = vmatprep.mubr.f32.mxu0 0.0
        %2490 = vmatmul.mubr.f32.gmra.mrb[0].mxu0 %v2253
        %v2491 = vpop.f32.mrb[0].mxu0
        %v2492 = vadd.f32 0.0, %v2491
        %v2493 = vpop.f32.mrb[0].mxu0
        %v2494 = vadd.f32 0.0, %v2493
        %2495 = vdwg.mxu0
        %v2496 = vadd.f32 %v2234, %v2385
        %v2497 = vadd.f32 %v2235, %v2387
        %v2498 = vadd.f32 %v2236, %v2474
        %v2499 = vadd.f32 %v2237, %v2476
        %v2500 = vadd.f32 %v2238, %v2391
        %v2501 = vadd.f32 %v2239, %v2393
        %v2502 = vadd.f32 %v2240, %v2480
        %v2503 = vadd.f32 %v2241, %v2482
        %v2504 = vadd.f32 %v2242, %v2397
        %v2505 = vadd.f32 %v2243, %v2399
        %v2506 = vadd.f32 %v2244, %v2486
        %v2507 = vadd.f32 %v2245, %v2488
        %v2508 = vadd.f32 %v2246, %v2403
        %v2509 = vadd.f32 %v2247, %v2405
        %v2510 = vadd.f32 %v2248, %v2492
        %v2511 = vadd.f32 %v2249, %v2494
        %v2512 = vmul.f32 %v2496, 0.5
        %v2513 = vmul.f32 %v2500, 0.5
        %v2514 = vmul.f32 %v2504, 0.5
        %v2515 = vmul.f32 %v2508, 0.5
        %v2516 = vtanh.pop %v2512
        %v2517 = vtanh.pop %v2513
        %v2518 = vtanh.pop %v2514
        %v2519 = vtanh.pop %v2515
        %v2520 = vmul.f32 %v2516, 0.5
        %v2521 = vmul.f32 %v2517, 0.5
        %v2522 = vmul.f32 %v2518, 0.5
        %v2523 = vmul.f32 %v2519, 0.5
        %v2524 = vadd.f32 %v2520, 0.5
        %v2525 = vadd.f32 %v2521, 0.5
        %v2526 = vadd.f32 %v2522, 0.5
        %v2527 = vadd.f32 %v2523, 0.5
        %v2528 = vmul.f32 %v2497, 0.5
        %v2529 = vmul.f32 %v2501, 0.5
        %v2530 = vmul.f32 %v2505, 0.5
        %v2531 = vmul.f32 %v2509, 0.5
        %v2532 = vtanh.pop %v2528
        %v2533 = vtanh.pop %v2529
        %v2534 = vtanh.pop %v2530
        %v2535 = vtanh.pop %v2531
        %v2536 = vmul.f32 %v2532, 0.5
        %v2537 = vmul.f32 %v2533, 0.5
        %v2538 = vmul.f32 %v2534, 0.5
        %v2539 = vmul.f32 %v2535, 0.5
        %v2540 = vadd.f32 %v2536, 0.5
        %v2541 = vadd.f32 %v2537, 0.5
        %v2542 = vadd.f32 %v2538, 0.5
        %v2543 = vadd.f32 %v2539, 0.5
        %v2544 = vtanh.pop %v2498
        %v2545 = vtanh.pop %v2502
        %v2546 = vtanh.pop %v2506
        %v2547 = vtanh.pop %v2510
        %v2548 = vmul.f32 %v2499, 0.5
        %v2549 = vmul.f32 %v2503, 0.5
        %v2550 = vmul.f32 %v2507, 0.5
        %v2551 = vmul.f32 %v2511, 0.5
        %v2552 = vtanh.pop %v2548
        %v2553 = vtanh.pop %v2549
        %v2554 = vtanh.pop %v2550
        %v2555 = vtanh.pop %v2551
        %v2556 = vmul.f32 %v2552, 0.5
        %v2557 = vmul.f32 %v2553, 0.5
        %v2558 = vmul.f32 %v2554, 0.5
        %v2559 = vmul.f32 %v2555, 0.5
        %v2560 = vadd.f32 %v2556, 0.5
        %v2561 = vadd.f32 %v2557, 0.5
        %v2562 = vadd.f32 %v2558, 0.5
        %v2563 = vadd.f32 %v2559, 0.5
        %v2564 = vld [vmem:[#allocation3] sm:$0xff]
        %v2565 = vld [vmem:[#allocation3 + $0x8] sm:$0xff]
        %v2566 = vld [vmem:[#allocation3 + $0x10] sm:$0xff]
        %v2567 = vld [vmem:[#allocation3 + $0x18] sm:$0xff]
        %v2568 = vmul.f32 %v2540, %v2564
        %v2569 = vmul.f32 %v2541, %v2565
        %v2570 = vmul.f32 %v2542, %v2566
        %v2571 = vmul.f32 %v2543, %v2567
        %v2572 = vmul.f32 %v2524, %v2544
        %v2573 = vmul.f32 %v2525, %v2545
        %v2574 = vmul.f32 %v2526, %v2546
        %v2575 = vmul.f32 %v2527, %v2547
        %v2576 = vadd.f32 %v2568, %v2572
        %v2577 = vadd.f32 %v2569, %v2573
        %v2578 = vadd.f32 %v2570, %v2574
        %v2579 = vadd.f32 %v2571, %v2575
        %v2580 = vtanh.pop %v2576
        %v2581 = vtanh.pop %v2577
        %v2582 = vtanh.pop %v2578
        %v2583 = vtanh.pop %v2579
        %v2584 = vmul.f32 %v2560, %v2580
        %v2585 = vmul.f32 %v2561, %v2581
        %v2586 = vmul.f32 %v2562, %v2582
        %v2587 = vmul.f32 %v2563, %v2583
        %2588 = vst [vmem:[#allocation3] sm:$0xff] %v2576
        %2589 = vst [vmem:[#allocation3 + $0x8] sm:$0xff] %v2577
        %2590 = vst [vmem:[#allocation3 + $0x10] sm:$0xff] %v2578
        %2591 = vst [vmem:[#allocation3 + $0x18] sm:$0xff] %v2579
        %2592 = vst [vmem:[#allocation2] sm:$0xff] %v2584
        %2593 = vst [vmem:[#allocation2 + $0x8] sm:$0xff] %v2585
        %2594 = vst [vmem:[#allocation2 + $0x10] sm:$0xff] %v2586
        %2595 = vst [vmem:[#allocation2 + $0x18] sm:$0xff] %v2587
        %s2596 = scalar_lea.vmem [#allocation5], 96
        %2597 = vst [vmem:[%s2596] sm:$0xff] %v2584
        %2598 = vst [vmem:[%s2596 + $0x8] sm:$0xff] %v2585
        %2599 = vst [vmem:[%s2596 + $0x10] sm:$0xff] %v2586
        %2600 = vst [vmem:[%s2596 + $0x18] sm:$0xff] %v2587
        %s2601 = smul.u32 16, 4
        %s2602 = smul.addr %s2601, 8
        %s2603 = scalar_lea.vmem [#allocation4], %s2602
        %v2604 = vld [vmem:[%s2603] sm:$0xff]
        %v2605 = vld [vmem:[%s2603 + $0x8] sm:$0xff]
        %v2606 = vld [vmem:[%s2603 + $0x10] sm:$0xff]
        %v2607 = vld [vmem:[%s2603 + $0x18] sm:$0xff]
        %v2608 = vld [vmem:[%s2603 + $0x20] sm:$0xff]
        %v2609 = vld [vmem:[%s2603 + $0x28] sm:$0xff]
        %v2610 = vld [vmem:[%s2603 + $0x30] sm:$0xff]
        %v2611 = vld [vmem:[%s2603 + $0x38] sm:$0xff]
        %v2612 = vld [vmem:[%s2603 + $0x40] sm:$0xff]
        %v2613 = vld [vmem:[%s2603 + $0x48] sm:$0xff]
        %v2614 = vld [vmem:[%s2603 + $0x50] sm:$0xff]
        %v2615 = vld [vmem:[%s2603 + $0x58] sm:$0xff]
        %v2616 = vld [vmem:[%s2603 + $0x60] sm:$0xff]
        %v2617 = vld [vmem:[%s2603 + $0x68] sm:$0xff]
        %v2618 = vld [vmem:[%s2603 + $0x70] sm:$0xff]
        %v2619 = vld [vmem:[%s2603 + $0x78] sm:$0xff]
        %v2620 = vld [vmem:[#allocation2] sm:$0xff]
        %v2621 = vld [vmem:[#allocation2 + $0x8] sm:$0xff]
        %v2622 = vld [vmem:[#allocation2 + $0x10] sm:$0xff]
        %v2623 = vld [vmem:[#allocation2 + $0x18] sm:$0xff]
        %v2624 = vld [vmem:[%s2] sm:$0xff]
        %v2625 = vld [vmem:[%s2 + $0x8] sm:$0xff]
        %v2626 = vld [vmem:[%s2 + $0x10] sm:$0xff]
        %v2627 = vld [vmem:[%s2 + $0x18] sm:$0xff]
        %v2628 = vld [vmem:[%s2 + $0x20] sm:$0xff]
        %v2629 = vld [vmem:[%s2 + $0x28] sm:$0xff]
        %v2630 = vld [vmem:[%s2 + $0x30] sm:$0xff]
        %v2631 = vld [vmem:[%s2 + $0x38] sm:$0xff]
        %v2632 = vld [vmem:[%s2 + $0x40] sm:$0xff]
        %v2633 = vld [vmem:[%s2 + $0x48] sm:$0xff]
        %v2634 = vld [vmem:[%s2 + $0x50] sm:$0xff]
        %v2635 = vld [vmem:[%s2 + $0x58] sm:$0xff]
        %v2636 = vld [vmem:[%s2 + $0x60] sm:$0xff]
        %v2637 = vld [vmem:[%s2 + $0x68] sm:$0xff]
        %v2638 = vld [vmem:[%s2 + $0x70] sm:$0xff]
        %v2639 = vld [vmem:[%s2 + $0x78] sm:$0xff]
        %v2640 = vld [vmem:[%s2 + $0x80] sm:$0xff]
        %v2641 = vld [vmem:[%s2 + $0x88] sm:$0xff]
        %v2642 = vld [vmem:[%s2 + $0x90] sm:$0xff]
        %v2643 = vld [vmem:[%s2 + $0x98] sm:$0xff]
        %v2644 = vld [vmem:[%s2 + $0xa0] sm:$0xff]
        %v2645 = vld [vmem:[%s2 + $0xa8] sm:$0xff]
        %v2646 = vld [vmem:[%s2 + $0xb0] sm:$0xff]
        %v2647 = vld [vmem:[%s2 + $0xb8] sm:$0xff]
        %v2648 = vld [vmem:[%s2 + $0xc0] sm:$0xff]
        %v2649 = vld [vmem:[%s2 + $0xc8] sm:$0xff]
        %v2650 = vld [vmem:[%s2 + $0xd0] sm:$0xff]
        %v2651 = vld [vmem:[%s2 + $0xd8] sm:$0xff]
        %v2652 = vld [vmem:[%s2 + $0xe0] sm:$0xff]
        %v2653 = vld [vmem:[%s2 + $0xe8] sm:$0xff]
        %v2654 = vld [vmem:[%s2 + $0xf0] sm:$0xff]
        %v2655 = vld [vmem:[%s2 + $0xf8] sm:$0xff]
        %v2656 = vld [vmem:[%s2 + $0x100] sm:$0xff]
        %v2657 = vld [vmem:[%s2 + $0x108] sm:$0xff]
        %v2658 = vld [vmem:[%s2 + $0x110] sm:$0xff]
        %v2659 = vld [vmem:[%s2 + $0x118] sm:$0xff]
        %v2660 = vld [vmem:[%s2 + $0x120] sm:$0xff]
        %v2661 = vld [vmem:[%s2 + $0x128] sm:$0xff]
        %v2662 = vld [vmem:[%s2 + $0x130] sm:$0xff]
        %v2663 = vld [vmem:[%s2 + $0x138] sm:$0xff]
        %v2664 = vld [vmem:[%s2 + $0x140] sm:$0xff]
        %v2665 = vld [vmem:[%s2 + $0x148] sm:$0xff]
        %v2666 = vld [vmem:[%s2 + $0x150] sm:$0xff]
        %v2667 = vld [vmem:[%s2 + $0x158] sm:$0xff]
        %v2668 = vld [vmem:[%s2 + $0x160] sm:$0xff]
        %v2669 = vld [vmem:[%s2 + $0x168] sm:$0xff]
        %v2670 = vld [vmem:[%s2 + $0x170] sm:$0xff]
        %v2671 = vld [vmem:[%s2 + $0x178] sm:$0xff]
        %v2672 = vld [vmem:[%s2 + $0x180] sm:$0xff]
        %v2673 = vld [vmem:[%s2 + $0x188] sm:$0xff]
        %v2674 = vld [vmem:[%s2 + $0x190] sm:$0xff]
        %v2675 = vld [vmem:[%s2 + $0x198] sm:$0xff]
        %v2676 = vld [vmem:[%s2 + $0x1a0] sm:$0xff]
        %v2677 = vld [vmem:[%s2 + $0x1a8] sm:$0xff]
        %v2678 = vld [vmem:[%s2 + $0x1b0] sm:$0xff]
        %v2679 = vld [vmem:[%s2 + $0x1b8] sm:$0xff]
        %v2680 = vld [vmem:[%s2 + $0x1c0] sm:$0xff]
        %v2681 = vld [vmem:[%s2 + $0x1c8] sm:$0xff]
        %v2682 = vld [vmem:[%s2 + $0x1d0] sm:$0xff]
        %v2683 = vld [vmem:[%s2 + $0x1d8] sm:$0xff]
        %v2684 = vld [vmem:[%s2 + $0x1e0] sm:$0xff]
        %v2685 = vld [vmem:[%s2 + $0x1e8] sm:$0xff]
        %v2686 = vld [vmem:[%s2 + $0x1f0] sm:$0xff]
        %v2687 = vld [vmem:[%s2 + $0x1f8] sm:$0xff]
        %2688 = vmatprep.subr.mxu0 %v2625
        %2689 = vmatpush1.msra.mxu0 %v2624
        %2690 = vmatprep.subr.mxu0 %v2629
        %2691 = vmatpush1.msra.mxu0 %v2628
        %2692 = vmatprep.subr.mxu0 %v2633
        %2693 = vmatpush1.msra.mxu0 %v2632
        %2694 = vmatprep.subr.mxu0 %v2637
        %2695 = vmatpush1.msra.mxu0 %v2636
        %2696 = vmatprep.subr.mxu0 %v2641
        %2697 = vmatpush1.msra.mxu0 %v2640
        %2698 = vmatprep.subr.mxu0 %v2645
        %2699 = vmatpush1.msra.mxu0 %v2644
        %2700 = vmatprep.subr.mxu0 %v2649
        %2701 = vmatpush1.msra.mxu0 %v2648
        %2702 = vmatprep.subr.mxu0 %v2653
        %2703 = vmatpush1.msra.mxu0 %v2652
        %2704 = vmatprep.subr.mxu0 %v2657
        %2705 = vmatpush1.msra.mxu0 %v2656
        %2706 = vmatprep.subr.mxu0 %v2661
        %2707 = vmatpush1.msra.mxu0 %v2660
        %2708 = vmatprep.subr.mxu0 %v2665
        %2709 = vmatpush1.msra.mxu0 %v2664
        %2710 = vmatprep.subr.mxu0 %v2669
        %2711 = vmatpush1.msra.mxu0 %v2668
        %2712 = vmatprep.subr.mxu0 %v2673
        %2713 = vmatpush1.msra.mxu0 %v2672
        %2714 = vmatprep.subr.mxu0 %v2677
        %2715 = vmatpush1.msra.mxu0 %v2676
        %2716 = vmatprep.subr.mxu0 %v2681
        %2717 = vmatpush1.msra.mxu0 %v2680
        %2718 = vmatprep.subr.mxu0 %v2685
        %2719 = vmatpush1.msra.mxu0 %v2684
        %2720 = vmatprep.subr.mxu0 0.0
        %2721 = vmatpush1.msra.mxu0 0.0
        %2722 = vmatprep.subr.mxu0 0.0
        %2723 = vmatpush1.msra.mxu0 0.0
        %2724 = vmatprep.subr.mxu0 0.0
        %2725 = vmatpush1.msra.mxu0 0.0
        %2726 = vmatprep.subr.mxu0 0.0
        %2727 = vmatpush1.msra.mxu0 0.0
        %2728 = vmatprep.subr.mxu0 0.0
        %2729 = vmatpush1.msra.mxu0 0.0
        %2730 = vmatprep.subr.mxu0 0.0
        %2731 = vmatpush1.msra.mxu0 0.0
        %2732 = vmatprep.subr.mxu0 0.0
        %2733 = vmatpush1.msra.mxu0 0.0
        %2734 = vmatprep.subr.mxu0 0.0
        %2735 = vmatpush1.msra.mxu0 0.0
        %2736 = vmatprep.subr.mxu0 0.0
        %2737 = vmatpush1.msra.mxu0 0.0
        %2738 = vmatprep.subr.mxu0 0.0
        %2739 = vmatpush1.msra.mxu0 0.0
        %2740 = vmatprep.subr.mxu0 0.0
        %2741 = vmatpush1.msra.mxu0 0.0
        %2742 = vmatprep.subr.mxu0 0.0
        %2743 = vmatpush1.msra.mxu0 0.0
        %2744 = vmatprep.subr.mxu0 0.0
        %2745 = vmatpush1.msra.mxu0 0.0
        %2746 = vmatprep.subr.mxu0 0.0
        %2747 = vmatpush1.msra.mxu0 0.0
        %2748 = vmatprep.subr.mxu0 0.0
        %2749 = vmatpush1.msra.mxu0 0.0
        %2750 = vmatprep.subr.mxu0 0.0
        %2751 = vmatpush1.msra.mxu0 0.0
        %2752 = vmatprep.mubr.f32.mxu0 0.0
        %2753 = vmatmul.mubr.f32.gmra.mrb[0].mxu0 %v2620
        %v2754 = vpop.f32.mrb[0].mxu0
        %v2755 = vadd.f32 0.0, %v2754
        %v2756 = vpop.f32.mrb[0].mxu0
        %v2757 = vadd.f32 0.0, %v2756
        %2758 = vmatprep.mubr.f32.mxu0 0.0
        %2759 = vmatmul.mubr.f32.gmra.mrb[0].mxu0 %v2621
        %v2760 = vpop.f32.mrb[0].mxu0
        %v2761 = vadd.f32 0.0, %v2760
        %v2762 = vpop.f32.mrb[0].mxu0
        %v2763 = vadd.f32 0.0, %v2762
        %2764 = vmatprep.mubr.f32.mxu0 0.0
        %2765 = vmatmul.mubr.f32.gmra.mrb[0].mxu0 %v2622
        %v2766 = vpop.f32.mrb[0].mxu0
        %v2767 = vadd.f32 0.0, %v2766
        %v2768 = vpop.f32.mrb[0].mxu0
        %v2769 = vadd.f32 0.0, %v2768
        %2770 = vmatprep.mubr.f32.mxu0 0.0
        %2771 = vmatmul.mubr.f32.gmra.mrb[0].mxu0 %v2623
        %v2772 = vpop.f32.mrb[0].mxu0
        %v2773 = vadd.f32 0.0, %v2772
        %v2774 = vpop.f32.mrb[0].mxu0
        %v2775 = vadd.f32 0.0, %v2774
        %2776 = vdwg.mxu0
        %2777 = vmatprep.subr.mxu0 %v2627
        %2778 = vmatpush1.msra.mxu0 %v2626
        %2779 = vmatprep.subr.mxu0 %v2631
        %2780 = vmatpush1.msra.mxu0 %v2630
        %2781 = vmatprep.subr.mxu0 %v2635
        %2782 = vmatpush1.msra.mxu0 %v2634
        %2783 = vmatprep.subr.mxu0 %v2639
        %2784 = vmatpush1.msra.mxu0 %v2638
        %2785 = vmatprep.subr.mxu0 %v2643
        %2786 = vmatpush1.msra.mxu0 %v2642
        %2787 = vmatprep.subr.mxu0 %v2647
        %2788 = vmatpush1.msra.mxu0 %v2646
        %2789 = vmatprep.subr.mxu0 %v2651
        %2790 = vmatpush1.msra.mxu0 %v2650
        %2791 = vmatprep.subr.mxu0 %v2655
        %2792 = vmatpush1.msra.mxu0 %v2654
        %2793 = vmatprep.subr.mxu0 %v2659
        %2794 = vmatpush1.msra.mxu0 %v2658
        %2795 = vmatprep.subr.mxu0 %v2663
        %2796 = vmatpush1.msra.mxu0 %v2662
        %2797 = vmatprep.subr.mxu0 %v2667
        %2798 = vmatpush1.msra.mxu0 %v2666
        %2799 = vmatprep.subr.mxu0 %v2671
        %2800 = vmatpush1.msra.mxu0 %v2670
        %2801 = vmatprep.subr.mxu0 %v2675
        %2802 = vmatpush1.msra.mxu0 %v2674
        %2803 = vmatprep.subr.mxu0 %v2679
        %2804 = vmatpush1.msra.mxu0 %v2678
        %2805 = vmatprep.subr.mxu0 %v2683
        %2806 = vmatpush1.msra.mxu0 %v2682
        %2807 = vmatprep.subr.mxu0 %v2687
        %2808 = vmatpush1.msra.mxu0 %v2686
        %2809 = vmatprep.subr.mxu0 0.0
        %2810 = vmatpush1.msra.mxu0 0.0
        %2811 = vmatprep.subr.mxu0 0.0
        %2812 = vmatpush1.msra.mxu0 0.0
        %2813 = vmatprep.subr.mxu0 0.0
        %2814 = vmatpush1.msra.mxu0 0.0
        %2815 = vmatprep.subr.mxu0 0.0
        %2816 = vmatpush1.msra.mxu0 0.0
        %2817 = vmatprep.subr.mxu0 0.0
        %2818 = vmatpush1.msra.mxu0 0.0
        %2819 = vmatprep.subr.mxu0 0.0
        %2820 = vmatpush1.msra.mxu0 0.0
        %2821 = vmatprep.subr.mxu0 0.0
        %2822 = vmatpush1.msra.mxu0 0.0
        %2823 = vmatprep.subr.mxu0 0.0
        %2824 = vmatpush1.msra.mxu0 0.0
        %2825 = vmatprep.subr.mxu0 0.0
        %2826 = vmatpush1.msra.mxu0 0.0
        %2827 = vmatprep.subr.mxu0 0.0
        %2828 = vmatpush1.msra.mxu0 0.0
        %2829 = vmatprep.subr.mxu0 0.0
        %2830 = vmatpush1.msra.mxu0 0.0
        %2831 = vmatprep.subr.mxu0 0.0
        %2832 = vmatpush1.msra.mxu0 0.0
        %2833 = vmatprep.subr.mxu0 0.0
        %2834 = vmatpush1.msra.mxu0 0.0
        %2835 = vmatprep.subr.mxu0 0.0
        %2836 = vmatpush1.msra.mxu0 0.0
        %2837 = vmatprep.subr.mxu0 0.0
        %2838 = vmatpush1.msra.mxu0 0.0
        %2839 = vmatprep.subr.mxu0 0.0
        %2840 = vmatpush1.msra.mxu0 0.0
        %2841 = vmatprep.mubr.f32.mxu0 0.0
        %2842 = vmatmul.mubr.f32.gmra.mrb[0].mxu0 %v2620
        %v2843 = vpop.f32.mrb[0].mxu0
        %v2844 = vadd.f32 0.0, %v2843
        %v2845 = vpop.f32.mrb[0].mxu0
        %v2846 = vadd.f32 0.0, %v2845
        %2847 = vmatprep.mubr.f32.mxu0 0.0
        %2848 = vmatmul.mubr.f32.gmra.mrb[0].mxu0 %v2621
        %v2849 = vpop.f32.mrb[0].mxu0
        %v2850 = vadd.f32 0.0, %v2849
        %v2851 = vpop.f32.mrb[0].mxu0
        %v2852 = vadd.f32 0.0, %v2851
        %2853 = vmatprep.mubr.f32.mxu0 0.0
        %2854 = vmatmul.mubr.f32.gmra.mrb[0].mxu0 %v2622
        %v2855 = vpop.f32.mrb[0].mxu0
        %v2856 = vadd.f32 0.0, %v2855
        %v2857 = vpop.f32.mrb[0].mxu0
        %v2858 = vadd.f32 0.0, %v2857
        %2859 = vmatprep.mubr.f32.mxu0 0.0
        %2860 = vmatmul.mubr.f32.gmra.mrb[0].mxu0 %v2623
        %v2861 = vpop.f32.mrb[0].mxu0
        %v2862 = vadd.f32 0.0, %v2861
        %v2863 = vpop.f32.mrb[0].mxu0
        %v2864 = vadd.f32 0.0, %v2863
        %2865 = vdwg.mxu0
        %v2866 = vadd.f32 %v2604, %v2755
        %v2867 = vadd.f32 %v2605, %v2757
        %v2868 = vadd.f32 %v2606, %v2844
        %v2869 = vadd.f32 %v2607, %v2846
        %v2870 = vadd.f32 %v2608, %v2761
        %v2871 = vadd.f32 %v2609, %v2763
        %v2872 = vadd.f32 %v2610, %v2850
        %v2873 = vadd.f32 %v2611, %v2852
        %v2874 = vadd.f32 %v2612, %v2767
        %v2875 = vadd.f32 %v2613, %v2769
        %v2876 = vadd.f32 %v2614, %v2856
        %v2877 = vadd.f32 %v2615, %v2858
        %v2878 = vadd.f32 %v2616, %v2773
        %v2879 = vadd.f32 %v2617, %v2775
        %v2880 = vadd.f32 %v2618, %v2862
        %v2881 = vadd.f32 %v2619, %v2864
        %v2882 = vmul.f32 %v2866, 0.5
        %v2883 = vmul.f32 %v2870, 0.5
        %v2884 = vmul.f32 %v2874, 0.5
        %v2885 = vmul.f32 %v2878, 0.5
        %v2886 = vtanh.pop %v2882
        %v2887 = vtanh.pop %v2883
        %v2888 = vtanh.pop %v2884
        %v2889 = vtanh.pop %v2885
        %v2890 = vmul.f32 %v2886, 0.5
        %v2891 = vmul.f32 %v2887, 0.5
        %v2892 = vmul.f32 %v2888, 0.5
        %v2893 = vmul.f32 %v2889, 0.5
        %v2894 = vadd.f32 %v2890, 0.5
        %v2895 = vadd.f32 %v2891, 0.5
        %v2896 = vadd.f32 %v2892, 0.5
        %v2897 = vadd.f32 %v2893, 0.5
        %v2898 = vmul.f32 %v2867, 0.5
        %v2899 = vmul.f32 %v2871, 0.5
        %v2900 = vmul.f32 %v2875, 0.5
        %v2901 = vmul.f32 %v2879, 0.5
        %v2902 = vtanh.pop %v2898
        %v2903 = vtanh.pop %v2899
        %v2904 = vtanh.pop %v2900
        %v2905 = vtanh.pop %v2901
        %v2906 = vmul.f32 %v2902, 0.5
        %v2907 = vmul.f32 %v2903, 0.5
        %v2908 = vmul.f32 %v2904, 0.5
        %v2909 = vmul.f32 %v2905, 0.5
        %v2910 = vadd.f32 %v2906, 0.5
        %v2911 = vadd.f32 %v2907, 0.5
        %v2912 = vadd.f32 %v2908, 0.5
        %v2913 = vadd.f32 %v2909, 0.5
        %v2914 = vtanh.pop %v2868
        %v2915 = vtanh.pop %v2872
        %v2916 = vtanh.pop %v2876
        %v2917 = vtanh.pop %v2880
        %v2918 = vmul.f32 %v2869, 0.5
        %v2919 = vmul.f32 %v2873, 0.5
        %v2920 = vmul.f32 %v2877, 0.5
        %v2921 = vmul.f32 %v2881, 0.5
        %v2922 = vtanh.pop %v2918
        %v2923 = vtanh.pop %v2919
        %v2924 = vtanh.pop %v2920
        %v2925 = vtanh.pop %v2921
        %v2926 = vmul.f32 %v2922, 0.5
        %v2927 = vmul.f32 %v2923, 0.5
        %v2928 = vmul.f32 %v2924, 0.5
        %v2929 = vmul.f32 %v2925, 0.5
        %v2930 = vadd.f32 %v2926, 0.5
        %v2931 = vadd.f32 %v2927, 0.5
        %v2932 = vadd.f32 %v2928, 0.5
        %v2933 = vadd.f32 %v2929, 0.5
        %v2934 = vld [vmem:[#allocation3] sm:$0xff]
        %v2935 = vld [vmem:[#allocation3 + $0x8] sm:$0xff]
        %v2936 = vld [vmem:[#allocation3 + $0x10] sm:$0xff]
        %v2937 = vld [vmem:[#allocation3 + $0x18] sm:$0xff]
        %v2938 = vmul.f32 %v2910, %v2934
        %v2939 = vmul.f32 %v2911, %v2935
        %v2940 = vmul.f32 %v2912, %v2936
        %v2941 = vmul.f32 %v2913, %v2937
        %v2942 = vmul.f32 %v2894, %v2914
        %v2943 = vmul.f32 %v2895, %v2915
        %v2944 = vmul.f32 %v2896, %v2916
        %v2945 = vmul.f32 %v2897, %v2917
        %v2946 = vadd.f32 %v2938, %v2942
        %v2947 = vadd.f32 %v2939, %v2943
        %v2948 = vadd.f32 %v2940, %v2944
        %v2949 = vadd.f32 %v2941, %v2945
        %v2950 = vtanh.pop %v2946
        %v2951 = vtanh.pop %v2947
        %v2952 = vtanh.pop %v2948
        %v2953 = vtanh.pop %v2949
        %v2954 = vmul.f32 %v2930, %v2950
        %v2955 = vmul.f32 %v2931, %v2951
        %v2956 = vmul.f32 %v2932, %v2952
        %v2957 = vmul.f32 %v2933, %v2953
        %2958 = vst [vmem:[#allocation3] sm:$0xff] %v2946
        %2959 = vst [vmem:[#allocation3 + $0x8] sm:$0xff] %v2947
        %2960 = vst [vmem:[#allocation3 + $0x10] sm:$0xff] %v2948
        %2961 = vst [vmem:[#allocation3 + $0x18] sm:$0xff] %v2949
        %2962 = vst [vmem:[#allocation2] sm:$0xff] %v2954
        %2963 = vst [vmem:[#allocation2 + $0x8] sm:$0xff] %v2955
        %2964 = vst [vmem:[#allocation2 + $0x10] sm:$0xff] %v2956
        %2965 = vst [vmem:[#allocation2 + $0x18] sm:$0xff] %v2957
        %s2966 = scalar_lea.vmem [#allocation5], 128
        %2967 = vst [vmem:[%s2966] sm:$0xff] %v2954
        %2968 = vst [vmem:[%s2966 + $0x8] sm:$0xff] %v2955
        %2969 = vst [vmem:[%s2966 + $0x10] sm:$0xff] %v2956
        %2970 = vst [vmem:[%s2966 + $0x18] sm:$0xff] %v2957
        %s2971 = smul.u32 20, 4
        %s2972 = smul.addr %s2971, 8
        %s2973 = scalar_lea.vmem [#allocation4], %s2972
        %v2974 = vld [vmem:[%s2973] sm:$0xff]
        %v2975 = vld [vmem:[%s2973 + $0x8] sm:$0xff]
        %v2976 = vld [vmem:[%s2973 + $0x10] sm:$0xff]
        %v2977 = vld [vmem:[%s2973 + $0x18] sm:$0xff]
        %v2978 = vld [vmem:[%s2973 + $0x20] sm:$0xff]
        %v2979 = vld [vmem:[%s2973 + $0x28] sm:$0xff]
        %v2980 = vld [vmem:[%s2973 + $0x30] sm:$0xff]
        %v2981 = vld [vmem:[%s2973 + $0x38] sm:$0xff]
        %v2982 = vld [vmem:[%s2973 + $0x40] sm:$0xff]
        %v2983 = vld [vmem:[%s2973 + $0x48] sm:$0xff]
        %v2984 = vld [vmem:[%s2973 + $0x50] sm:$0xff]
        %v2985 = vld [vmem:[%s2973 + $0x58] sm:$0xff]
        %v2986 = vld [vmem:[%s2973 + $0x60] sm:$0xff]
        %v2987 = vld [vmem:[%s2973 + $0x68] sm:$0xff]
        %v2988 = vld [vmem:[%s2973 + $0x70] sm:$0xff]
        %v2989 = vld [vmem:[%s2973 + $0x78] sm:$0xff]
        %v2990 = vld [vmem:[#allocation2] sm:$0xff]
        %v2991 = vld [vmem:[#allocation2 + $0x8] sm:$0xff]
        %v2992 = vld [vmem:[#allocation2 + $0x10] sm:$0xff]
        %v2993 = vld [vmem:[#allocation2 + $0x18] sm:$0xff]
        %v2994 = vld [vmem:[%s2] sm:$0xff]
        %v2995 = vld [vmem:[%s2 + $0x8] sm:$0xff]
        %v2996 = vld [vmem:[%s2 + $0x10] sm:$0xff]
        %v2997 = vld [vmem:[%s2 + $0x18] sm:$0xff]
        %v2998 = vld [vmem:[%s2 + $0x20] sm:$0xff]
        %v2999 = vld [vmem:[%s2 + $0x28] sm:$0xff]
        %v3000 = vld [vmem:[%s2 + $0x30] sm:$0xff]
        %v3001 = vld [vmem:[%s2 + $0x38] sm:$0xff]
        %v3002 = vld [vmem:[%s2 + $0x40] sm:$0xff]
        %v3003 = vld [vmem:[%s2 + $0x48] sm:$0xff]
        %v3004 = vld [vmem:[%s2 + $0x50] sm:$0xff]
        %v3005 = vld [vmem:[%s2 + $0x58] sm:$0xff]
        %v3006 = vld [vmem:[%s2 + $0x60] sm:$0xff]
        %v3007 = vld [vmem:[%s2 + $0x68] sm:$0xff]
        %v3008 = vld [vmem:[%s2 + $0x70] sm:$0xff]
        %v3009 = vld [vmem:[%s2 + $0x78] sm:$0xff]
        %v3010 = vld [vmem:[%s2 + $0x80] sm:$0xff]
        %v3011 = vld [vmem:[%s2 + $0x88] sm:$0xff]
        %v3012 = vld [vmem:[%s2 + $0x90] sm:$0xff]
        %v3013 = vld [vmem:[%s2 + $0x98] sm:$0xff]
        %v3014 = vld [vmem:[%s2 + $0xa0] sm:$0xff]
        %v3015 = vld [vmem:[%s2 + $0xa8] sm:$0xff]
        %v3016 = vld [vmem:[%s2 + $0xb0] sm:$0xff]
        %v3017 = vld [vmem:[%s2 + $0xb8] sm:$0xff]
        %v3018 = vld [vmem:[%s2 + $0xc0] sm:$0xff]
        %v3019 = vld [vmem:[%s2 + $0xc8] sm:$0xff]
        %v3020 = vld [vmem:[%s2 + $0xd0] sm:$0xff]
        %v3021 = vld [vmem:[%s2 + $0xd8] sm:$0xff]
        %v3022 = vld [vmem:[%s2 + $0xe0] sm:$0xff]
        %v3023 = vld [vmem:[%s2 + $0xe8] sm:$0xff]
        %v3024 = vld [vmem:[%s2 + $0xf0] sm:$0xff]
        %v3025 = vld [vmem:[%s2 + $0xf8] sm:$0xff]
        %v3026 = vld [vmem:[%s2 + $0x100] sm:$0xff]
        %v3027 = vld [vmem:[%s2 + $0x108] sm:$0xff]
        %v3028 = vld [vmem:[%s2 + $0x110] sm:$0xff]
        %v3029 = vld [vmem:[%s2 + $0x118] sm:$0xff]
        %v3030 = vld [vmem:[%s2 + $0x120] sm:$0xff]
        %v3031 = vld [vmem:[%s2 + $0x128] sm:$0xff]
        %v3032 = vld [vmem:[%s2 + $0x130] sm:$0xff]
        %v3033 = vld [vmem:[%s2 + $0x138] sm:$0xff]
        %v3034 = vld [vmem:[%s2 + $0x140] sm:$0xff]
        %v3035 = vld [vmem:[%s2 + $0x148] sm:$0xff]
        %v3036 = vld [vmem:[%s2 + $0x150] sm:$0xff]
        %v3037 = vld [vmem:[%s2 + $0x158] sm:$0xff]
        %v3038 = vld [vmem:[%s2 + $0x160] sm:$0xff]
        %v3039 = vld [vmem:[%s2 + $0x168] sm:$0xff]
        %v3040 = vld [vmem:[%s2 + $0x170] sm:$0xff]
        %v3041 = vld [vmem:[%s2 + $0x178] sm:$0xff]
        %v3042 = vld [vmem:[%s2 + $0x180] sm:$0xff]
        %v3043 = vld [vmem:[%s2 + $0x188] sm:$0xff]
        %v3044 = vld [vmem:[%s2 + $0x190] sm:$0xff]
        %v3045 = vld [vmem:[%s2 + $0x198] sm:$0xff]
        %v3046 = vld [vmem:[%s2 + $0x1a0] sm:$0xff]
        %v3047 = vld [vmem:[%s2 + $0x1a8] sm:$0xff]
        %v3048 = vld [vmem:[%s2 + $0x1b0] sm:$0xff]
        %v3049 = vld [vmem:[%s2 + $0x1b8] sm:$0xff]
        %v3050 = vld [vmem:[%s2 + $0x1c0] sm:$0xff]
        %v3051 = vld [vmem:[%s2 + $0x1c8] sm:$0xff]
        %v3052 = vld [vmem:[%s2 + $0x1d0] sm:$0xff]
        %v3053 = vld [vmem:[%s2 + $0x1d8] sm:$0xff]
        %v3054 = vld [vmem:[%s2 + $0x1e0] sm:$0xff]
        %v3055 = vld [vmem:[%s2 + $0x1e8] sm:$0xff]
        %v3056 = vld [vmem:[%s2 + $0x1f0] sm:$0xff]
        %v3057 = vld [vmem:[%s2 + $0x1f8] sm:$0xff]
        %3058 = vmatprep.subr.mxu0 %v2995
        %3059 = vmatpush1.msra.mxu0 %v2994
        %3060 = vmatprep.subr.mxu0 %v2999
        %3061 = vmatpush1.msra.mxu0 %v2998
        %3062 = vmatprep.subr.mxu0 %v3003
        %3063 = vmatpush1.msra.mxu0 %v3002
        %3064 = vmatprep.subr.mxu0 %v3007
        %3065 = vmatpush1.msra.mxu0 %v3006
        %3066 = vmatprep.subr.mxu0 %v3011
        %3067 = vmatpush1.msra.mxu0 %v3010
        %3068 = vmatprep.subr.mxu0 %v3015
        %3069 = vmatpush1.msra.mxu0 %v3014
        %3070 = vmatprep.subr.mxu0 %v3019
        %3071 = vmatpush1.msra.mxu0 %v3018
        %3072 = vmatprep.subr.mxu0 %v3023
        %3073 = vmatpush1.msra.mxu0 %v3022
        %3074 = vmatprep.subr.mxu0 %v3027
        %3075 = vmatpush1.msra.mxu0 %v3026
        %3076 = vmatprep.subr.mxu0 %v3031
        %3077 = vmatpush1.msra.mxu0 %v3030
        %3078 = vmatprep.subr.mxu0 %v3035
        %3079 = vmatpush1.msra.mxu0 %v3034
        %3080 = vmatprep.subr.mxu0 %v3039
        %3081 = vmatpush1.msra.mxu0 %v3038
        %3082 = vmatprep.subr.mxu0 %v3043
        %3083 = vmatpush1.msra.mxu0 %v3042
        %3084 = vmatprep.subr.mxu0 %v3047
        %3085 = vmatpush1.msra.mxu0 %v3046
        %3086 = vmatprep.subr.mxu0 %v3051
        %3087 = vmatpush1.msra.mxu0 %v3050
        %3088 = vmatprep.subr.mxu0 %v3055
        %3089 = vmatpush1.msra.mxu0 %v3054
        %3090 = vmatprep.subr.mxu0 0.0
        %3091 = vmatpush1.msra.mxu0 0.0
        %3092 = vmatprep.subr.mxu0 0.0
        %3093 = vmatpush1.msra.mxu0 0.0
        %3094 = vmatprep.subr.mxu0 0.0
        %3095 = vmatpush1.msra.mxu0 0.0
        %3096 = vmatprep.subr.mxu0 0.0
        %3097 = vmatpush1.msra.mxu0 0.0
        %3098 = vmatprep.subr.mxu0 0.0
        %3099 = vmatpush1.msra.mxu0 0.0
        %3100 = vmatprep.subr.mxu0 0.0
        %3101 = vmatpush1.msra.mxu0 0.0
        %3102 = vmatprep.subr.mxu0 0.0
        %3103 = vmatpush1.msra.mxu0 0.0
        %3104 = vmatprep.subr.mxu0 0.0
        %3105 = vmatpush1.msra.mxu0 0.0
        %3106 = vmatprep.subr.mxu0 0.0
        %3107 = vmatpush1.msra.mxu0 0.0
        %3108 = vmatprep.subr.mxu0 0.0
        %3109 = vmatpush1.msra.mxu0 0.0
        %3110 = vmatprep.subr.mxu0 0.0
        %3111 = vmatpush1.msra.mxu0 0.0
        %3112 = vmatprep.subr.mxu0 0.0
        %3113 = vmatpush1.msra.mxu0 0.0
        %3114 = vmatprep.subr.mxu0 0.0
        %3115 = vmatpush1.msra.mxu0 0.0
        %3116 = vmatprep.subr.mxu0 0.0
        %3117 = vmatpush1.msra.mxu0 0.0
        %3118 = vmatprep.subr.mxu0 0.0
        %3119 = vmatpush1.msra.mxu0 0.0
        %3120 = vmatprep.subr.mxu0 0.0
        %3121 = vmatpush1.msra.mxu0 0.0
        %3122 = vmatprep.mubr.f32.mxu0 0.0
        %3123 = vmatmul.mubr.f32.gmra.mrb[0].mxu0 %v2990
        %v3124 = vpop.f32.mrb[0].mxu0
        %v3125 = vadd.f32 0.0, %v3124
        %v3126 = vpop.f32.mrb[0].mxu0
        %v3127 = vadd.f32 0.0, %v3126
        %3128 = vmatprep.mubr.f32.mxu0 0.0
        %3129 = vmatmul.mubr.f32.gmra.mrb[0].mxu0 %v2991
        %v3130 = vpop.f32.mrb[0].mxu0
        %v3131 = vadd.f32 0.0, %v3130
        %v3132 = vpop.f32.mrb[0].mxu0
        %v3133 = vadd.f32 0.0, %v3132
        %3134 = vmatprep.mubr.f32.mxu0 0.0
        %3135 = vmatmul.mubr.f32.gmra.mrb[0].mxu0 %v2992
        %v3136 = vpop.f32.mrb[0].mxu0
        %v3137 = vadd.f32 0.0, %v3136
        %v3138 = vpop.f32.mrb[0].mxu0
        %v3139 = vadd.f32 0.0, %v3138
        %3140 = vmatprep.mubr.f32.mxu0 0.0
        %3141 = vmatmul.mubr.f32.gmra.mrb[0].mxu0 %v2993
        %v3142 = vpop.f32.mrb[0].mxu0
        %v3143 = vadd.f32 0.0, %v3142
        %v3144 = vpop.f32.mrb[0].mxu0
        %v3145 = vadd.f32 0.0, %v3144
        %3146 = vdwg.mxu0
        %3147 = vmatprep.subr.mxu0 %v2997
        %3148 = vmatpush1.msra.mxu0 %v2996
        %3149 = vmatprep.subr.mxu0 %v3001
        %3150 = vmatpush1.msra.mxu0 %v3000
        %3151 = vmatprep.subr.mxu0 %v3005
        %3152 = vmatpush1.msra.mxu0 %v3004
        %3153 = vmatprep.subr.mxu0 %v3009
        %3154 = vmatpush1.msra.mxu0 %v3008
        %3155 = vmatprep.subr.mxu0 %v3013
        %3156 = vmatpush1.msra.mxu0 %v3012
        %3157 = vmatprep.subr.mxu0 %v3017
        %3158 = vmatpush1.msra.mxu0 %v3016
        %3159 = vmatprep.subr.mxu0 %v3021
        %3160 = vmatpush1.msra.mxu0 %v3020
        %3161 = vmatprep.subr.mxu0 %v3025
        %3162 = vmatpush1.msra.mxu0 %v3024
        %3163 = vmatprep.subr.mxu0 %v3029
        %3164 = vmatpush1.msra.mxu0 %v3028
        %3165 = vmatprep.subr.mxu0 %v3033
        %3166 = vmatpush1.msra.mxu0 %v3032
        %3167 = vmatprep.subr.mxu0 %v3037
        %3168 = vmatpush1.msra.mxu0 %v3036
        %3169 = vmatprep.subr.mxu0 %v3041
        %3170 = vmatpush1.msra.mxu0 %v3040
        %3171 = vmatprep.subr.mxu0 %v3045
        %3172 = vmatpush1.msra.mxu0 %v3044
        %3173 = vmatprep.subr.mxu0 %v3049
        %3174 = vmatpush1.msra.mxu0 %v3048
        %3175 = vmatprep.subr.mxu0 %v3053
        %3176 = vmatpush1.msra.mxu0 %v3052
        %3177 = vmatprep.subr.mxu0 %v3057
        %3178 = vmatpush1.msra.mxu0 %v3056
        %3179 = vmatprep.subr.mxu0 0.0
        %3180 = vmatpush1.msra.mxu0 0.0
        %3181 = vmatprep.subr.mxu0 0.0
        %3182 = vmatpush1.msra.mxu0 0.0
        %3183 = vmatprep.subr.mxu0 0.0
        %3184 = vmatpush1.msra.mxu0 0.0
        %3185 = vmatprep.subr.mxu0 0.0
        %3186 = vmatpush1.msra.mxu0 0.0
        %3187 = vmatprep.subr.mxu0 0.0
        %3188 = vmatpush1.msra.mxu0 0.0
        %3189 = vmatprep.subr.mxu0 0.0
        %3190 = vmatpush1.msra.mxu0 0.0
        %3191 = vmatprep.subr.mxu0 0.0
        %3192 = vmatpush1.msra.mxu0 0.0
        %3193 = vmatprep.subr.mxu0 0.0
        %3194 = vmatpush1.msra.mxu0 0.0
        %3195 = vmatprep.subr.mxu0 0.0
        %3196 = vmatpush1.msra.mxu0 0.0
        %3197 = vmatprep.subr.mxu0 0.0
        %3198 = vmatpush1.msra.mxu0 0.0
        %3199 = vmatprep.subr.mxu0 0.0
        %3200 = vmatpush1.msra.mxu0 0.0
        %3201 = vmatprep.subr.mxu0 0.0
        %3202 = vmatpush1.msra.mxu0 0.0
        %3203 = vmatprep.subr.mxu0 0.0
        %3204 = vmatpush1.msra.mxu0 0.0
        %3205 = vmatprep.subr.mxu0 0.0
        %3206 = vmatpush1.msra.mxu0 0.0
        %3207 = vmatprep.subr.mxu0 0.0
        %3208 = vmatpush1.msra.mxu0 0.0
        %3209 = vmatprep.subr.mxu0 0.0
        %3210 = vmatpush1.msra.mxu0 0.0
        %3211 = vmatprep.mubr.f32.mxu0 0.0
        %3212 = vmatmul.mubr.f32.gmra.mrb[0].mxu0 %v2990
        %v3213 = vpop.f32.mrb[0].mxu0
        %v3214 = vadd.f32 0.0, %v3213
        %v3215 = vpop.f32.mrb[0].mxu0
        %v3216 = vadd.f32 0.0, %v3215
        %3217 = vmatprep.mubr.f32.mxu0 0.0
        %3218 = vmatmul.mubr.f32.gmra.mrb[0].mxu0 %v2991
        %v3219 = vpop.f32.mrb[0].mxu0
        %v3220 = vadd.f32 0.0, %v3219
        %v3221 = vpop.f32.mrb[0].mxu0
        %v3222 = vadd.f32 0.0, %v3221
        %3223 = vmatprep.mubr.f32.mxu0 0.0
        %3224 = vmatmul.mubr.f32.gmra.mrb[0].mxu0 %v2992
        %v3225 = vpop.f32.mrb[0].mxu0
        %v3226 = vadd.f32 0.0, %v3225
        %v3227 = vpop.f32.mrb[0].mxu0
        %v3228 = vadd.f32 0.0, %v3227
        %3229 = vmatprep.mubr.f32.mxu0 0.0
        %3230 = vmatmul.mubr.f32.gmra.mrb[0].mxu0 %v2993
        %v3231 = vpop.f32.mrb[0].mxu0
        %v3232 = vadd.f32 0.0, %v3231
        %v3233 = vpop.f32.mrb[0].mxu0
        %v3234 = vadd.f32 0.0, %v3233
        %3235 = vdwg.mxu0
        %v3236 = vadd.f32 %v2974, %v3125
        %v3237 = vadd.f32 %v2975, %v3127
        %v3238 = vadd.f32 %v2976, %v3214
        %v3239 = vadd.f32 %v2977, %v3216
        %v3240 = vadd.f32 %v2978, %v3131
        %v3241 = vadd.f32 %v2979, %v3133
        %v3242 = vadd.f32 %v2980, %v3220
        %v3243 = vadd.f32 %v2981, %v3222
        %v3244 = vadd.f32 %v2982, %v3137
        %v3245 = vadd.f32 %v2983, %v3139
        %v3246 = vadd.f32 %v2984, %v3226
        %v3247 = vadd.f32 %v2985, %v3228
        %v3248 = vadd.f32 %v2986, %v3143
        %v3249 = vadd.f32 %v2987, %v3145
        %v3250 = vadd.f32 %v2988, %v3232
        %v3251 = vadd.f32 %v2989, %v3234
        %v3252 = vmul.f32 %v3236, 0.5
        %v3253 = vmul.f32 %v3240, 0.5
        %v3254 = vmul.f32 %v3244, 0.5
        %v3255 = vmul.f32 %v3248, 0.5
        %v3256 = vtanh.pop %v3252
        %v3257 = vtanh.pop %v3253
        %v3258 = vtanh.pop %v3254
        %v3259 = vtanh.pop %v3255
        %v3260 = vmul.f32 %v3256, 0.5
        %v3261 = vmul.f32 %v3257, 0.5
        %v3262 = vmul.f32 %v3258, 0.5
        %v3263 = vmul.f32 %v3259, 0.5
        %v3264 = vadd.f32 %v3260, 0.5
        %v3265 = vadd.f32 %v3261, 0.5
        %v3266 = vadd.f32 %v3262, 0.5
        %v3267 = vadd.f32 %v3263, 0.5
        %v3268 = vmul.f32 %v3237, 0.5
        %v3269 = vmul.f32 %v3241, 0.5
        %v3270 = vmul.f32 %v3245, 0.5
        %v3271 = vmul.f32 %v3249, 0.5
        %v3272 = vtanh.pop %v3268
        %v3273 = vtanh.pop %v3269
        %v3274 = vtanh.pop %v3270
        %v3275 = vtanh.pop %v3271
        %v3276 = vmul.f32 %v3272, 0.5
        %v3277 = vmul.f32 %v3273, 0.5
        %v3278 = vmul.f32 %v3274, 0.5
        %v3279 = vmul.f32 %v3275, 0.5
        %v3280 = vadd.f32 %v3276, 0.5
        %v3281 = vadd.f32 %v3277, 0.5
        %v3282 = vadd.f32 %v3278, 0.5
        %v3283 = vadd.f32 %v3279, 0.5
        %v3284 = vtanh.pop %v3238
        %v3285 = vtanh.pop %v3242
        %v3286 = vtanh.pop %v3246
        %v3287 = vtanh.pop %v3250
        %v3288 = vmul.f32 %v3239, 0.5
        %v3289 = vmul.f32 %v3243, 0.5
        %v3290 = vmul.f32 %v3247, 0.5
        %v3291 = vmul.f32 %v3251, 0.5
        %v3292 = vtanh.pop %v3288
        %v3293 = vtanh.pop %v3289
        %v3294 = vtanh.pop %v3290
        %v3295 = vtanh.pop %v3291
        %v3296 = vmul.f32 %v3292, 0.5
        %v3297 = vmul.f32 %v3293, 0.5
        %v3298 = vmul.f32 %v3294, 0.5
        %v3299 = vmul.f32 %v3295, 0.5
        %v3300 = vadd.f32 %v3296, 0.5
        %v3301 = vadd.f32 %v3297, 0.5
        %v3302 = vadd.f32 %v3298, 0.5
        %v3303 = vadd.f32 %v3299, 0.5
        %v3304 = vld [vmem:[#allocation3] sm:$0xff]
        %v3305 = vld [vmem:[#allocation3 + $0x8] sm:$0xff]
        %v3306 = vld [vmem:[#allocation3 + $0x10] sm:$0xff]
        %v3307 = vld [vmem:[#allocation3 + $0x18] sm:$0xff]
        %v3308 = vmul.f32 %v3280, %v3304
        %v3309 = vmul.f32 %v3281, %v3305
        %v3310 = vmul.f32 %v3282, %v3306
        %v3311 = vmul.f32 %v3283, %v3307
        %v3312 = vmul.f32 %v3264, %v3284
        %v3313 = vmul.f32 %v3265, %v3285
        %v3314 = vmul.f32 %v3266, %v3286
        %v3315 = vmul.f32 %v3267, %v3287
        %v3316 = vadd.f32 %v3308, %v3312
        %v3317 = vadd.f32 %v3309, %v3313
        %v3318 = vadd.f32 %v3310, %v3314
        %v3319 = vadd.f32 %v3311, %v3315
        %v3320 = vtanh.pop %v3316
        %v3321 = vtanh.pop %v3317
        %v3322 = vtanh.pop %v3318
        %v3323 = vtanh.pop %v3319
        %v3324 = vmul.f32 %v3300, %v3320
        %v3325 = vmul.f32 %v3301, %v3321
        %v3326 = vmul.f32 %v3302, %v3322
        %v3327 = vmul.f32 %v3303, %v3323
        %3328 = vst [vmem:[#allocation3] sm:$0xff] %v3316
        %3329 = vst [vmem:[#allocation3 + $0x8] sm:$0xff] %v3317
        %3330 = vst [vmem:[#allocation3 + $0x10] sm:$0xff] %v3318
        %3331 = vst [vmem:[#allocation3 + $0x18] sm:$0xff] %v3319
        %3332 = vst [vmem:[#allocation2] sm:$0xff] %v3324
        %3333 = vst [vmem:[#allocation2 + $0x8] sm:$0xff] %v3325
        %3334 = vst [vmem:[#allocation2 + $0x10] sm:$0xff] %v3326
        %3335 = vst [vmem:[#allocation2 + $0x18] sm:$0xff] %v3327
        %s3336 = scalar_lea.vmem [#allocation5], 160
        %3337 = vst [vmem:[%s3336] sm:$0xff] %v3324
        %3338 = vst [vmem:[%s3336 + $0x8] sm:$0xff] %v3325
        %3339 = vst [vmem:[%s3336 + $0x10] sm:$0xff] %v3326
        %3340 = vst [vmem:[%s3336 + $0x18] sm:$0xff] %v3327
        %s3341 = smul.u32 24, 4
        %s3342 = smul.addr %s3341, 8
        %s3343 = scalar_lea.vmem [#allocation4], %s3342
        %v3344 = vld [vmem:[%s3343] sm:$0xff]
        %v3345 = vld [vmem:[%s3343 + $0x8] sm:$0xff]
        %v3346 = vld [vmem:[%s3343 + $0x10] sm:$0xff]
        %v3347 = vld [vmem:[%s3343 + $0x18] sm:$0xff]
        %v3348 = vld [vmem:[%s3343 + $0x20] sm:$0xff]
        %v3349 = vld [vmem:[%s3343 + $0x28] sm:$0xff]
        %v3350 = vld [vmem:[%s3343 + $0x30] sm:$0xff]
        %v3351 = vld [vmem:[%s3343 + $0x38] sm:$0xff]
        %v3352 = vld [vmem:[%s3343 + $0x40] sm:$0xff]
        %v3353 = vld [vmem:[%s3343 + $0x48] sm:$0xff]
        %v3354 = vld [vmem:[%s3343 + $0x50] sm:$0xff]
        %v3355 = vld [vmem:[%s3343 + $0x58] sm:$0xff]
        %v3356 = vld [vmem:[%s3343 + $0x60] sm:$0xff]
        %v3357 = vld [vmem:[%s3343 + $0x68] sm:$0xff]
        %v3358 = vld [vmem:[%s3343 + $0x70] sm:$0xff]
        %v3359 = vld [vmem:[%s3343 + $0x78] sm:$0xff]
        %v3360 = vld [vmem:[#allocation2] sm:$0xff]
        %v3361 = vld [vmem:[#allocation2 + $0x8] sm:$0xff]
        %v3362 = vld [vmem:[#allocation2 + $0x10] sm:$0xff]
        %v3363 = vld [vmem:[#allocation2 + $0x18] sm:$0xff]
        %v3364 = vld [vmem:[%s2] sm:$0xff]
        %v3365 = vld [vmem:[%s2 + $0x8] sm:$0xff]
        %v3366 = vld [vmem:[%s2 + $0x10] sm:$0xff]
        %v3367 = vld [vmem:[%s2 + $0x18] sm:$0xff]
        %v3368 = vld [vmem:[%s2 + $0x20] sm:$0xff]
        %v3369 = vld [vmem:[%s2 + $0x28] sm:$0xff]
        %v3370 = vld [vmem:[%s2 + $0x30] sm:$0xff]
        %v3371 = vld [vmem:[%s2 + $0x38] sm:$0xff]
        %v3372 = vld [vmem:[%s2 + $0x40] sm:$0xff]
        %v3373 = vld [vmem:[%s2 + $0x48] sm:$0xff]
        %v3374 = vld [vmem:[%s2 + $0x50] sm:$0xff]
        %v3375 = vld [vmem:[%s2 + $0x58] sm:$0xff]
        %v3376 = vld [vmem:[%s2 + $0x60] sm:$0xff]
        %v3377 = vld [vmem:[%s2 + $0x68] sm:$0xff]
        %v3378 = vld [vmem:[%s2 + $0x70] sm:$0xff]
        %v3379 = vld [vmem:[%s2 + $0x78] sm:$0xff]
        %v3380 = vld [vmem:[%s2 + $0x80] sm:$0xff]
        %v3381 = vld [vmem:[%s2 + $0x88] sm:$0xff]
        %v3382 = vld [vmem:[%s2 + $0x90] sm:$0xff]
        %v3383 = vld [vmem:[%s2 + $0x98] sm:$0xff]
        %v3384 = vld [vmem:[%s2 + $0xa0] sm:$0xff]
        %v3385 = vld [vmem:[%s2 + $0xa8] sm:$0xff]
        %v3386 = vld [vmem:[%s2 + $0xb0] sm:$0xff]
        %v3387 = vld [vmem:[%s2 + $0xb8] sm:$0xff]
        %v3388 = vld [vmem:[%s2 + $0xc0] sm:$0xff]
        %v3389 = vld [vmem:[%s2 + $0xc8] sm:$0xff]
        %v3390 = vld [vmem:[%s2 + $0xd0] sm:$0xff]
        %v3391 = vld [vmem:[%s2 + $0xd8] sm:$0xff]
        %v3392 = vld [vmem:[%s2 + $0xe0] sm:$0xff]
        %v3393 = vld [vmem:[%s2 + $0xe8] sm:$0xff]
        %v3394 = vld [vmem:[%s2 + $0xf0] sm:$0xff]
        %v3395 = vld [vmem:[%s2 + $0xf8] sm:$0xff]
        %v3396 = vld [vmem:[%s2 + $0x100] sm:$0xff]
        %v3397 = vld [vmem:[%s2 + $0x108] sm:$0xff]
        %v3398 = vld [vmem:[%s2 + $0x110] sm:$0xff]
        %v3399 = vld [vmem:[%s2 + $0x118] sm:$0xff]
        %v3400 = vld [vmem:[%s2 + $0x120] sm:$0xff]
        %v3401 = vld [vmem:[%s2 + $0x128] sm:$0xff]
        %v3402 = vld [vmem:[%s2 + $0x130] sm:$0xff]
        %v3403 = vld [vmem:[%s2 + $0x138] sm:$0xff]
        %v3404 = vld [vmem:[%s2 + $0x140] sm:$0xff]
        %v3405 = vld [vmem:[%s2 + $0x148] sm:$0xff]
        %v3406 = vld [vmem:[%s2 + $0x150] sm:$0xff]
        %v3407 = vld [vmem:[%s2 + $0x158] sm:$0xff]
        %v3408 = vld [vmem:[%s2 + $0x160] sm:$0xff]
        %v3409 = vld [vmem:[%s2 + $0x168] sm:$0xff]
        %v3410 = vld [vmem:[%s2 + $0x170] sm:$0xff]
        %v3411 = vld [vmem:[%s2 + $0x178] sm:$0xff]
        %v3412 = vld [vmem:[%s2 + $0x180] sm:$0xff]
        %v3413 = vld [vmem:[%s2 + $0x188] sm:$0xff]
        %v3414 = vld [vmem:[%s2 + $0x190] sm:$0xff]
        %v3415 = vld [vmem:[%s2 + $0x198] sm:$0xff]
        %v3416 = vld [vmem:[%s2 + $0x1a0] sm:$0xff]
        %v3417 = vld [vmem:[%s2 + $0x1a8] sm:$0xff]
        %v3418 = vld [vmem:[%s2 + $0x1b0] sm:$0xff]
        %v3419 = vld [vmem:[%s2 + $0x1b8] sm:$0xff]
        %v3420 = vld [vmem:[%s2 + $0x1c0] sm:$0xff]
        %v3421 = vld [vmem:[%s2 + $0x1c8] sm:$0xff]
        %v3422 = vld [vmem:[%s2 + $0x1d0] sm:$0xff]
        %v3423 = vld [vmem:[%s2 + $0x1d8] sm:$0xff]
        %v3424 = vld [vmem:[%s2 + $0x1e0] sm:$0xff]
        %v3425 = vld [vmem:[%s2 + $0x1e8] sm:$0xff]
        %v3426 = vld [vmem:[%s2 + $0x1f0] sm:$0xff]
        %v3427 = vld [vmem:[%s2 + $0x1f8] sm:$0xff]
        %3428 = vmatprep.subr.mxu0 %v3365
        %3429 = vmatpush1.msra.mxu0 %v3364
        %3430 = vmatprep.subr.mxu0 %v3369
        %3431 = vmatpush1.msra.mxu0 %v3368
        %3432 = vmatprep.subr.mxu0 %v3373
        %3433 = vmatpush1.msra.mxu0 %v3372
        %3434 = vmatprep.subr.mxu0 %v3377
        %3435 = vmatpush1.msra.mxu0 %v3376
        %3436 = vmatprep.subr.mxu0 %v3381
        %3437 = vmatpush1.msra.mxu0 %v3380
        %3438 = vmatprep.subr.mxu0 %v3385
        %3439 = vmatpush1.msra.mxu0 %v3384
        %3440 = vmatprep.subr.mxu0 %v3389
        %3441 = vmatpush1.msra.mxu0 %v3388
        %3442 = vmatprep.subr.mxu0 %v3393
        %3443 = vmatpush1.msra.mxu0 %v3392
        %3444 = vmatprep.subr.mxu0 %v3397
        %3445 = vmatpush1.msra.mxu0 %v3396
        %3446 = vmatprep.subr.mxu0 %v3401
        %3447 = vmatpush1.msra.mxu0 %v3400
        %3448 = vmatprep.subr.mxu0 %v3405
        %3449 = vmatpush1.msra.mxu0 %v3404
        %3450 = vmatprep.subr.mxu0 %v3409
        %3451 = vmatpush1.msra.mxu0 %v3408
        %3452 = vmatprep.subr.mxu0 %v3413
        %3453 = vmatpush1.msra.mxu0 %v3412
        %3454 = vmatprep.subr.mxu0 %v3417
        %3455 = vmatpush1.msra.mxu0 %v3416
        %3456 = vmatprep.subr.mxu0 %v3421
        %3457 = vmatpush1.msra.mxu0 %v3420
        %3458 = vmatprep.subr.mxu0 %v3425
        %3459 = vmatpush1.msra.mxu0 %v3424
        %3460 = vmatprep.subr.mxu0 0.0
        %3461 = vmatpush1.msra.mxu0 0.0
        %3462 = vmatprep.subr.mxu0 0.0
        %3463 = vmatpush1.msra.mxu0 0.0
        %3464 = vmatprep.subr.mxu0 0.0
        %3465 = vmatpush1.msra.mxu0 0.0
        %3466 = vmatprep.subr.mxu0 0.0
        %3467 = vmatpush1.msra.mxu0 0.0
        %3468 = vmatprep.subr.mxu0 0.0
        %3469 = vmatpush1.msra.mxu0 0.0
        %3470 = vmatprep.subr.mxu0 0.0
        %3471 = vmatpush1.msra.mxu0 0.0
        %3472 = vmatprep.subr.mxu0 0.0
        %3473 = vmatpush1.msra.mxu0 0.0
        %3474 = vmatprep.subr.mxu0 0.0
        %3475 = vmatpush1.msra.mxu0 0.0
        %3476 = vmatprep.subr.mxu0 0.0
        %3477 = vmatpush1.msra.mxu0 0.0
        %3478 = vmatprep.subr.mxu0 0.0
        %3479 = vmatpush1.msra.mxu0 0.0
        %3480 = vmatprep.subr.mxu0 0.0
        %3481 = vmatpush1.msra.mxu0 0.0
        %3482 = vmatprep.subr.mxu0 0.0
        %3483 = vmatpush1.msra.mxu0 0.0
        %3484 = vmatprep.subr.mxu0 0.0
        %3485 = vmatpush1.msra.mxu0 0.0
        %3486 = vmatprep.subr.mxu0 0.0
        %3487 = vmatpush1.msra.mxu0 0.0
        %3488 = vmatprep.subr.mxu0 0.0
        %3489 = vmatpush1.msra.mxu0 0.0
        %3490 = vmatprep.subr.mxu0 0.0
        %3491 = vmatpush1.msra.mxu0 0.0
        %3492 = vmatprep.mubr.f32.mxu0 0.0
        %3493 = vmatmul.mubr.f32.gmra.mrb[0].mxu0 %v3360
        %v3494 = vpop.f32.mrb[0].mxu0
        %v3495 = vadd.f32 0.0, %v3494
        %v3496 = vpop.f32.mrb[0].mxu0
        %v3497 = vadd.f32 0.0, %v3496
        %3498 = vmatprep.mubr.f32.mxu0 0.0
        %3499 = vmatmul.mubr.f32.gmra.mrb[0].mxu0 %v3361
        %v3500 = vpop.f32.mrb[0].mxu0
        %v3501 = vadd.f32 0.0, %v3500
        %v3502 = vpop.f32.mrb[0].mxu0
        %v3503 = vadd.f32 0.0, %v3502
        %3504 = vmatprep.mubr.f32.mxu0 0.0
        %3505 = vmatmul.mubr.f32.gmra.mrb[0].mxu0 %v3362
        %v3506 = vpop.f32.mrb[0].mxu0
        %v3507 = vadd.f32 0.0, %v3506
        %v3508 = vpop.f32.mrb[0].mxu0
        %v3509 = vadd.f32 0.0, %v3508
        %3510 = vmatprep.mubr.f32.mxu0 0.0
        %3511 = vmatmul.mubr.f32.gmra.mrb[0].mxu0 %v3363
        %v3512 = vpop.f32.mrb[0].mxu0
        %v3513 = vadd.f32 0.0, %v3512
        %v3514 = vpop.f32.mrb[0].mxu0
        %v3515 = vadd.f32 0.0, %v3514
        %3516 = vdwg.mxu0
        %3517 = vmatprep.subr.mxu0 %v3367
        %3518 = vmatpush1.msra.mxu0 %v3366
        %3519 = vmatprep.subr.mxu0 %v3371
        %3520 = vmatpush1.msra.mxu0 %v3370
        %3521 = vmatprep.subr.mxu0 %v3375
        %3522 = vmatpush1.msra.mxu0 %v3374
        %3523 = vmatprep.subr.mxu0 %v3379
        %3524 = vmatpush1.msra.mxu0 %v3378
        %3525 = vmatprep.subr.mxu0 %v3383
        %3526 = vmatpush1.msra.mxu0 %v3382
        %3527 = vmatprep.subr.mxu0 %v3387
        %3528 = vmatpush1.msra.mxu0 %v3386
        %3529 = vmatprep.subr.mxu0 %v3391
        %3530 = vmatpush1.msra.mxu0 %v3390
        %3531 = vmatprep.subr.mxu0 %v3395
        %3532 = vmatpush1.msra.mxu0 %v3394
        %3533 = vmatprep.subr.mxu0 %v3399
        %3534 = vmatpush1.msra.mxu0 %v3398
        %3535 = vmatprep.subr.mxu0 %v3403
        %3536 = vmatpush1.msra.mxu0 %v3402
        %3537 = vmatprep.subr.mxu0 %v3407
        %3538 = vmatpush1.msra.mxu0 %v3406
        %3539 = vmatprep.subr.mxu0 %v3411
        %3540 = vmatpush1.msra.mxu0 %v3410
        %3541 = vmatprep.subr.mxu0 %v3415
        %3542 = vmatpush1.msra.mxu0 %v3414
        %3543 = vmatprep.subr.mxu0 %v3419
        %3544 = vmatpush1.msra.mxu0 %v3418
        %3545 = vmatprep.subr.mxu0 %v3423
        %3546 = vmatpush1.msra.mxu0 %v3422
        %3547 = vmatprep.subr.mxu0 %v3427
        %3548 = vmatpush1.msra.mxu0 %v3426
        %3549 = vmatprep.subr.mxu0 0.0
        %3550 = vmatpush1.msra.mxu0 0.0
        %3551 = vmatprep.subr.mxu0 0.0
        %3552 = vmatpush1.msra.mxu0 0.0
        %3553 = vmatprep.subr.mxu0 0.0
        %3554 = vmatpush1.msra.mxu0 0.0
        %3555 = vmatprep.subr.mxu0 0.0
        %3556 = vmatpush1.msra.mxu0 0.0
        %3557 = vmatprep.subr.mxu0 0.0
        %3558 = vmatpush1.msra.mxu0 0.0
        %3559 = vmatprep.subr.mxu0 0.0
        %3560 = vmatpush1.msra.mxu0 0.0
        %3561 = vmatprep.subr.mxu0 0.0
        %3562 = vmatpush1.msra.mxu0 0.0
        %3563 = vmatprep.subr.mxu0 0.0
        %3564 = vmatpush1.msra.mxu0 0.0
        %3565 = vmatprep.subr.mxu0 0.0
        %3566 = vmatpush1.msra.mxu0 0.0
        %3567 = vmatprep.subr.mxu0 0.0
        %3568 = vmatpush1.msra.mxu0 0.0
        %3569 = vmatprep.subr.mxu0 0.0
        %3570 = vmatpush1.msra.mxu0 0.0
        %3571 = vmatprep.subr.mxu0 0.0
        %3572 = vmatpush1.msra.mxu0 0.0
        %3573 = vmatprep.subr.mxu0 0.0
        %3574 = vmatpush1.msra.mxu0 0.0
        %3575 = vmatprep.subr.mxu0 0.0
        %3576 = vmatpush1.msra.mxu0 0.0
        %3577 = vmatprep.subr.mxu0 0.0
        %3578 = vmatpush1.msra.mxu0 0.0
        %3579 = vmatprep.subr.mxu0 0.0
        %3580 = vmatpush1.msra.mxu0 0.0
        %3581 = vmatprep.mubr.f32.mxu0 0.0
        %3582 = vmatmul.mubr.f32.gmra.mrb[0].mxu0 %v3360
        %v3583 = vpop.f32.mrb[0].mxu0
        %v3584 = vadd.f32 0.0, %v3583
        %v3585 = vpop.f32.mrb[0].mxu0
        %v3586 = vadd.f32 0.0, %v3585
        %3587 = vmatprep.mubr.f32.mxu0 0.0
        %3588 = vmatmul.mubr.f32.gmra.mrb[0].mxu0 %v3361
        %v3589 = vpop.f32.mrb[0].mxu0
        %v3590 = vadd.f32 0.0, %v3589
        %v3591 = vpop.f32.mrb[0].mxu0
        %v3592 = vadd.f32 0.0, %v3591
        %3593 = vmatprep.mubr.f32.mxu0 0.0
        %3594 = vmatmul.mubr.f32.gmra.mrb[0].mxu0 %v3362
        %v3595 = vpop.f32.mrb[0].mxu0
        %v3596 = vadd.f32 0.0, %v3595
        %v3597 = vpop.f32.mrb[0].mxu0
        %v3598 = vadd.f32 0.0, %v3597
        %3599 = vmatprep.mubr.f32.mxu0 0.0
        %3600 = vmatmul.mubr.f32.gmra.mrb[0].mxu0 %v3363
        %v3601 = vpop.f32.mrb[0].mxu0
        %v3602 = vadd.f32 0.0, %v3601
        %v3603 = vpop.f32.mrb[0].mxu0
        %v3604 = vadd.f32 0.0, %v3603
        %3605 = vdwg.mxu0
        %v3606 = vadd.f32 %v3344, %v3495
        %v3607 = vadd.f32 %v3345, %v3497
        %v3608 = vadd.f32 %v3346, %v3584
        %v3609 = vadd.f32 %v3347, %v3586
        %v3610 = vadd.f32 %v3348, %v3501
        %v3611 = vadd.f32 %v3349, %v3503
        %v3612 = vadd.f32 %v3350, %v3590
        %v3613 = vadd.f32 %v3351, %v3592
        %v3614 = vadd.f32 %v3352, %v3507
        %v3615 = vadd.f32 %v3353, %v3509
        %v3616 = vadd.f32 %v3354, %v3596
        %v3617 = vadd.f32 %v3355, %v3598
        %v3618 = vadd.f32 %v3356, %v3513
        %v3619 = vadd.f32 %v3357, %v3515
        %v3620 = vadd.f32 %v3358, %v3602
        %v3621 = vadd.f32 %v3359, %v3604
        %v3622 = vmul.f32 %v3606, 0.5
        %v3623 = vmul.f32 %v3610, 0.5
        %v3624 = vmul.f32 %v3614, 0.5
        %v3625 = vmul.f32 %v3618, 0.5
        %v3626 = vtanh.pop %v3622
        %v3627 = vtanh.pop %v3623
        %v3628 = vtanh.pop %v3624
        %v3629 = vtanh.pop %v3625
        %v3630 = vmul.f32 %v3626, 0.5
        %v3631 = vmul.f32 %v3627, 0.5
        %v3632 = vmul.f32 %v3628, 0.5
        %v3633 = vmul.f32 %v3629, 0.5
        %v3634 = vadd.f32 %v3630, 0.5
        %v3635 = vadd.f32 %v3631, 0.5
        %v3636 = vadd.f32 %v3632, 0.5
        %v3637 = vadd.f32 %v3633, 0.5
        %v3638 = vmul.f32 %v3607, 0.5
        %v3639 = vmul.f32 %v3611, 0.5
        %v3640 = vmul.f32 %v3615, 0.5
        %v3641 = vmul.f32 %v3619, 0.5
        %v3642 = vtanh.pop %v3638
        %v3643 = vtanh.pop %v3639
        %v3644 = vtanh.pop %v3640
        %v3645 = vtanh.pop %v3641
        %v3646 = vmul.f32 %v3642, 0.5
        %v3647 = vmul.f32 %v3643, 0.5
        %v3648 = vmul.f32 %v3644, 0.5
        %v3649 = vmul.f32 %v3645, 0.5
        %v3650 = vadd.f32 %v3646, 0.5
        %v3651 = vadd.f32 %v3647, 0.5
        %v3652 = vadd.f32 %v3648, 0.5
        %v3653 = vadd.f32 %v3649, 0.5
        %v3654 = vtanh.pop %v3608
        %v3655 = vtanh.pop %v3612
        %v3656 = vtanh.pop %v3616
        %v3657 = vtanh.pop %v3620
        %v3658 = vmul.f32 %v3609, 0.5
        %v3659 = vmul.f32 %v3613, 0.5
        %v3660 = vmul.f32 %v3617, 0.5
        %v3661 = vmul.f32 %v3621, 0.5
        %v3662 = vtanh.pop %v3658
        %v3663 = vtanh.pop %v3659
        %v3664 = vtanh.pop %v3660
        %v3665 = vtanh.pop %v3661
        %v3666 = vmul.f32 %v3662, 0.5
        %v3667 = vmul.f32 %v3663, 0.5
        %v3668 = vmul.f32 %v3664, 0.5
        %v3669 = vmul.f32 %v3665, 0.5
        %v3670 = vadd.f32 %v3666, 0.5
        %v3671 = vadd.f32 %v3667, 0.5
        %v3672 = vadd.f32 %v3668, 0.5
        %v3673 = vadd.f32 %v3669, 0.5
        %v3674 = vld [vmem:[#allocation3] sm:$0xff]
        %v3675 = vld [vmem:[#allocation3 + $0x8] sm:$0xff]
        %v3676 = vld [vmem:[#allocation3 + $0x10] sm:$0xff]
        %v3677 = vld [vmem:[#allocation3 + $0x18] sm:$0xff]
        %v3678 = vmul.f32 %v3650, %v3674
        %v3679 = vmul.f32 %v3651, %v3675
        %v3680 = vmul.f32 %v3652, %v3676
        %v3681 = vmul.f32 %v3653, %v3677
        %v3682 = vmul.f32 %v3634, %v3654
        %v3683 = vmul.f32 %v3635, %v3655
        %v3684 = vmul.f32 %v3636, %v3656
        %v3685 = vmul.f32 %v3637, %v3657
        %v3686 = vadd.f32 %v3678, %v3682
        %v3687 = vadd.f32 %v3679, %v3683
        %v3688 = vadd.f32 %v3680, %v3684
        %v3689 = vadd.f32 %v3681, %v3685
        %v3690 = vtanh.pop %v3686
        %v3691 = vtanh.pop %v3687
        %v3692 = vtanh.pop %v3688
        %v3693 = vtanh.pop %v3689
        %v3694 = vmul.f32 %v3670, %v3690
        %v3695 = vmul.f32 %v3671, %v3691
        %v3696 = vmul.f32 %v3672, %v3692
        %v3697 = vmul.f32 %v3673, %v3693
        %3698 = vst [vmem:[#allocation3] sm:$0xff] %v3686
        %3699 = vst [vmem:[#allocation3 + $0x8] sm:$0xff] %v3687
        %3700 = vst [vmem:[#allocation3 + $0x10] sm:$0xff] %v3688
        %3701 = vst [vmem:[#allocation3 + $0x18] sm:$0xff] %v3689
        %3702 = vst [vmem:[#allocation2] sm:$0xff] %v3694
        %3703 = vst [vmem:[#allocation2 + $0x8] sm:$0xff] %v3695
        %3704 = vst [vmem:[#allocation2 + $0x10] sm:$0xff] %v3696
        %3705 = vst [vmem:[#allocation2 + $0x18] sm:$0xff] %v3697
        %s3706 = scalar_lea.vmem [#allocation5], 192
        %3707 = vst [vmem:[%s3706] sm:$0xff] %v3694
        %3708 = vst [vmem:[%s3706 + $0x8] sm:$0xff] %v3695
        %3709 = vst [vmem:[%s3706 + $0x10] sm:$0xff] %v3696
        %3710 = vst [vmem:[%s3706 + $0x18] sm:$0xff] %v3697
        %s3711 = smul.u32 28, 4
        %s3712 = smul.addr %s3711, 8
        %s3713 = scalar_lea.vmem [#allocation4], %s3712
        %v3714 = vld [vmem:[%s3713] sm:$0xff]
        %v3715 = vld [vmem:[%s3713 + $0x8] sm:$0xff]
        %v3716 = vld [vmem:[%s3713 + $0x10] sm:$0xff]
        %v3717 = vld [vmem:[%s3713 + $0x18] sm:$0xff]
        %v3718 = vld [vmem:[%s3713 + $0x20] sm:$0xff]
        %v3719 = vld [vmem:[%s3713 + $0x28] sm:$0xff]
        %v3720 = vld [vmem:[%s3713 + $0x30] sm:$0xff]
        %v3721 = vld [vmem:[%s3713 + $0x38] sm:$0xff]
        %v3722 = vld [vmem:[%s3713 + $0x40] sm:$0xff]
        %v3723 = vld [vmem:[%s3713 + $0x48] sm:$0xff]
        %v3724 = vld [vmem:[%s3713 + $0x50] sm:$0xff]
        %v3725 = vld [vmem:[%s3713 + $0x58] sm:$0xff]
        %v3726 = vld [vmem:[%s3713 + $0x60] sm:$0xff]
        %v3727 = vld [vmem:[%s3713 + $0x68] sm:$0xff]
        %v3728 = vld [vmem:[%s3713 + $0x70] sm:$0xff]
        %v3729 = vld [vmem:[%s3713 + $0x78] sm:$0xff]
        %v3730 = vld [vmem:[#allocation2] sm:$0xff]
        %v3731 = vld [vmem:[#allocation2 + $0x8] sm:$0xff]
        %v3732 = vld [vmem:[#allocation2 + $0x10] sm:$0xff]
        %v3733 = vld [vmem:[#allocation2 + $0x18] sm:$0xff]
        %v3734 = vld [vmem:[%s2] sm:$0xff]
        %v3735 = vld [vmem:[%s2 + $0x8] sm:$0xff]
        %v3736 = vld [vmem:[%s2 + $0x10] sm:$0xff]
        %v3737 = vld [vmem:[%s2 + $0x18] sm:$0xff]
        %v3738 = vld [vmem:[%s2 + $0x20] sm:$0xff]
        %v3739 = vld [vmem:[%s2 + $0x28] sm:$0xff]
        %v3740 = vld [vmem:[%s2 + $0x30] sm:$0xff]
        %v3741 = vld [vmem:[%s2 + $0x38] sm:$0xff]
        %v3742 = vld [vmem:[%s2 + $0x40] sm:$0xff]
        %v3743 = vld [vmem:[%s2 + $0x48] sm:$0xff]
        %v3744 = vld [vmem:[%s2 + $0x50] sm:$0xff]
        %v3745 = vld [vmem:[%s2 + $0x58] sm:$0xff]
        %v3746 = vld [vmem:[%s2 + $0x60] sm:$0xff]
        %v3747 = vld [vmem:[%s2 + $0x68] sm:$0xff]
        %v3748 = vld [vmem:[%s2 + $0x70] sm:$0xff]
        %v3749 = vld [vmem:[%s2 + $0x78] sm:$0xff]
        %v3750 = vld [vmem:[%s2 + $0x80] sm:$0xff]
        %v3751 = vld [vmem:[%s2 + $0x88] sm:$0xff]
        %v3752 = vld [vmem:[%s2 + $0x90] sm:$0xff]
        %v3753 = vld [vmem:[%s2 + $0x98] sm:$0xff]
        %v3754 = vld [vmem:[%s2 + $0xa0] sm:$0xff]
        %v3755 = vld [vmem:[%s2 + $0xa8] sm:$0xff]
        %v3756 = vld [vmem:[%s2 + $0xb0] sm:$0xff]
        %v3757 = vld [vmem:[%s2 + $0xb8] sm:$0xff]
        %v3758 = vld [vmem:[%s2 + $0xc0] sm:$0xff]
        %v3759 = vld [vmem:[%s2 + $0xc8] sm:$0xff]
        %v3760 = vld [vmem:[%s2 + $0xd0] sm:$0xff]
        %v3761 = vld [vmem:[%s2 + $0xd8] sm:$0xff]
        %v3762 = vld [vmem:[%s2 + $0xe0] sm:$0xff]
        %v3763 = vld [vmem:[%s2 + $0xe8] sm:$0xff]
        %v3764 = vld [vmem:[%s2 + $0xf0] sm:$0xff]
        %v3765 = vld [vmem:[%s2 + $0xf8] sm:$0xff]
        %v3766 = vld [vmem:[%s2 + $0x100] sm:$0xff]
        %v3767 = vld [vmem:[%s2 + $0x108] sm:$0xff]
        %v3768 = vld [vmem:[%s2 + $0x110] sm:$0xff]
        %v3769 = vld [vmem:[%s2 + $0x118] sm:$0xff]
        %v3770 = vld [vmem:[%s2 + $0x120] sm:$0xff]
        %v3771 = vld [vmem:[%s2 + $0x128] sm:$0xff]
        %v3772 = vld [vmem:[%s2 + $0x130] sm:$0xff]
        %v3773 = vld [vmem:[%s2 + $0x138] sm:$0xff]
        %v3774 = vld [vmem:[%s2 + $0x140] sm:$0xff]
        %v3775 = vld [vmem:[%s2 + $0x148] sm:$0xff]
        %v3776 = vld [vmem:[%s2 + $0x150] sm:$0xff]
        %v3777 = vld [vmem:[%s2 + $0x158] sm:$0xff]
        %v3778 = vld [vmem:[%s2 + $0x160] sm:$0xff]
        %v3779 = vld [vmem:[%s2 + $0x168] sm:$0xff]
        %v3780 = vld [vmem:[%s2 + $0x170] sm:$0xff]
        %v3781 = vld [vmem:[%s2 + $0x178] sm:$0xff]
        %v3782 = vld [vmem:[%s2 + $0x180] sm:$0xff]
        %v3783 = vld [vmem:[%s2 + $0x188] sm:$0xff]
        %v3784 = vld [vmem:[%s2 + $0x190] sm:$0xff]
        %v3785 = vld [vmem:[%s2 + $0x198] sm:$0xff]
        %v3786 = vld [vmem:[%s2 + $0x1a0] sm:$0xff]
        %v3787 = vld [vmem:[%s2 + $0x1a8] sm:$0xff]
        %v3788 = vld [vmem:[%s2 + $0x1b0] sm:$0xff]
        %v3789 = vld [vmem:[%s2 + $0x1b8] sm:$0xff]
        %v3790 = vld [vmem:[%s2 + $0x1c0] sm:$0xff]
        %v3791 = vld [vmem:[%s2 + $0x1c8] sm:$0xff]
        %v3792 = vld [vmem:[%s2 + $0x1d0] sm:$0xff]
        %v3793 = vld [vmem:[%s2 + $0x1d8] sm:$0xff]
        %v3794 = vld [vmem:[%s2 + $0x1e0] sm:$0xff]
        %v3795 = vld [vmem:[%s2 + $0x1e8] sm:$0xff]
        %v3796 = vld [vmem:[%s2 + $0x1f0] sm:$0xff]
        %v3797 = vld [vmem:[%s2 + $0x1f8] sm:$0xff]
        %3798 = vmatprep.subr.mxu0 %v3735
        %3799 = vmatpush1.msra.mxu0 %v3734
        %3800 = vmatprep.subr.mxu0 %v3739
        %3801 = vmatpush1.msra.mxu0 %v3738
        %3802 = vmatprep.subr.mxu0 %v3743
        %3803 = vmatpush1.msra.mxu0 %v3742
        %3804 = vmatprep.subr.mxu0 %v3747
        %3805 = vmatpush1.msra.mxu0 %v3746
        %3806 = vmatprep.subr.mxu0 %v3751
        %3807 = vmatpush1.msra.mxu0 %v3750
        %3808 = vmatprep.subr.mxu0 %v3755
        %3809 = vmatpush1.msra.mxu0 %v3754
        %3810 = vmatprep.subr.mxu0 %v3759
        %3811 = vmatpush1.msra.mxu0 %v3758
        %3812 = vmatprep.subr.mxu0 %v3763
        %3813 = vmatpush1.msra.mxu0 %v3762
        %3814 = vmatprep.subr.mxu0 %v3767
        %3815 = vmatpush1.msra.mxu0 %v3766
        %3816 = vmatprep.subr.mxu0 %v3771
        %3817 = vmatpush1.msra.mxu0 %v3770
        %3818 = vmatprep.subr.mxu0 %v3775
        %3819 = vmatpush1.msra.mxu0 %v3774
        %3820 = vmatprep.subr.mxu0 %v3779
        %3821 = vmatpush1.msra.mxu0 %v3778
        %3822 = vmatprep.subr.mxu0 %v3783
        %3823 = vmatpush1.msra.mxu0 %v3782
        %3824 = vmatprep.subr.mxu0 %v3787
        %3825 = vmatpush1.msra.mxu0 %v3786
        %3826 = vmatprep.subr.mxu0 %v3791
        %3827 = vmatpush1.msra.mxu0 %v3790
        %3828 = vmatprep.subr.mxu0 %v3795
        %3829 = vmatpush1.msra.mxu0 %v3794
        %3830 = vmatprep.subr.mxu0 0.0
        %3831 = vmatpush1.msra.mxu0 0.0
        %3832 = vmatprep.subr.mxu0 0.0
        %3833 = vmatpush1.msra.mxu0 0.0
        %3834 = vmatprep.subr.mxu0 0.0
        %3835 = vmatpush1.msra.mxu0 0.0
        %3836 = vmatprep.subr.mxu0 0.0
        %3837 = vmatpush1.msra.mxu0 0.0
        %3838 = vmatprep.subr.mxu0 0.0
        %3839 = vmatpush1.msra.mxu0 0.0
        %3840 = vmatprep.subr.mxu0 0.0
        %3841 = vmatpush1.msra.mxu0 0.0
        %3842 = vmatprep.subr.mxu0 0.0
        %3843 = vmatpush1.msra.mxu0 0.0
        %3844 = vmatprep.subr.mxu0 0.0
        %3845 = vmatpush1.msra.mxu0 0.0
        %3846 = vmatprep.subr.mxu0 0.0
        %3847 = vmatpush1.msra.mxu0 0.0
        %3848 = vmatprep.subr.mxu0 0.0
        %3849 = vmatpush1.msra.mxu0 0.0
        %3850 = vmatprep.subr.mxu0 0.0
        %3851 = vmatpush1.msra.mxu0 0.0
        %3852 = vmatprep.subr.mxu0 0.0
        %3853 = vmatpush1.msra.mxu0 0.0
        %3854 = vmatprep.subr.mxu0 0.0
        %3855 = vmatpush1.msra.mxu0 0.0
        %3856 = vmatprep.subr.mxu0 0.0
        %3857 = vmatpush1.msra.mxu0 0.0
        %3858 = vmatprep.subr.mxu0 0.0
        %3859 = vmatpush1.msra.mxu0 0.0
        %3860 = vmatprep.subr.mxu0 0.0
        %3861 = vmatpush1.msra.mxu0 0.0
        %3862 = vmatprep.mubr.f32.mxu0 0.0
        %3863 = vmatmul.mubr.f32.gmra.mrb[0].mxu0 %v3730
        %v3864 = vpop.f32.mrb[0].mxu0
        %v3865 = vadd.f32 0.0, %v3864
        %v3866 = vpop.f32.mrb[0].mxu0
        %v3867 = vadd.f32 0.0, %v3866
        %3868 = vmatprep.mubr.f32.mxu0 0.0
        %3869 = vmatmul.mubr.f32.gmra.mrb[0].mxu0 %v3731
        %v3870 = vpop.f32.mrb[0].mxu0
        %v3871 = vadd.f32 0.0, %v3870
        %v3872 = vpop.f32.mrb[0].mxu0
        %v3873 = vadd.f32 0.0, %v3872
        %3874 = vmatprep.mubr.f32.mxu0 0.0
        %3875 = vmatmul.mubr.f32.gmra.mrb[0].mxu0 %v3732
        %v3876 = vpop.f32.mrb[0].mxu0
        %v3877 = vadd.f32 0.0, %v3876
        %v3878 = vpop.f32.mrb[0].mxu0
        %v3879 = vadd.f32 0.0, %v3878
        %3880 = vmatprep.mubr.f32.mxu0 0.0
        %3881 = vmatmul.mubr.f32.gmra.mrb[0].mxu0 %v3733
        %v3882 = vpop.f32.mrb[0].mxu0
        %v3883 = vadd.f32 0.0, %v3882
        %v3884 = vpop.f32.mrb[0].mxu0
        %v3885 = vadd.f32 0.0, %v3884
        %3886 = vdwg.mxu0
        %3887 = vmatprep.subr.mxu0 %v3737
        %3888 = vmatpush1.msra.mxu0 %v3736
        %3889 = vmatprep.subr.mxu0 %v3741
        %3890 = vmatpush1.msra.mxu0 %v3740
        %3891 = vmatprep.subr.mxu0 %v3745
        %3892 = vmatpush1.msra.mxu0 %v3744
        %3893 = vmatprep.subr.mxu0 %v3749
        %3894 = vmatpush1.msra.mxu0 %v3748
        %3895 = vmatprep.subr.mxu0 %v3753
        %3896 = vmatpush1.msra.mxu0 %v3752
        %3897 = vmatprep.subr.mxu0 %v3757
        %3898 = vmatpush1.msra.mxu0 %v3756
        %3899 = vmatprep.subr.mxu0 %v3761
        %3900 = vmatpush1.msra.mxu0 %v3760
        %3901 = vmatprep.subr.mxu0 %v3765
        %3902 = vmatpush1.msra.mxu0 %v3764
        %3903 = vmatprep.subr.mxu0 %v3769
        %3904 = vmatpush1.msra.mxu0 %v3768
        %3905 = vmatprep.subr.mxu0 %v3773
        %3906 = vmatpush1.msra.mxu0 %v3772
        %3907 = vmatprep.subr.mxu0 %v3777
        %3908 = vmatpush1.msra.mxu0 %v3776
        %3909 = vmatprep.subr.mxu0 %v3781
        %3910 = vmatpush1.msra.mxu0 %v3780
        %3911 = vmatprep.subr.mxu0 %v3785
        %3912 = vmatpush1.msra.mxu0 %v3784
        %3913 = vmatprep.subr.mxu0 %v3789
        %3914 = vmatpush1.msra.mxu0 %v3788
        %3915 = vmatprep.subr.mxu0 %v3793
        %3916 = vmatpush1.msra.mxu0 %v3792
        %3917 = vmatprep.subr.mxu0 %v3797
        %3918 = vmatpush1.msra.mxu0 %v3796
        %3919 = vmatprep.subr.mxu0 0.0
        %3920 = vmatpush1.msra.mxu0 0.0
        %3921 = vmatprep.subr.mxu0 0.0
        %3922 = vmatpush1.msra.mxu0 0.0
        %3923 = vmatprep.subr.mxu0 0.0
        %3924 = vmatpush1.msra.mxu0 0.0
        %3925 = vmatprep.subr.mxu0 0.0
        %3926 = vmatpush1.msra.mxu0 0.0
        %3927 = vmatprep.subr.mxu0 0.0
        %3928 = vmatpush1.msra.mxu0 0.0
        %3929 = vmatprep.subr.mxu0 0.0
        %3930 = vmatpush1.msra.mxu0 0.0
        %3931 = vmatprep.subr.mxu0 0.0
        %3932 = vmatpush1.msra.mxu0 0.0
        %3933 = vmatprep.subr.mxu0 0.0
        %3934 = vmatpush1.msra.mxu0 0.0
        %3935 = vmatprep.subr.mxu0 0.0
        %3936 = vmatpush1.msra.mxu0 0.0
        %3937 = vmatprep.subr.mxu0 0.0
        %3938 = vmatpush1.msra.mxu0 0.0
        %3939 = vmatprep.subr.mxu0 0.0
        %3940 = vmatpush1.msra.mxu0 0.0
        %3941 = vmatprep.subr.mxu0 0.0
        %3942 = vmatpush1.msra.mxu0 0.0
        %3943 = vmatprep.subr.mxu0 0.0
        %3944 = vmatpush1.msra.mxu0 0.0
        %3945 = vmatprep.subr.mxu0 0.0
        %3946 = vmatpush1.msra.mxu0 0.0
        %3947 = vmatprep.subr.mxu0 0.0
        %3948 = vmatpush1.msra.mxu0 0.0
        %3949 = vmatprep.subr.mxu0 0.0
        %3950 = vmatpush1.msra.mxu0 0.0
        %3951 = vmatprep.mubr.f32.mxu0 0.0
        %3952 = vmatmul.mubr.f32.gmra.mrb[0].mxu0 %v3730
        %v3953 = vpop.f32.mrb[0].mxu0
        %v3954 = vadd.f32 0.0, %v3953
        %v3955 = vpop.f32.mrb[0].mxu0
        %v3956 = vadd.f32 0.0, %v3955
        %3957 = vmatprep.mubr.f32.mxu0 0.0
        %3958 = vmatmul.mubr.f32.gmra.mrb[0].mxu0 %v3731
        %v3959 = vpop.f32.mrb[0].mxu0
        %v3960 = vadd.f32 0.0, %v3959
        %v3961 = vpop.f32.mrb[0].mxu0
        %v3962 = vadd.f32 0.0, %v3961
        %3963 = vmatprep.mubr.f32.mxu0 0.0
        %3964 = vmatmul.mubr.f32.gmra.mrb[0].mxu0 %v3732
        %v3965 = vpop.f32.mrb[0].mxu0
        %v3966 = vadd.f32 0.0, %v3965
        %v3967 = vpop.f32.mrb[0].mxu0
        %v3968 = vadd.f32 0.0, %v3967
        %3969 = vmatprep.mubr.f32.mxu0 0.0
        %3970 = vmatmul.mubr.f32.gmra.mrb[0].mxu0 %v3733
        %v3971 = vpop.f32.mrb[0].mxu0
        %v3972 = vadd.f32 0.0, %v3971
        %v3973 = vpop.f32.mrb[0].mxu0
        %v3974 = vadd.f32 0.0, %v3973
        %3975 = vdwg.mxu0
        %v3976 = vadd.f32 %v3714, %v3865
        %v3977 = vadd.f32 %v3715, %v3867
        %v3978 = vadd.f32 %v3716, %v3954
        %v3979 = vadd.f32 %v3717, %v3956
        %v3980 = vadd.f32 %v3718, %v3871
        %v3981 = vadd.f32 %v3719, %v3873
        %v3982 = vadd.f32 %v3720, %v3960
        %v3983 = vadd.f32 %v3721, %v3962
        %v3984 = vadd.f32 %v3722, %v3877
        %v3985 = vadd.f32 %v3723, %v3879
        %v3986 = vadd.f32 %v3724, %v3966
        %v3987 = vadd.f32 %v3725, %v3968
        %v3988 = vadd.f32 %v3726, %v3883
        %v3989 = vadd.f32 %v3727, %v3885
        %v3990 = vadd.f32 %v3728, %v3972
        %v3991 = vadd.f32 %v3729, %v3974
        %v3992 = vmul.f32 %v3976, 0.5
        %v3993 = vmul.f32 %v3980, 0.5
        %v3994 = vmul.f32 %v3984, 0.5
        %v3995 = vmul.f32 %v3988, 0.5
        %v3996 = vtanh.pop %v3992
        %v3997 = vtanh.pop %v3993
        %v3998 = vtanh.pop %v3994
        %v3999 = vtanh.pop %v3995
        %v4000 = vmul.f32 %v3996, 0.5
        %v4001 = vmul.f32 %v3997, 0.5
        %v4002 = vmul.f32 %v3998, 0.5
        %v4003 = vmul.f32 %v3999, 0.5
        %v4004 = vadd.f32 %v4000, 0.5
        %v4005 = vadd.f32 %v4001, 0.5
        %v4006 = vadd.f32 %v4002, 0.5
        %v4007 = vadd.f32 %v4003, 0.5
        %v4008 = vmul.f32 %v3977, 0.5
        %v4009 = vmul.f32 %v3981, 0.5
        %v4010 = vmul.f32 %v3985, 0.5
        %v4011 = vmul.f32 %v3989, 0.5
        %v4012 = vtanh.pop %v4008
        %v4013 = vtanh.pop %v4009
        %v4014 = vtanh.pop %v4010
        %v4015 = vtanh.pop %v4011
        %v4016 = vmul.f32 %v4012, 0.5
        %v4017 = vmul.f32 %v4013, 0.5
        %v4018 = vmul.f32 %v4014, 0.5
        %v4019 = vmul.f32 %v4015, 0.5
        %v4020 = vadd.f32 %v4016, 0.5
        %v4021 = vadd.f32 %v4017, 0.5
        %v4022 = vadd.f32 %v4018, 0.5
        %v4023 = vadd.f32 %v4019, 0.5
        %v4024 = vtanh.pop %v3978
        %v4025 = vtanh.pop %v3982
        %v4026 = vtanh.pop %v3986
        %v4027 = vtanh.pop %v3990
        %v4028 = vmul.f32 %v3979, 0.5
        %v4029 = vmul.f32 %v3983, 0.5
        %v4030 = vmul.f32 %v3987, 0.5
        %v4031 = vmul.f32 %v3991, 0.5
        %v4032 = vtanh.pop %v4028
        %v4033 = vtanh.pop %v4029
        %v4034 = vtanh.pop %v4030
        %v4035 = vtanh.pop %v4031
        %v4036 = vmul.f32 %v4032, 0.5
        %v4037 = vmul.f32 %v4033, 0.5
        %v4038 = vmul.f32 %v4034, 0.5
        %v4039 = vmul.f32 %v4035, 0.5
        %v4040 = vadd.f32 %v4036, 0.5
        %v4041 = vadd.f32 %v4037, 0.5
        %v4042 = vadd.f32 %v4038, 0.5
        %v4043 = vadd.f32 %v4039, 0.5
        %v4044 = vld [vmem:[#allocation3] sm:$0xff]
        %v4045 = vld [vmem:[#allocation3 + $0x8] sm:$0xff]
        %v4046 = vld [vmem:[#allocation3 + $0x10] sm:$0xff]
        %v4047 = vld [vmem:[#allocation3 + $0x18] sm:$0xff]
        %v4048 = vmul.f32 %v4020, %v4044
        %v4049 = vmul.f32 %v4021, %v4045
        %v4050 = vmul.f32 %v4022, %v4046
        %v4051 = vmul.f32 %v4023, %v4047
        %v4052 = vmul.f32 %v4004, %v4024
        %v4053 = vmul.f32 %v4005, %v4025
        %v4054 = vmul.f32 %v4006, %v4026
        %v4055 = vmul.f32 %v4007, %v4027
        %v4056 = vadd.f32 %v4048, %v4052
        %v4057 = vadd.f32 %v4049, %v4053
        %v4058 = vadd.f32 %v4050, %v4054
        %v4059 = vadd.f32 %v4051, %v4055
        %v4060 = vtanh.pop %v4056
        %v4061 = vtanh.pop %v4057
        %v4062 = vtanh.pop %v4058
        %v4063 = vtanh.pop %v4059
        %v4064 = vmul.f32 %v4040, %v4060
        %v4065 = vmul.f32 %v4041, %v4061
        %v4066 = vmul.f32 %v4042, %v4062
        %v4067 = vmul.f32 %v4043, %v4063
        %4068 = vst [vmem:[#allocation3] sm:$0xff] %v4056
        %4069 = vst [vmem:[#allocation3 + $0x8] sm:$0xff] %v4057
        %4070 = vst [vmem:[#allocation3 + $0x10] sm:$0xff] %v4058
        %4071 = vst [vmem:[#allocation3 + $0x18] sm:$0xff] %v4059
        %4072 = vst [vmem:[#allocation2] sm:$0xff] %v4064
        %4073 = vst [vmem:[#allocation2 + $0x8] sm:$0xff] %v4065
        %4074 = vst [vmem:[#allocation2 + $0x10] sm:$0xff] %v4066
        %4075 = vst [vmem:[#allocation2 + $0x18] sm:$0xff] %v4067
        %s4076 = scalar_lea.vmem [#allocation5], 224
        %4077 = vst [vmem:[%s4076] sm:$0xff] %v4064
        %4078 = vst [vmem:[%s4076 + $0x8] sm:$0xff] %v4065
        %4079 = vst [vmem:[%s4076 + $0x10] sm:$0xff] %v4066
        %4080 = vst [vmem:[%s4076 + $0x18] sm:$0xff] %v4067
        %v4081 = vld [vmem:[#allocation5] sm:$0xff]
        %v4082 = vld [vmem:[#allocation5 + $0x8] sm:$0xff]
        %v4083 = vld [vmem:[#allocation5 + $0x10] sm:$0xff]
        %v4084 = vld [vmem:[#allocation5 + $0x18] sm:$0xff]
        %v4085 = vld [vmem:[#allocation5 + $0x20] sm:$0xff]
        %v4086 = vld [vmem:[#allocation5 + $0x28] sm:$0xff]
        %v4087 = vld [vmem:[#allocation5 + $0x30] sm:$0xff]
        %v4088 = vld [vmem:[#allocation5 + $0x38] sm:$0xff]
        %v4089 = vld [vmem:[#allocation5 + $0x40] sm:$0xff]
        %v4090 = vld [vmem:[#allocation5 + $0x48] sm:$0xff]
        %v4091 = vld [vmem:[#allocation5 + $0x50] sm:$0xff]
        %v4092 = vld [vmem:[#allocation5 + $0x58] sm:$0xff]
        %v4093 = vld [vmem:[#allocation5 + $0x60] sm:$0xff]
        %v4094 = vld [vmem:[#allocation5 + $0x68] sm:$0xff]
        %v4095 = vld [vmem:[#allocation5 + $0x70] sm:$0xff]
        %v4096 = vld [vmem:[#allocation5 + $0x78] sm:$0xff]
        %v4097 = vld [vmem:[#allocation5 + $0x80] sm:$0xff]
        %v4098 = vld [vmem:[#allocation5 + $0x88] sm:$0xff]
        %v4099 = vld [vmem:[#allocation5 + $0x90] sm:$0xff]
        %v4100 = vld [vmem:[#allocation5 + $0x98] sm:$0xff]
        %v4101 = vld [vmem:[#allocation5 + $0xa0] sm:$0xff]
        %v4102 = vld [vmem:[#allocation5 + $0xa8] sm:$0xff]
        %v4103 = vld [vmem:[#allocation5 + $0xb0] sm:$0xff]
        %v4104 = vld [vmem:[#allocation5 + $0xb8] sm:$0xff]
        %v4105 = vld [vmem:[#allocation5 + $0xc0] sm:$0xff]
        %v4106 = vld [vmem:[#allocation5 + $0xc8] sm:$0xff]
        %v4107 = vld [vmem:[#allocation5 + $0xd0] sm:$0xff]
        %v4108 = vld [vmem:[#allocation5 + $0xd8] sm:$0xff]
        %v4109 = vld [vmem:[#allocation5 + $0xe0] sm:$0xff]
        %v4110 = vld [vmem:[#allocation5 + $0xe8] sm:$0xff]
        %v4111 = vld [vmem:[#allocation5 + $0xf0] sm:$0xff]
        %v4112 = vld [vmem:[#allocation5 + $0xf8] sm:$0xff]
        %v4113 = vld [vmem:[#allocation6] sm:$0xff]
        %v4114 = vld [vmem:[#allocation6 + $0x8] sm:$0xff]
        %v4115 = vld [vmem:[#allocation6 + $0x10] sm:$0xff]
        %v4116 = vld [vmem:[#allocation6 + $0x18] sm:$0xff]
        %v4117 = vld [vmem:[#allocation6 + $0x20] sm:$0xff]
        %v4118 = vld [vmem:[#allocation6 + $0x28] sm:$0xff]
        %v4119 = vld [vmem:[#allocation6 + $0x30] sm:$0xff]
        %v4120 = vld [vmem:[#allocation6 + $0x38] sm:$0xff]
        %v4121 = vld [vmem:[#allocation6 + $0x40] sm:$0xff]
        %v4122 = vld [vmem:[#allocation6 + $0x48] sm:$0xff]
        %v4123 = vld [vmem:[#allocation6 + $0x50] sm:$0xff]
        %v4124 = vld [vmem:[#allocation6 + $0x58] sm:$0xff]
        %v4125 = vld [vmem:[#allocation6 + $0x60] sm:$0xff]
        %v4126 = vld [vmem:[#allocation6 + $0x68] sm:$0xff]
        %v4127 = vld [vmem:[#allocation6 + $0x70] sm:$0xff]
        %v4128 = vld [vmem:[#allocation6 + $0x78] sm:$0xff]
        %v4129 = vld [vmem:[%s5] sm:$0x1]
        %v4131 = vlaneseq
        %v4132 = vshrl.u32 %v4131, 7
        %v4133 = vsub.s32 0, %v4132
        %v4134 = vrot.slane %v4129, %v4133
        %4136 = vmatprep.subr.mxu0 0.0
        %4137 = vmatpush1.msra.mxu0 %v4113
        %4138 = vmatprep.subr.mxu0 0.0
        %4139 = vmatpush1.msra.mxu0 %v4114
        %4140 = vmatprep.subr.mxu0 0.0
        %4141 = vmatpush1.msra.mxu0 %v4115
        %4142 = vmatprep.subr.mxu0 0.0
        %4143 = vmatpush1.msra.mxu0 %v4116
        %4144 = vmatprep.subr.mxu0 0.0
        %4145 = vmatpush1.msra.mxu0 %v4117
        %4146 = vmatprep.subr.mxu0 0.0
        %4147 = vmatpush1.msra.mxu0 %v4118
        %4148 = vmatprep.subr.mxu0 0.0
        %4149 = vmatpush1.msra.mxu0 %v4119
        %4150 = vmatprep.subr.mxu0 0.0
        %4151 = vmatpush1.msra.mxu0 %v4120
        %4152 = vmatprep.subr.mxu0 0.0
        %4153 = vmatpush1.msra.mxu0 %v4121
        %4154 = vmatprep.subr.mxu0 0.0
        %4155 = vmatpush1.msra.mxu0 %v4122
        %4156 = vmatprep.subr.mxu0 0.0
        %4157 = vmatpush1.msra.mxu0 %v4123
        %4158 = vmatprep.subr.mxu0 0.0
        %4159 = vmatpush1.msra.mxu0 %v4124
        %4160 = vmatprep.subr.mxu0 0.0
        %4161 = vmatpush1.msra.mxu0 %v4125
        %4162 = vmatprep.subr.mxu0 0.0
        %4163 = vmatpush1.msra.mxu0 %v4126
        %4164 = vmatprep.subr.mxu0 0.0
        %4165 = vmatpush1.msra.mxu0 %v4127
        %4166 = vmatprep.subr.mxu0 0.0
        %4167 = vmatpush1.msra.mxu0 %v4128
        %4168 = vmatprep.subr.mxu0 0.0
        %4169 = vmatpush1.msra.mxu0 0.0
        %4170 = vmatprep.subr.mxu0 0.0
        %4171 = vmatpush1.msra.mxu0 0.0
        %4172 = vmatprep.subr.mxu0 0.0
        %4173 = vmatpush1.msra.mxu0 0.0
        %4174 = vmatprep.subr.mxu0 0.0
        %4175 = vmatpush1.msra.mxu0 0.0
        %4176 = vmatprep.subr.mxu0 0.0
        %4177 = vmatpush1.msra.mxu0 0.0
        %4178 = vmatprep.subr.mxu0 0.0
        %4179 = vmatpush1.msra.mxu0 0.0
        %4180 = vmatprep.subr.mxu0 0.0
        %4181 = vmatpush1.msra.mxu0 0.0
        %4182 = vmatprep.subr.mxu0 0.0
        %4183 = vmatpush1.msra.mxu0 0.0
        %4184 = vmatprep.subr.mxu0 0.0
        %4185 = vmatpush1.msra.mxu0 0.0
        %4186 = vmatprep.subr.mxu0 0.0
        %4187 = vmatpush1.msra.mxu0 0.0
        %4188 = vmatprep.subr.mxu0 0.0
        %4189 = vmatpush1.msra.mxu0 0.0
        %4190 = vmatprep.subr.mxu0 0.0
        %4191 = vmatpush1.msra.mxu0 0.0
        %4192 = vmatprep.subr.mxu0 0.0
        %4193 = vmatpush1.msra.mxu0 0.0
        %4194 = vmatprep.subr.mxu0 0.0
        %4195 = vmatpush1.msra.mxu0 0.0
        %4196 = vmatprep.subr.mxu0 0.0
        %4197 = vmatpush1.msra.mxu0 0.0
        %4198 = vmatprep.subr.mxu0 0.0
        %4199 = vmatpush1.msra.mxu0 0.0
        %4200 = vmatprep.mubr.f32.mxu0 0.0
        %4201 = vmatmul.mubr.f32.gmra.mrb[0].mxu0 %v4081
        %v4202 = vpop.f32.mrb[0].mxu0
        %v4203 = vadd.f32 %v4134, %v4202
        %v4204 = vpop.f32.mrb[0].mxu0
        %4205 = vmatprep.mubr.f32.mxu0 0.0
        %4206 = vmatmul.mubr.f32.gmra.mrb[0].mxu0 %v4082
        %v4207 = vpop.f32.mrb[0].mxu0
        %v4208 = vadd.f32 %v4134, %v4207
        %v4209 = vpop.f32.mrb[0].mxu0
        %4210 = vmatprep.mubr.f32.mxu0 0.0
        %4211 = vmatmul.mubr.f32.gmra.mrb[0].mxu0 %v4083
        %v4212 = vpop.f32.mrb[0].mxu0
        %v4213 = vadd.f32 %v4134, %v4212
        %v4214 = vpop.f32.mrb[0].mxu0
        %4215 = vmatprep.mubr.f32.mxu0 0.0
        %4216 = vmatmul.mubr.f32.gmra.mrb[0].mxu0 %v4084
        %v4217 = vpop.f32.mrb[0].mxu0
        %v4218 = vadd.f32 %v4134, %v4217
        %v4219 = vpop.f32.mrb[0].mxu0
        %4220 = vmatprep.mubr.f32.mxu0 0.0
        %4221 = vmatmul.mubr.f32.gmra.mrb[0].mxu0 %v4085
        %v4222 = vpop.f32.mrb[0].mxu0
        %v4223 = vadd.f32 %v4134, %v4222
        %v4224 = vpop.f32.mrb[0].mxu0
        %4225 = vmatprep.mubr.f32.mxu0 0.0
        %4226 = vmatmul.mubr.f32.gmra.mrb[0].mxu0 %v4086
        %v4227 = vpop.f32.mrb[0].mxu0
        %v4228 = vadd.f32 %v4134, %v4227
        %v4229 = vpop.f32.mrb[0].mxu0
        %4230 = vmatprep.mubr.f32.mxu0 0.0
        %4231 = vmatmul.mubr.f32.gmra.mrb[0].mxu0 %v4087
        %v4232 = vpop.f32.mrb[0].mxu0
        %v4233 = vadd.f32 %v4134, %v4232
        %v4234 = vpop.f32.mrb[0].mxu0
        %4235 = vmatprep.mubr.f32.mxu0 0.0
        %4236 = vmatmul.mubr.f32.gmra.mrb[0].mxu0 %v4088
        %v4237 = vpop.f32.mrb[0].mxu0
        %v4238 = vadd.f32 %v4134, %v4237
        %v4239 = vpop.f32.mrb[0].mxu0
        %4240 = vmatprep.mubr.f32.mxu0 0.0
        %4241 = vmatmul.mubr.f32.gmra.mrb[0].mxu0 %v4089
        %v4242 = vpop.f32.mrb[0].mxu0
        %v4243 = vadd.f32 %v4134, %v4242
        %v4244 = vpop.f32.mrb[0].mxu0
        %4245 = vmatprep.mubr.f32.mxu0 0.0
        %4246 = vmatmul.mubr.f32.gmra.mrb[0].mxu0 %v4090
        %v4247 = vpop.f32.mrb[0].mxu0
        %v4248 = vadd.f32 %v4134, %v4247
        %v4249 = vpop.f32.mrb[0].mxu0
        %4250 = vmatprep.mubr.f32.mxu0 0.0
        %4251 = vmatmul.mubr.f32.gmra.mrb[0].mxu0 %v4091
        %v4252 = vpop.f32.mrb[0].mxu0
        %v4253 = vadd.f32 %v4134, %v4252
        %v4254 = vpop.f32.mrb[0].mxu0
        %4255 = vmatprep.mubr.f32.mxu0 0.0
        %4256 = vmatmul.mubr.f32.gmra.mrb[0].mxu0 %v4092
        %v4257 = vpop.f32.mrb[0].mxu0
        %v4258 = vadd.f32 %v4134, %v4257
        %v4259 = vpop.f32.mrb[0].mxu0
        %4260 = vmatprep.mubr.f32.mxu0 0.0
        %4261 = vmatmul.mubr.f32.gmra.mrb[0].mxu0 %v4093
        %v4262 = vpop.f32.mrb[0].mxu0
        %v4263 = vadd.f32 %v4134, %v4262
        %v4264 = vpop.f32.mrb[0].mxu0
        %4265 = vmatprep.mubr.f32.mxu0 0.0
        %4266 = vmatmul.mubr.f32.gmra.mrb[0].mxu0 %v4094
        %v4267 = vpop.f32.mrb[0].mxu0
        %v4268 = vadd.f32 %v4134, %v4267
        %v4269 = vpop.f32.mrb[0].mxu0
        %4270 = vmatprep.mubr.f32.mxu0 0.0
        %4271 = vmatmul.mubr.f32.gmra.mrb[0].mxu0 %v4095
        %v4272 = vpop.f32.mrb[0].mxu0
        %v4273 = vadd.f32 %v4134, %v4272
        %v4274 = vpop.f32.mrb[0].mxu0
        %4275 = vmatprep.mubr.f32.mxu0 0.0
        %4276 = vmatmul.mubr.f32.gmra.mrb[0].mxu0 %v4096
        %v4277 = vpop.f32.mrb[0].mxu0
        %v4278 = vadd.f32 %v4134, %v4277
        %v4279 = vpop.f32.mrb[0].mxu0
        %4280 = vmatprep.mubr.f32.mxu0 0.0
        %4281 = vmatmul.mubr.f32.gmra.mrb[0].mxu0 %v4097
        %v4282 = vpop.f32.mrb[0].mxu0
        %v4283 = vadd.f32 %v4134, %v4282
        %v4284 = vpop.f32.mrb[0].mxu0
        %4285 = vmatprep.mubr.f32.mxu0 0.0
        %4286 = vmatmul.mubr.f32.gmra.mrb[0].mxu0 %v4098
        %v4287 = vpop.f32.mrb[0].mxu0
        %v4288 = vadd.f32 %v4134, %v4287
        %v4289 = vpop.f32.mrb[0].mxu0
        %4290 = vmatprep.mubr.f32.mxu0 0.0
        %4291 = vmatmul.mubr.f32.gmra.mrb[0].mxu0 %v4099
        %v4292 = vpop.f32.mrb[0].mxu0
        %v4293 = vadd.f32 %v4134, %v4292
        %v4294 = vpop.f32.mrb[0].mxu0
        %4295 = vmatprep.mubr.f32.mxu0 0.0
        %4296 = vmatmul.mubr.f32.gmra.mrb[0].mxu0 %v4100
        %v4297 = vpop.f32.mrb[0].mxu0
        %v4298 = vadd.f32 %v4134, %v4297
        %v4299 = vpop.f32.mrb[0].mxu0
        %4300 = vmatprep.mubr.f32.mxu0 0.0
        %4301 = vmatmul.mubr.f32.gmra.mrb[0].mxu0 %v4101
        %v4302 = vpop.f32.mrb[0].mxu0
        %v4303 = vadd.f32 %v4134, %v4302
        %v4304 = vpop.f32.mrb[0].mxu0
        %4305 = vmatprep.mubr.f32.mxu0 0.0
        %4306 = vmatmul.mubr.f32.gmra.mrb[0].mxu0 %v4102
        %v4307 = vpop.f32.mrb[0].mxu0
        %v4308 = vadd.f32 %v4134, %v4307
        %v4309 = vpop.f32.mrb[0].mxu0
        %4310 = vmatprep.mubr.f32.mxu0 0.0
        %4311 = vmatmul.mubr.f32.gmra.mrb[0].mxu0 %v4103
        %v4312 = vpop.f32.mrb[0].mxu0
        %v4313 = vadd.f32 %v4134, %v4312
        %v4314 = vpop.f32.mrb[0].mxu0
        %4315 = vmatprep.mubr.f32.mxu0 0.0
        %4316 = vmatmul.mubr.f32.gmra.mrb[0].mxu0 %v4104
        %v4317 = vpop.f32.mrb[0].mxu0
        %v4318 = vadd.f32 %v4134, %v4317
        %v4319 = vpop.f32.mrb[0].mxu0
        %4320 = vmatprep.mubr.f32.mxu0 0.0
        %4321 = vmatmul.mubr.f32.gmra.mrb[0].mxu0 %v4105
        %v4322 = vpop.f32.mrb[0].mxu0
        %v4323 = vadd.f32 %v4134, %v4322
        %v4324 = vpop.f32.mrb[0].mxu0
        %4325 = vmatprep.mubr.f32.mxu0 0.0
        %4326 = vmatmul.mubr.f32.gmra.mrb[0].mxu0 %v4106
        %v4327 = vpop.f32.mrb[0].mxu0
        %v4328 = vadd.f32 %v4134, %v4327
        %v4329 = vpop.f32.mrb[0].mxu0
        %4330 = vmatprep.mubr.f32.mxu0 0.0
        %4331 = vmatmul.mubr.f32.gmra.mrb[0].mxu0 %v4107
        %v4332 = vpop.f32.mrb[0].mxu0
        %v4333 = vadd.f32 %v4134, %v4332
        %v4334 = vpop.f32.mrb[0].mxu0
        %4335 = vmatprep.mubr.f32.mxu0 0.0
        %4336 = vmatmul.mubr.f32.gmra.mrb[0].mxu0 %v4108
        %v4337 = vpop.f32.mrb[0].mxu0
        %v4338 = vadd.f32 %v4134, %v4337
        %v4339 = vpop.f32.mrb[0].mxu0
        %4340 = vmatprep.mubr.f32.mxu0 0.0
        %4341 = vmatmul.mubr.f32.gmra.mrb[0].mxu0 %v4109
        %v4342 = vpop.f32.mrb[0].mxu0
        %v4343 = vadd.f32 %v4134, %v4342
        %v4344 = vpop.f32.mrb[0].mxu0
        %4345 = vmatprep.mubr.f32.mxu0 0.0
        %4346 = vmatmul.mubr.f32.gmra.mrb[0].mxu0 %v4110
        %v4347 = vpop.f32.mrb[0].mxu0
        %v4348 = vadd.f32 %v4134, %v4347
        %v4349 = vpop.f32.mrb[0].mxu0
        %4350 = vmatprep.mubr.f32.mxu0 0.0
        %4351 = vmatmul.mubr.f32.gmra.mrb[0].mxu0 %v4111
        %v4352 = vpop.f32.mrb[0].mxu0
        %v4353 = vadd.f32 %v4134, %v4352
        %v4354 = vpop.f32.mrb[0].mxu0
        %4355 = vmatprep.mubr.f32.mxu0 0.0
        %4356 = vmatmul.mubr.f32.gmra.mrb[0].mxu0 %v4112
        %v4357 = vpop.f32.mrb[0].mxu0
        %v4358 = vadd.f32 %v4134, %v4357
        %v4359 = vpop.f32.mrb[0].mxu0
        %4360 = vdwg.mxu0
        %4361 = vst [vmem:[%s287] sm:$0xff] %v4203
        %4362 = vst [vmem:[%s287 + $0x8] sm:$0xff] %v4208
        %4363 = vst [vmem:[%s287 + $0x10] sm:$0xff] %v4213
        %4364 = vst [vmem:[%s287 + $0x18] sm:$0xff] %v4218
        %4365 = vst [vmem:[%s287 + $0x20] sm:$0xff] %v4223
        %4366 = vst [vmem:[%s287 + $0x28] sm:$0xff] %v4228
        %4367 = vst [vmem:[%s287 + $0x30] sm:$0xff] %v4233
        %4368 = vst [vmem:[%s287 + $0x38] sm:$0xff] %v4238
        %4369 = vst [vmem:[%s287 + $0x40] sm:$0xff] %v4243
        %4370 = vst [vmem:[%s287 + $0x48] sm:$0xff] %v4248
        %4371 = vst [vmem:[%s287 + $0x50] sm:$0xff] %v4253
        %4372 = vst [vmem:[%s287 + $0x58] sm:$0xff] %v4258
        %4373 = vst [vmem:[%s287 + $0x60] sm:$0xff] %v4263
        %4374 = vst [vmem:[%s287 + $0x68] sm:$0xff] %v4268
        %4375 = vst [vmem:[%s287 + $0x70] sm:$0xff] %v4273
        %4376 = vst [vmem:[%s287 + $0x78] sm:$0xff] %v4278
        %4377 = vst [vmem:[%s287 + $0x80] sm:$0xff] %v4283
        %4378 = vst [vmem:[%s287 + $0x88] sm:$0xff] %v4288
        %4379 = vst [vmem:[%s287 + $0x90] sm:$0xff] %v4293
        %4380 = vst [vmem:[%s287 + $0x98] sm:$0xff] %v4298
        %4381 = vst [vmem:[%s287 + $0xa0] sm:$0xff] %v4303
        %4382 = vst [vmem:[%s287 + $0xa8] sm:$0xff] %v4308
        %4383 = vst [vmem:[%s287 + $0xb0] sm:$0xff] %v4313
        %4384 = vst [vmem:[%s287 + $0xb8] sm:$0xff] %v4318
        %4385 = vst [vmem:[%s287 + $0xc0] sm:$0xff] %v4323
        %4386 = vst [vmem:[%s287 + $0xc8] sm:$0xff] %v4328
        %4387 = vst [vmem:[%s287 + $0xd0] sm:$0xff] %v4333
        %4388 = vst [vmem:[%s287 + $0xd8] sm:$0xff] %v4338
        %4389 = vst [vmem:[%s287 + $0xe0] sm:$0xff] %v4343
        %4390 = vst [vmem:[%s287 + $0xe8] sm:$0xff] %v4348
        %4391 = vst [vmem:[%s287 + $0xf0] sm:$0xff] %v4353
        %4392 = vst [vmem:[%s287 + $0xf8] sm:$0xff] %v4358
        %s4393 = sand.u32 %s176, 1
        %s4394 = scalar_lea.sflag [#allocation8], %s4393
        %s4395 = sand.u32 %s176, 1
        %s4396 = smul.addr %s4395, 256
        %s4397 = scalar_lea.vmem [#allocation9], %s4396
        // Predicated region
        $region53: #{tpu_custom_call.1} parent=43 // pred_check
          %p4398 = pneg %p186
        $region54: #{tpu_custom_call.1} parent=43 // pred_check_branch
          %4400 = sbr.rel (%p4398) target = $region56
        $region55: #{tpu_custom_call.1} parent=43 // pred_region
          %s4401 = smul.u32 8, %s26
          %s4402 = smul.u32 4, %s25
          %s4404 = ssub.s32 4096, 4096
          %4405 = vsyncadd %s4394, %s4404
          %s4406 = smul.addr %s4401, 4
          %s4407 = sadd.s32 %s4402, %s4406
          %s4408 = smul.addr %s4407, 128
          %s4409 = scalar_lea.hbm %s6, %s4408
          %s4410 = sshll.u32 %s4397, 4
          %s4411 = int_to_ptr.vmem [resolvable:$true] %s4410
          %4416 = dma.vmem_to_hbm [thread:$0]  %s4411, 4096, %s4409, %s4394, 128, 128, 8
        $region56: #{tpu_custom_call.1} parent=43 // pred_fallthru
          _
      $region44: #{tpu_custom_call.1} parent=5 // pred_fallthru
        _
      %p4417 = scmp.le.s32.totalorder 2, %s16
      // Predicated region
      $region57: #{tpu_custom_call.1} parent=5 // pred_check
        %p4418 = pneg %p4417
      $region58: #{tpu_custom_call.1} parent=5 // pred_check_branch
        %4420 = sbr.rel (%p4418) target = $region60
      $region59: #{tpu_custom_call.1} parent=5 // pred_region
        %s4421 = ssub.s32 %s16, 2
        // Predicated region
        $region61: #{tpu_custom_call.1} parent=59 // pred_check
          %p4422 = pneg %p192
        $region62: #{tpu_custom_call.1} parent=59 // pred_check_branch
          %4424 = sbr.rel (%p4422) target = $region64
        $region63: #{tpu_custom_call.1} parent=59 // pred_region
          %s4425 = sand.u32 %s177, 1
          %s4426 = scalar_lea.sflag [#allocation8], %s4425
          %s4427 = sand.u32 %s177, 1
          %s4428 = smul.addr %s4427, 256
          %s4429 = scalar_lea.vmem [#allocation9], %s4428
          %4430 = dma.done %s4426, 4096
        $region64: #{tpu_custom_call.1} parent=59 // pred_fallthru
          _
      $region60: #{tpu_custom_call.1} parent=5 // pred_fallthru
        _
    $region6: #{tpu_custom_call.1} parent=1 // loop_footer
      %s20 = sadd.s32 1, %s16
    $region7: #{tpu_custom_call.1} parent=1 // loop_footer_branch
      %15 = sbr.rel target = $region3
    $region8: #{tpu_custom_call.1} parent=1 // loop_exit
      _
    %4431 = vsyncpa [#allocation7], 1
    %s4432 = scalar_lea.sflag [#allocation7], 1
    %4433 = vsyncpa %s4432, 1
    %4434 = vsyncpa [#allocation8], 1
    %s4435 = scalar_lea.sflag [#allocation8], 1
    %4436 = vsyncpa %s4435, 1

</llo_original>
